<compile_context>
chip_gen: v6e
topology: v6e:2x2x1
jax: 0.10.0
libtpu: 0.0.40
codegen_flags: <defaults>
</compile_context>

<pallas_src>
import functools

import jax
import jax.numpy as jnp
from jax import lax
from jax.experimental import pallas as pl
from jax.experimental.pallas import tpu as pltpu

_BATCH_TILE = 8                       # sublane tile for the batch dimension
_VMEM_LIMIT = 48 * 1024 * 1024        # fits v7x's 64 MiB, raises v5e's 16 MiB default


# ----------------------------- encoder kernel -------------------------------
def _encoder_kernel(x_ref, wih_ref, whh_ref, b_ref, out_ref, h_ref, c_ref, gx_ref):
    # x_ref:   (T_src, bt, E)   embedded source tokens (time-major, batch tile)
    # wih_ref: (E, 4H), whh_ref: (H, 4H), b_ref: (1, 4H)
    # out_ref: (T_src, bt, H)   per-step hidden states
    # h_ref, c_ref: (bt, H)     final LSTM state
    # gx_ref:  (T_src, bt, 4H)  scratch holding the hoisted input projection
    T, bt, E = x_ref.shape
    H = whh_ref.shape[0]
    bf16 = jnp.bfloat16

    # Hoisted input-to-hidden projection: ONE big (T*bt, E) @ (E, 4H) MXU matmul
    # (bias folded in) instead of T tiny matmuls on the serial critical path.
    wih = wih_ref[...].astype(bf16)
    x_flat = x_ref[...].reshape(T * bt, E).astype(bf16)
    gx_ref[...] = (jnp.dot(x_flat, wih, preferred_element_type=jnp.float32)
                   + b_ref[...]).reshape(T, bt, 4 * H)

    whh = whh_ref[...].astype(bf16)

    def step(t, carry):
        h, c = carry
        gates = gx_ref[t] + jnp.dot(h.astype(bf16), whh,
                                    preferred_element_type=jnp.float32)
        i = jax.nn.sigmoid(gates[:, 0:H])
        f = jax.nn.sigmoid(gates[:, H:2 * H])
        g = jnp.tanh(gates[:, 2 * H:3 * H])
        o = jax.nn.sigmoid(gates[:, 3 * H:4 * H])
        c = f * c + i * g
        h = o * jnp.tanh(c)
        out_ref[t] = h
        return (h, c)

    h0 = jnp.zeros((bt, H), jnp.float32)
    c0 = jnp.zeros((bt, H), jnp.float32)
    hT, cT = lax.fori_loop(0, T, step, (h0, c0))
    h_ref[...] = hT
    c_ref[...] = cT


# ------------------------- decoder recurrence kernel -------------------------
def _decoder_rnn_kernel(y_ref, enc_bth_ref, enc_bht_ref, h0_ref, c0_ref,
                        wih_ref, whh_ref, b_ref, wc_ctx_ref, wc_h_ref,
                        comb_ref, gx_ref):
    # y_ref:       (T_tgt, bt, E)  embedded target tokens (time-major)
    # enc_bth_ref: (bt, T_src, H)  encoder outputs  (scores contract over lane H)
    # enc_bht_ref: (bt, H, T_src)  encoder outputs  (ctx contracts over lane T_src)
    # h0_ref/c0_ref: (bt, H)       encoder final state -> decoder init state
    # wc_ctx_ref/wc_h_ref: (H, H)  split halves of the (2H, H) attn-combine matrix
    # comb_ref:    (T_tgt, bt, H)  attentional hidden states tanh(W [ctx, h])
    # gx_ref:      (T_tgt, bt, 4H) scratch for the hoisted input projection
    T, bt, E = y_ref.shape
    H = whh_ref.shape[0]
    bf16 = jnp.bfloat16

    wih = wih_ref[...].astype(bf16)
    y_flat = y_ref[...].reshape(T * bt, E).astype(bf16)
    gx_ref[...] = (jnp.dot(y_flat, wih, preferred_element_type=jnp.float32)
                   + b_ref[...]).reshape(T, bt, 4 * H)

    whh = whh_ref[...].astype(bf16)
    wc_ctx = wc_ctx_ref[...].astype(bf16)
    wc_h = wc_h_ref[...].astype(bf16)
    enc_bth = enc_bth_ref[...]   # (bt, T_src, H)
    enc_bht = enc_bht_ref[...]   # (bt, H, T_src)

    def step(t, carry):
        h, c = carry
        gates = gx_ref[t] + jnp.dot(h.astype(bf16), whh,
                                    preferred_element_type=jnp.float32)
        i = jax.nn.sigmoid(gates[:, 0:H])
        f = jax.nn.sigmoid(gates[:, H:2 * H])
        g = jnp.tanh(gates[:, 2 * H:3 * H])
        o = jax.nn.sigmoid(gates[:, 3 * H:4 * H])
        c = f * c + i * g
        h = o * jnp.tanh(c)

        # Luong dot attention. Both contractions reduce over the LANE axis of a
        # pre-transposed encoder layout (VPU multiply + lane reduce); no per-step
        # cross-sublane transposes of a time-major tensor.
        scores = jnp.sum(enc_bth * h[:, None, :], axis=-1)              # (bt, T_src)
        m = jnp.max(scores, axis=-1, keepdims=True)
        e = jnp.exp(scores - m)
        attn = e * pl.reciprocal(jnp.sum(e, axis=-1, keepdims=True), approx=True)
        ctx = jnp.sum(enc_bht * attn[:, None, :], axis=-1)              # (bt, H)

        combined = jnp.tanh(
            jnp.dot(ctx.astype(bf16), wc_ctx, preferred_element_type=jnp.float32)
            + jnp.dot(h.astype(bf16), wc_h, preferred_element_type=jnp.float32))
        comb_ref[t] = combined
        return (h, c)

    lax.fori_loop(0, T, step, (h0_ref[...], c0_ref[...]))


# ------------------- vocab projection + log_softmax kernel -------------------
def _proj_logsoftmax_kernel(comb_ref, wout_ref, bout_ref, out_ref):
    # comb_ref: (rt, H), wout_ref: (H, V), bout_ref: (1, V), out_ref: (rt, V)
    logits = (jnp.dot(comb_ref[...].astype(jnp.bfloat16),
                      wout_ref[...].astype(jnp.bfloat16),
                      preferred_element_type=jnp.float32)
              + bout_ref[...])
    m = jnp.max(logits, axis=-1, keepdims=True)
    lse = m + jnp.log(jnp.sum(jnp.exp(logits - m), axis=-1, keepdims=True))
    out_ref[...] = logits - lse


# ------------------------------- wrappers ------------------------------------
def encoder_forward(x_emb, wih, whh, b):
    T, Bp, E = x_emb.shape
    H = whh.shape[0]
    bt = _BATCH_TILE
    return pl.pallas_call(
        _encoder_kernel,
        out_shape=(jax.ShapeDtypeStruct((T, Bp, H), jnp.float32),
                   jax.ShapeDtypeStruct((Bp, H), jnp.float32),
                   jax.ShapeDtypeStruct((Bp, H), jnp.float32)),
        grid=(Bp // bt,),
        in_specs=[pl.BlockSpec((T, bt, E), lambda bb: (0, bb, 0)),
                  pl.BlockSpec((E, 4 * H), lambda bb: (0, 0)),
                  pl.BlockSpec((H, 4 * H), lambda bb: (0, 0)),
                  pl.BlockSpec((1, 4 * H), lambda bb: (0, 0))],
        out_specs=(pl.BlockSpec((T, bt, H), lambda bb: (0, bb, 0)),
                   pl.BlockSpec((bt, H), lambda bb: (bb, 0)),
                   pl.BlockSpec((bt, H), lambda bb: (bb, 0))),
        scratch_shapes=[pltpu.VMEM((T, bt, 4 * H), jnp.float32)],
        compiler_params=pltpu.CompilerParams(
            dimension_semantics=("parallel",),
            vmem_limit_bytes=_VMEM_LIMIT),
    )(x_emb, wih, whh, b)


def decoder_rnn_forward(y_emb, enc_bth, enc_bht, h0, c0, wih, whh, b, wc_ctx, wc_h):
    T, Bp, E = y_emb.shape
    H = whh.shape[0]
    T_src = enc_bth.shape[1]
    bt = _BATCH_TILE
    return pl.pallas_call(
        _decoder_rnn_kernel,
        out_shape=jax.ShapeDtypeStruct((T, Bp, H), jnp.float32),
        grid=(Bp // bt,),
        in_specs=[pl.BlockSpec((T, bt, E), lambda bb: (0, bb, 0)),
                  pl.BlockSpec((bt, T_src, H), lambda bb: (bb, 0, 0)),
                  pl.BlockSpec((bt, H, T_src), lambda bb: (bb, 0, 0)),
                  pl.BlockSpec((bt, H), lambda bb: (bb, 0)),
                  pl.BlockSpec((bt, H), lambda bb: (bb, 0)),
                  pl.BlockSpec((E, 4 * H), lambda bb: (0, 0)),
                  pl.BlockSpec((H, 4 * H), lambda bb: (0, 0)),
                  pl.BlockSpec((1, 4 * H), lambda bb: (0, 0)),
                  pl.BlockSpec((H, H), lambda bb: (0, 0)),
                  pl.BlockSpec((H, H), lambda bb: (0, 0))],
        out_specs=pl.BlockSpec((T, bt, H), lambda bb: (0, bb, 0)),
        scratch_shapes=[pltpu.VMEM((T, bt, 4 * H), jnp.float32)],
        compiler_params=pltpu.CompilerParams(
            dimension_semantics=("parallel",),
            vmem_limit_bytes=_VMEM_LIMIT),
    )(y_emb, enc_bth, enc_bht, h0, c0, wih, whh, b, wc_ctx, wc_h)


def _pick_row_tile(rows):
    for cand in (512, 256, 128, 64, 32, 16, 8):
        if rows % cand == 0:
            return cand
    return rows


def proj_logsoftmax_forward(comb2d, wout, bout):
    # comb2d: (T_tgt*Bp, H) -> log-probs (T_tgt*Bp, V), gridded over row tiles so
    # the big output streams through VMEM and the grid axis runs on both TCs.
    rows, H = comb2d.shape
    V = wout.shape[1]
    rt = _pick_row_tile(rows)
    # TODO(synk): for very large vocabularies, additionally tile V with a
    # two-pass (max / sum-exp) log_softmax instead of a fully resident (H, V) wout.
    return pl.pallas_call(
        _proj_logsoftmax_kernel,
        out_shape=jax.ShapeDtypeStruct((rows, V), jnp.float32),
        grid=(rows // rt,),
        in_specs=[pl.BlockSpec((rt, H), lambda i: (i, 0)),
                  pl.BlockSpec((H, V), lambda i: (0, 0)),
                  pl.BlockSpec((1, V), lambda i: (0, 0))],
        out_specs=pl.BlockSpec((rt, V), lambda i: (i, 0)),
        compiler_params=pltpu.CompilerParams(
            dimension_semantics=("parallel",),
            vmem_limit_bytes=_VMEM_LIMIT),
    )(comb2d, wout, bout)


class Seq2seqPallas:
    """Seq2seq forward: decoder_outputs = decoder(y, encoder(x))."""

    def __init__(self, src_vocab, tgt_vocab, embed_dim, hidden_dim, key):
        ks = jax.random.split(key, 12)
        s = 0.08
        f32 = jnp.float32
        self.src_embed = jax.random.normal(ks[0], (src_vocab, embed_dim), f32) * s
        self.tgt_embed = jax.random.normal(ks[1], (tgt_vocab, embed_dim), f32) * s
        # encoder LSTM (single fused bias == PyTorch's b_ih + b_hh summed)
        self.e_wih = jax.random.normal(ks[2], (embed_dim, 4 * hidden_dim), f32) * s
        self.e_whh = jax.random.normal(ks[3], (hidden_dim, 4 * hidden_dim), f32) * s
        self.e_b = jax.random.normal(ks[4], (1, 4 * hidden_dim), f32) * s
        # decoder LSTM
        self.d_wih = jax.random.normal(ks[5], (embed_dim, 4 * hidden_dim), f32) * s
        self.d_whh = jax.random.normal(ks[6], (hidden_dim, 4 * hidden_dim), f32) * s
        self.d_b = jax.random.normal(ks[7], (1, 4 * hidden_dim), f32) * s
        # attention combine (2H -> H), split into ctx / h halves
        self.wc_ctx = jax.random.normal(ks[8], (hidden_dim, hidden_dim), f32) * s
        self.wc_h = jax.random.normal(ks[9], (hidden_dim, hidden_dim), f32) * s
        # output projection
        self.wout = jax.random.normal(ks[10], (hidden_dim, tgt_vocab), f32) * s
        self.bout = jax.random.normal(ks[11], (1, tgt_vocab), f32) * s

    @functools.partial(jax.jit, static_argnums=0)
    def forward(self, x, y, input_lengths=None):
        # TODO(synk): input_lengths (packed / variable-length source sequences) is
        # ignored; full-length sequences are encoded and attended over.
        # x: (B, T_src) int32 tokens; y: (B, T_tgt) int32 tokens.
        B = x.shape[0]
        Bp = (B + _BATCH_TILE - 1) // _BATCH_TILE * _BATCH_TILE
        if Bp != B:  # pad batch so (B, H)/(B, 4H) tiles are sublane-aligned
            x = jnp.pad(x, ((0, Bp - B), (0, 0)))
            y = jnp.pad(y, ((0, Bp - B), (0, 0)))

        x_emb = jnp.transpose(self.src_embed[x], (1, 0, 2))  # (T_src, Bp, E)
        y_emb = jnp.transpose(self.tgt_embed[y], (1, 0, 2))  # (T_tgt, Bp, E)

        enc_out, h_n, c_n = encoder_forward(x_emb, self.e_wih, self.e_whh, self.e_b)
        # Pre-transpose encoder outputs ONCE (outside the serial decoder loop).
        enc_bth = jnp.transpose(enc_out, (1, 0, 2))  # (Bp, T_src, H)
        enc_bht = jnp.transpose(enc_out, (1, 2, 0))  # (Bp, H, T_src)

        comb = decoder_rnn_forward(
            y_emb, enc_bth, enc_bht, h_n, c_n,
            self.d_wih, self.d_whh, self.d_b, self.wc_ctx, self.wc_h)

        T_tgt, _, H = comb.shape
        logp = proj_logsoftmax_forward(comb.reshape(T_tgt * Bp, H),
                                       self.wout, self.bout)
        logp = logp.reshape(T_tgt, Bp, -1)
        # time-major (T_tgt, Bp, V) -> batch-first (B, T_tgt, V), drop pad rows
        return jnp.transpose(logp, (1, 0, 2))[:B]


if __name__ == "__main__":
    key = jax.random.PRNGKey(0)
    k_params, k_x, k_y = jax.random.split(key, 3)

    B, T_SRC, T_TGT = 2, 8, 8
    EMBED, HIDDEN = 128, 128          # lane-aligned feature dims
    SRC_VOCAB, TGT_VOCAB = 32, 256    # lane-aligned target vocab

    model = Seq2seqPallas(SRC_VOCAB, TGT_VOCAB, EMBED, HIDDEN, k_params)

    x = jax.random.randint(k_x, (B, T_SRC), 0, SRC_VOCAB, dtype=jnp.int32)
    y = jax.random.randint(k_y, (B, T_TGT), 0, TGT_VOCAB, dtype=jnp.int32)

    out = model.forward(x, y)
    jax.block_until_ready(out)

    assert out.shape == (B, T_TGT, TGT_VOCAB)
    # rows of log-probs must normalize to 1 in prob space
    assert jnp.allclose(jnp.sum(jnp.exp(out), axis=-1), 1.0, atol=1e-3)
    print("KERNEL_OK")
</pallas_src>

<mosaic_0001>
module attributes {stable_mosaic.version = 11 : i64} {
  func.func @_encoder_kernel(%arg0: i32, %arg1: memref<8x8x128xf32, #tpu.memory_space<vmem>>, %arg2: memref<128x512xf32, #tpu.memory_space<vmem>>, %arg3: memref<128x512xf32, #tpu.memory_space<vmem>>, %arg4: memref<1x512xf32, #tpu.memory_space<vmem>>, %arg5: memref<8x8x128xf32, #tpu.memory_space<vmem>>, %arg6: memref<8x128xf32, #tpu.memory_space<vmem>>, %arg7: memref<8x128xf32, #tpu.memory_space<vmem>>, %arg8: memref<8x8x512xf32, #tpu.memory_space<vmem>>) attributes {dimension_semantics = [#tpu.dimension_semantics<parallel>], iteration_bounds = array<i64: 1>, scalar_prefetch = 0 : i64, scratch_operands = 1 : i64, tpu.core_type = #tpu.core_type<tc>, window_params = [{transform_indices = @transform_0, window_bounds = array<i64: 8, 8, 128>}, {pipeline_mode = #tpu.pipeline_mode<synchronous>, transform_indices = @transform_1, window_bounds = array<i64: 128, 512>}, {pipeline_mode = #tpu.pipeline_mode<synchronous>, transform_indices = @transform_2, window_bounds = array<i64: 128, 512>}, {pipeline_mode = #tpu.pipeline_mode<synchronous>, transform_indices = @transform_3, window_bounds = array<i64: 1, 512>}, {transform_indices = @transform_4, window_bounds = array<i64: 8, 8, 128>}, {transform_indices = @transform_5, window_bounds = array<i64: 8, 128>}, {transform_indices = @transform_6, window_bounds = array<i64: 8, 128>}]} {
    %c0 = arith.constant 0 : index
    %c0_0 = arith.constant 0 : index
    %0 = vector.load %arg2[%c0, %c0_0] : memref<128x512xf32, #tpu.memory_space<vmem>>, vector<128x512xf32>
    %1 = arith.truncf %0 : vector<128x512xf32> to vector<128x512xbf16>
    %c0_1 = arith.constant 0 : index
    %c0_2 = arith.constant 0 : index
    %c0_3 = arith.constant 0 : index
    %2 = vector.load %arg1[%c0_1, %c0_2, %c0_3] : memref<8x8x128xf32, #tpu.memory_space<vmem>>, vector<8x8x128xf32>
    %3 = vector.shape_cast %2 : vector<8x8x128xf32> to vector<64x128xf32>
    %4 = arith.truncf %3 : vector<64x128xf32> to vector<64x128xbf16>
    %cst = arith.constant dense<0.000000e+00> : vector<64x512xf32>
    %5 = tpu.matmul %4, %1, %cst {dimension_numbers = #tpu.dot_dimension_numbers<[1], [0], [0], [1], [0, 0, 1, 1], [], []>} : vector<64x128xbf16>, vector<128x512xbf16>, vector<64x512xf32> -> vector<64x512xf32>
    %c0_4 = arith.constant 0 : index
    %c0_5 = arith.constant 0 : index
    %6 = vector.load %arg4[%c0_4, %c0_5] : memref<1x512xf32, #tpu.memory_space<vmem>>, vector<1x512xf32>
    %7 = vector.broadcast %6 : vector<1x512xf32> to vector<64x512xf32>
    %8 = arith.addf %5, %7 : vector<64x512xf32>
    %9 = vector.shape_cast %8 : vector<64x512xf32> to vector<8x8x512xf32>
    %c0_6 = arith.constant 0 : index
    %c0_7 = arith.constant 0 : index
    %c0_8 = arith.constant 0 : index
    %10 = vector.load %arg8[%c0_6, %c0_7, %c0_8] : memref<8x8x512xf32, #tpu.memory_space<vmem>>, vector<8x8x512xf32>
    tpu.vector_store %arg8[%c0_6, %c0_7, %c0_8], %9 {strides = array<i32>} : memref<8x8x512xf32, #tpu.memory_space<vmem>>, vector<8x8x512xf32>,
    %c0_9 = arith.constant 0 : index
    %c0_10 = arith.constant 0 : index
    %11 = vector.load %arg3[%c0_9, %c0_10] : memref<128x512xf32, #tpu.memory_space<vmem>>, vector<128x512xf32>
    %12 = arith.truncf %11 : vector<128x512xf32> to vector<128x512xbf16>
    %cst_11 = arith.constant 0.000000e+00 : f32
    %13 = vector.broadcast %cst_11 : f32 to vector<8x128xf32>
    %cst_12 = arith.constant 0.000000e+00 : f32
    %14 = vector.broadcast %cst_12 : f32 to vector<8x128xf32>
    %c0_i32 = arith.constant 0 : i32
    %c8_i32 = arith.constant 8 : i32
    %15 = arith.addi %c0_i32, %c8_i32 : i32
    %c1_i32 = arith.constant 1 : i32
    %16:2 = scf.for %arg9 = %c0_i32 to %15 step %c1_i32 iter_args(%arg10 = %13, %arg11 = %14) -> (vector<8x128xf32>, vector<8x128xf32>)  : i32 {
      %19 = arith.index_cast %arg9 : i32 to index
      %c0_18 = arith.constant 0 : index
      %c0_19 = arith.constant 0 : index
      %20 = vector.load %arg8[%19, %c0_18, %c0_19] : memref<8x8x512xf32, #tpu.memory_space<vmem>>, vector<1x8x512xf32>
      %21 = vector.shape_cast %20 : vector<1x8x512xf32> to vector<8x512xf32>
      %22 = arith.truncf %arg10 : vector<8x128xf32> to vector<8x128xbf16>
      %cst_20 = arith.constant dense<0.000000e+00> : vector<8x512xf32>
      %23 = tpu.matmul %22, %12, %cst_20 {dimension_numbers = #tpu.dot_dimension_numbers<[1], [0], [0], [1], [0, 0, 1, 1], [], []>} : vector<8x128xbf16>, vector<128x512xbf16>, vector<8x512xf32> -> vector<8x512xf32>
      %24 = arith.addf %21, %23 : vector<8x512xf32>
      %25 = vector.extract_strided_slice %24 {offsets = [0, 0], sizes = [8, 128], strides = [1, 1]} : vector<8x512xf32> to vector<8x128xf32>
      %26 = arith.negf %25 : vector<8x128xf32>
      %27 = math.exp %26 : vector<8x128xf32>
      %cst_21 = arith.constant 1.000000e+00 : f32
      %28 = vector.broadcast %cst_21 : f32 to vector<8x128xf32>
      %29 = arith.addf %28, %27 : vector<8x128xf32>
      %30 = arith.divf %28, %29 : vector<8x128xf32>
      %31 = vector.extract_strided_slice %24 {offsets = [0, 128], sizes = [8, 128], strides = [1, 1]} : vector<8x512xf32> to vector<8x128xf32>
      %32 = arith.negf %31 : vector<8x128xf32>
      %33 = math.exp %32 : vector<8x128xf32>
      %cst_22 = arith.constant 1.000000e+00 : f32
      %34 = vector.broadcast %cst_22 : f32 to vector<8x128xf32>
      %35 = arith.addf %34, %33 : vector<8x128xf32>
      %36 = arith.divf %34, %35 : vector<8x128xf32>
      %37 = vector.extract_strided_slice %24 {offsets = [0, 256], sizes = [8, 128], strides = [1, 1]} : vector<8x512xf32> to vector<8x128xf32>
      %38 = math.tanh %37 : vector<8x128xf32>
      %39 = vector.extract_strided_slice %24 {offsets = [0, 384], sizes = [8, 128], strides = [1, 1]} : vector<8x512xf32> to vector<8x128xf32>
      %40 = arith.negf %39 : vector<8x128xf32>
      %41 = math.exp %40 : vector<8x128xf32>
      %cst_23 = arith.constant 1.000000e+00 : f32
      %42 = vector.broadcast %cst_23 : f32 to vector<8x128xf32>
      %43 = arith.addf %42, %41 : vector<8x128xf32>
      %44 = arith.divf %42, %43 : vector<8x128xf32>
      %45 = arith.mulf %36, %arg11 : vector<8x128xf32>
      %46 = arith.mulf %30, %38 : vector<8x128xf32>
      %47 = arith.addf %45, %46 : vector<8x128xf32>
      %48 = math.tanh %47 : vector<8x128xf32>
      %49 = arith.mulf %44, %48 : vector<8x128xf32>
      %50 = arith.index_cast %arg9 : i32 to index
      %c0_24 = arith.constant 0 : index
      %c0_25 = arith.constant 0 : index
      %51 = vector.load %arg5[%50, %c0_24, %c0_25] : memref<8x8x128xf32, #tpu.memory_space<vmem>>, vector<1x8x128xf32>
      %52 = vector.shape_cast %51 : vector<1x8x128xf32> to vector<8x128xf32>
      %53 = vector.shape_cast %49 : vector<8x128xf32> to vector<1x8x128xf32>
      tpu.vector_store %arg5[%50, %c0_24, %c0_25], %53 {strides = array<i32>} : memref<8x8x128xf32, #tpu.memory_space<vmem>>, vector<1x8x128xf32>,
      scf.yield %49, %47 : vector<8x128xf32>, vector<8x128xf32>
    }
    %c8_i32_13 = arith.constant 8 : i32
    %c0_14 = arith.constant 0 : index
    %c0_15 = arith.constant 0 : index
    %17 = vector.load %arg6[%c0_14, %c0_15] : memref<8x128xf32, #tpu.memory_space<vmem>>, vector<8x128xf32>
    tpu.vector_store %arg6[%c0_14, %c0_15], %16#0 {strides = array<i32>} : memref<8x128xf32, #tpu.memory_space<vmem>>, vector<8x128xf32>,
    %c0_16 = arith.constant 0 : index
    %c0_17 = arith.constant 0 : index
    %18 = vector.load %arg7[%c0_16, %c0_17] : memref<8x128xf32, #tpu.memory_space<vmem>>, vector<8x128xf32>
    tpu.vector_store %arg7[%c0_16, %c0_17], %16#1 {strides = array<i32>} : memref<8x128xf32, #tpu.memory_space<vmem>>, vector<8x128xf32>,
    return
  }
  func.func @transform_0(%arg0: i32) -> (i32, i32, i32) {
    %c0_i32 = arith.constant 0 : i32
    %c0_i32_0 = arith.constant 0 : i32
    %c0_i32_1 = arith.constant 0 : i32
    return %c0_i32, %arg0, %c0_i32_0 : i32, i32, i32
  }
  func.func @transform_1(%arg0: i32) -> (i32, i32) {
    %c0_i32 = arith.constant 0 : i32
    %c0_i32_0 = arith.constant 0 : i32
    %c0_i32_1 = arith.constant 0 : i32
    return %c0_i32, %c0_i32_0 : i32, i32
  }
  func.func @transform_2(%arg0: i32) -> (i32, i32) {
    %c0_i32 = arith.constant 0 : i32
    %c0_i32_0 = arith.constant 0 : i32
    %c0_i32_1 = arith.constant 0 : i32
    return %c0_i32, %c0_i32_0 : i32, i32
  }
  func.func @transform_3(%arg0: i32) -> (i32, i32) {
    %c0_i32 = arith.constant 0 : i32
    %c0_i32_0 = arith.constant 0 : i32
    %c0_i32_1 = arith.constant 0 : i32
    return %c0_i32, %c0_i32_0 : i32, i32
  }
  func.func @transform_4(%arg0: i32) -> (i32, i32, i32) {
    %c0_i32 = arith.constant 0 : i32
    %c0_i32_0 = arith.constant 0 : i32
    %c0_i32_1 = arith.constant 0 : i32
    return %c0_i32, %arg0, %c0_i32_0 : i32, i32, i32
  }
  func.func @transform_5(%arg0: i32) -> (i32, i32) {
    %c0_i32 = arith.constant 0 : i32
    %c0_i32_0 = arith.constant 0 : i32
    return %arg0, %c0_i32 : i32, i32
  }
  func.func @transform_6(%arg0: i32) -> (i32, i32) {
    %c0_i32 = arith.constant 0 : i32
    %c0_i32_0 = arith.constant 0 : i32
    return %arg0, %c0_i32 : i32, i32
  }
}

module attributes {stable_mosaic.version = 11 : i64} {
  func.func @_decoder_rnn_kernel(%arg0: i32, %arg1: memref<8x8x128xf32, #tpu.memory_space<vmem>>, %arg2: memref<8x8x128xf32, #tpu.memory_space<vmem>>, %arg3: memref<8x128x8xf32, #tpu.memory_space<vmem>>, %arg4: memref<8x128xf32, #tpu.memory_space<vmem>>, %arg5: memref<8x128xf32, #tpu.memory_space<vmem>>, %arg6: memref<128x512xf32, #tpu.memory_space<vmem>>, %arg7: memref<128x512xf32, #tpu.memory_space<vmem>>, %arg8: memref<1x512xf32, #tpu.memory_space<vmem>>, %arg9: memref<128x128xf32, #tpu.memory_space<vmem>>, %arg10: memref<128x128xf32, #tpu.memory_space<vmem>>, %arg11: memref<8x8x128xf32, #tpu.memory_space<vmem>>, %arg12: memref<8x8x512xf32, #tpu.memory_space<vmem>>) attributes {dimension_semantics = [#tpu.dimension_semantics<parallel>], iteration_bounds = array<i64: 1>, scalar_prefetch = 0 : i64, scratch_operands = 1 : i64, tpu.core_type = #tpu.core_type<tc>, window_params = [{transform_indices = @transform_0, window_bounds = array<i64: 8, 8, 128>}, {transform_indices = @transform_1, window_bounds = array<i64: 8, 8, 128>}, {transform_indices = @transform_2, window_bounds = array<i64: 8, 128, 8>}, {transform_indices = @transform_3, window_bounds = array<i64: 8, 128>}, {transform_indices = @transform_4, window_bounds = array<i64: 8, 128>}, {pipeline_mode = #tpu.pipeline_mode<synchronous>, transform_indices = @transform_5, window_bounds = array<i64: 128, 512>}, {pipeline_mode = #tpu.pipeline_mode<synchronous>, transform_indices = @transform_6, window_bounds = array<i64: 128, 512>}, {pipeline_mode = #tpu.pipeline_mode<synchronous>, transform_indices = @transform_7, window_bounds = array<i64: 1, 512>}, {pipeline_mode = #tpu.pipeline_mode<synchronous>, transform_indices = @transform_8, window_bounds = array<i64: 128, 128>}, {pipeline_mode = #tpu.pipeline_mode<synchronous>, transform_indices = @transform_9, window_bounds = array<i64: 128, 128>}, {transform_indices = @transform_10, window_bounds = array<i64: 8, 8, 128>}]} {
    %c0 = arith.constant 0 : index
    %c0_0 = arith.constant 0 : index
    %0 = vector.load %arg6[%c0, %c0_0] : memref<128x512xf32, #tpu.memory_space<vmem>>, vector<128x512xf32>
    %1 = arith.truncf %0 : vector<128x512xf32> to vector<128x512xbf16>
    %c0_1 = arith.constant 0 : index
    %c0_2 = arith.constant 0 : index
    %c0_3 = arith.constant 0 : index
    %2 = vector.load %arg1[%c0_1, %c0_2, %c0_3] : memref<8x8x128xf32, #tpu.memory_space<vmem>>, vector<8x8x128xf32>
    %3 = vector.shape_cast %2 : vector<8x8x128xf32> to vector<64x128xf32>
    %4 = arith.truncf %3 : vector<64x128xf32> to vector<64x128xbf16>
    %cst = arith.constant dense<0.000000e+00> : vector<64x512xf32>
    %5 = tpu.matmul %4, %1, %cst {dimension_numbers = #tpu.dot_dimension_numbers<[1], [0], [0], [1], [0, 0, 1, 1], [], []>} : vector<64x128xbf16>, vector<128x512xbf16>, vector<64x512xf32> -> vector<64x512xf32>
    %c0_4 = arith.constant 0 : index
    %c0_5 = arith.constant 0 : index
    %6 = vector.load %arg8[%c0_4, %c0_5] : memref<1x512xf32, #tpu.memory_space<vmem>>, vector<1x512xf32>
    %7 = vector.broadcast %6 : vector<1x512xf32> to vector<64x512xf32>
    %8 = arith.addf %5, %7 : vector<64x512xf32>
    %9 = vector.shape_cast %8 : vector<64x512xf32> to vector<8x8x512xf32>
    %c0_6 = arith.constant 0 : index
    %c0_7 = arith.constant 0 : index
    %c0_8 = arith.constant 0 : index
    %10 = vector.load %arg12[%c0_6, %c0_7, %c0_8] : memref<8x8x512xf32, #tpu.memory_space<vmem>>, vector<8x8x512xf32>
    tpu.vector_store %arg12[%c0_6, %c0_7, %c0_8], %9 {strides = array<i32>} : memref<8x8x512xf32, #tpu.memory_space<vmem>>, vector<8x8x512xf32>,
    %c0_9 = arith.constant 0 : index
    %c0_10 = arith.constant 0 : index
    %11 = vector.load %arg7[%c0_9, %c0_10] : memref<128x512xf32, #tpu.memory_space<vmem>>, vector<128x512xf32>
    %12 = arith.truncf %11 : vector<128x512xf32> to vector<128x512xbf16>
    %c0_11 = arith.constant 0 : index
    %c0_12 = arith.constant 0 : index
    %13 = vector.load %arg9[%c0_11, %c0_12] : memref<128x128xf32, #tpu.memory_space<vmem>>, vector<128x128xf32>
    %14 = arith.truncf %13 : vector<128x128xf32> to vector<128x128xbf16>
    %c0_13 = arith.constant 0 : index
    %c0_14 = arith.constant 0 : index
    %15 = vector.load %arg10[%c0_13, %c0_14] : memref<128x128xf32, #tpu.memory_space<vmem>>, vector<128x128xf32>
    %16 = arith.truncf %15 : vector<128x128xf32> to vector<128x128xbf16>
    %c0_15 = arith.constant 0 : index
    %c0_16 = arith.constant 0 : index
    %c0_17 = arith.constant 0 : index
    %17 = vector.load %arg2[%c0_15, %c0_16, %c0_17] : memref<8x8x128xf32, #tpu.memory_space<vmem>>, vector<8x8x128xf32>
    %c0_18 = arith.constant 0 : index
    %c0_19 = arith.constant 0 : index
    %c0_20 = arith.constant 0 : index
    %18 = vector.load %arg3[%c0_18, %c0_19, %c0_20] : memref<8x128x8xf32, #tpu.memory_space<vmem>>, vector<8x128x8xf32>
    %c0_21 = arith.constant 0 : index
    %c0_22 = arith.constant 0 : index
    %19 = vector.load %arg4[%c0_21, %c0_22] : memref<8x128xf32, #tpu.memory_space<vmem>>, vector<8x128xf32>
    %c0_23 = arith.constant 0 : index
    %c0_24 = arith.constant 0 : index
    %20 = vector.load %arg5[%c0_23, %c0_24] : memref<8x128xf32, #tpu.memory_space<vmem>>, vector<8x128xf32>
    %c0_i32 = arith.constant 0 : i32
    %c8_i32 = arith.constant 8 : i32
    %21 = arith.addi %c0_i32, %c8_i32 : i32
    %c1_i32 = arith.constant 1 : i32
    %22:2 = scf.for %arg13 = %c0_i32 to %21 step %c1_i32 iter_args(%arg14 = %19, %arg15 = %20) -> (vector<8x128xf32>, vector<8x128xf32>)  : i32 {
      %23 = arith.index_cast %arg13 : i32 to index
      %c0_26 = arith.constant 0 : index
      %c0_27 = arith.constant 0 : index
      %24 = vector.load %arg12[%23, %c0_26, %c0_27] : memref<8x8x512xf32, #tpu.memory_space<vmem>>, vector<1x8x512xf32>
      %25 = vector.shape_cast %24 : vector<1x8x512xf32> to vector<8x512xf32>
      %26 = arith.truncf %arg14 : vector<8x128xf32> to vector<8x128xbf16>
      %cst_28 = arith.constant dense<0.000000e+00> : vector<8x512xf32>
      %27 = tpu.matmul %26, %12, %cst_28 {dimension_numbers = #tpu.dot_dimension_numbers<[1], [0], [0], [1], [0, 0, 1, 1], [], []>} : vector<8x128xbf16>, vector<128x512xbf16>, vector<8x512xf32> -> vector<8x512xf32>
      %28 = arith.addf %25, %27 : vector<8x512xf32>
      %29 = vector.extract_strided_slice %28 {offsets = [0, 0], sizes = [8, 128], strides = [1, 1]} : vector<8x512xf32> to vector<8x128xf32>
      %30 = arith.negf %29 : vector<8x128xf32>
      %31 = math.exp %30 : vector<8x128xf32>
      %cst_29 = arith.constant 1.000000e+00 : f32
      %32 = vector.broadcast %cst_29 : f32 to vector<8x128xf32>
      %33 = arith.addf %32, %31 : vector<8x128xf32>
      %34 = arith.divf %32, %33 : vector<8x128xf32>
      %35 = vector.extract_strided_slice %28 {offsets = [0, 128], sizes = [8, 128], strides = [1, 1]} : vector<8x512xf32> to vector<8x128xf32>
      %36 = arith.negf %35 : vector<8x128xf32>
      %37 = math.exp %36 : vector<8x128xf32>
      %cst_30 = arith.constant 1.000000e+00 : f32
      %38 = vector.broadcast %cst_30 : f32 to vector<8x128xf32>
      %39 = arith.addf %38, %37 : vector<8x128xf32>
      %40 = arith.divf %38, %39 : vector<8x128xf32>
      %41 = vector.extract_strided_slice %28 {offsets = [0, 256], sizes = [8, 128], strides = [1, 1]} : vector<8x512xf32> to vector<8x128xf32>
      %42 = math.tanh %41 : vector<8x128xf32>
      %43 = vector.extract_strided_slice %28 {offsets = [0, 384], sizes = [8, 128], strides = [1, 1]} : vector<8x512xf32> to vector<8x128xf32>
      %44 = arith.negf %43 : vector<8x128xf32>
      %45 = math.exp %44 : vector<8x128xf32>
      %cst_31 = arith.constant 1.000000e+00 : f32
      %46 = vector.broadcast %cst_31 : f32 to vector<8x128xf32>
      %47 = arith.addf %46, %45 : vector<8x128xf32>
      %48 = arith.divf %46, %47 : vector<8x128xf32>
      %49 = arith.mulf %40, %arg15 : vector<8x128xf32>
      %50 = arith.mulf %34, %42 : vector<8x128xf32>
      %51 = arith.addf %49, %50 : vector<8x128xf32>
      %52 = math.tanh %51 : vector<8x128xf32>
      %53 = arith.mulf %48, %52 : vector<8x128xf32>
      %54 = vector.shape_cast %53 : vector<8x128xf32> to vector<8x1x128xf32>
      %55 = vector.broadcast %54 : vector<8x1x128xf32> to vector<8x8x128xf32>
      %56 = arith.mulf %17, %55 : vector<8x8x128xf32>
      %cst_32 = arith.constant dense<0.000000e+00> : vector<8x8xf32>
      %57 = vector.multi_reduction <add>, %56, %cst_32 [2] : vector<8x8x128xf32> to vector<8x8xf32>
      %cst_33 = arith.constant dense<0xFF800000> : vector<8xf32>
      %58 = vector.multi_reduction <maximumf>, %57, %cst_33 [1] : vector<8x8xf32> to vector<8xf32>
      %59 = vector.shape_cast %58 : vector<8xf32> to vector<8x1xf32>
      %60 = vector.broadcast %59 : vector<8x1xf32> to vector<8x8xf32>
      %61 = arith.subf %57, %60 : vector<8x8xf32>
      %62 = math.exp %61 : vector<8x8xf32>
      %cst_34 = arith.constant dense<0.000000e+00> : vector<8xf32>
      %63 = vector.multi_reduction <add>, %62, %cst_34 [1] : vector<8x8xf32> to vector<8xf32>
      %64 = vector.shape_cast %63 : vector<8xf32> to vector<8x1xf32>
      %65 = tpu.reciprocal %64 {approx = true} : vector<8x1xf32> -> vector<8x1xf32>
      %66 = vector.broadcast %65 : vector<8x1xf32> to vector<8x8xf32>
      %67 = arith.mulf %62, %66 : vector<8x8xf32>
      %68 = vector.shape_cast %67 : vector<8x8xf32> to vector<8x1x8xf32>
      %69 = vector.broadcast %68 : vector<8x1x8xf32> to vector<8x128x8xf32>
      %70 = arith.mulf %18, %69 : vector<8x128x8xf32>
      %cst_35 = arith.constant dense<0.000000e+00> : vector<8x128xf32>
      %71 = vector.multi_reduction <add>, %70, %cst_35 [2] : vector<8x128x8xf32> to vector<8x128xf32>
      %72 = arith.truncf %71 : vector<8x128xf32> to vector<8x128xbf16>
      %cst_36 = arith.constant dense<0.000000e+00> : vector<8x128xf32>
      %73 = tpu.matmul %72, %14, %cst_36 {dimension_numbers = #tpu.dot_dimension_numbers<[1], [0], [0], [1], [0, 0, 1, 1], [], []>} : vector<8x128xbf16>, vector<128x128xbf16>, vector<8x128xf32> -> vector<8x128xf32>
      %74 = arith.truncf %53 : vector<8x128xf32> to vector<8x128xbf16>
      %cst_37 = arith.constant dense<0.000000e+00> : vector<8x128xf32>
      %75 = tpu.matmul %74, %16, %cst_37 {dimension_numbers = #tpu.dot_dimension_numbers<[1], [0], [0], [1], [0, 0, 1, 1], [], []>} : vector<8x128xbf16>, vector<128x128xbf16>, vector<8x128xf32> -> vector<8x128xf32>
      %76 = arith.addf %73, %75 : vector<8x128xf32>
      %77 = math.tanh %76 : vector<8x128xf32>
      %78 = arith.index_cast %arg13 : i32 to index
      %c0_38 = arith.constant 0 : index
      %c0_39 = arith.constant 0 : index
      %79 = vector.load %arg11[%78, %c0_38, %c0_39] : memref<8x8x128xf32, #tpu.memory_space<vmem>>, vector<1x8x128xf32>
      %80 = vector.shape_cast %79 : vector<1x8x128xf32> to vector<8x128xf32>
      %81 = vector.shape_cast %77 : vector<8x128xf32> to vector<1x8x128xf32>
      tpu.vector_store %arg11[%78, %c0_38, %c0_39], %81 {strides = array<i32>} : memref<8x8x128xf32, #tpu.memory_space<vmem>>, vector<1x8x128xf32>,
      scf.yield %53, %51 : vector<8x128xf32>, vector<8x128xf32>
    }
    %c8_i32_25 = arith.constant 8 : i32
    return
  }
  func.func @transform_0(%arg0: i32) -> (i32, i32, i32) {
    %c0_i32 = arith.constant 0 : i32
    %c0_i32_0 = arith.constant 0 : i32
    %c0_i32_1 = arith.constant 0 : i32
    return %c0_i32, %arg0, %c0_i32_0 : i32, i32, i32
  }
  func.func @transform_1(%arg0: i32) -> (i32, i32, i32) {
    %c0_i32 = arith.constant 0 : i32
    %c0_i32_0 = arith.constant 0 : i32
    %c0_i32_1 = arith.constant 0 : i32
    return %arg0, %c0_i32, %c0_i32_0 : i32, i32, i32
  }
  func.func @transform_2(%arg0: i32) -> (i32, i32, i32) {
    %c0_i32 = arith.constant 0 : i32
    %c0_i32_0 = arith.constant 0 : i32
    %c0_i32_1 = arith.constant 0 : i32
    return %arg0, %c0_i32, %c0_i32_0 : i32, i32, i32
  }
  func.func @transform_3(%arg0: i32) -> (i32, i32) {
    %c0_i32 = arith.constant 0 : i32
    %c0_i32_0 = arith.constant 0 : i32
    return %arg0, %c0_i32 : i32, i32
  }
  func.func @transform_4(%arg0: i32) -> (i32, i32) {
    %c0_i32 = arith.constant 0 : i32
    %c0_i32_0 = arith.constant 0 : i32
    return %arg0, %c0_i32 : i32, i32
  }
  func.func @transform_5(%arg0: i32) -> (i32, i32) {
    %c0_i32 = arith.constant 0 : i32
    %c0_i32_0 = arith.constant 0 : i32
    %c0_i32_1 = arith.constant 0 : i32
    return %c0_i32, %c0_i32_0 : i32, i32
  }
  func.func @transform_6(%arg0: i32) -> (i32, i32) {
    %c0_i32 = arith.constant 0 : i32
    %c0_i32_0 = arith.constant 0 : i32
    %c0_i32_1 = arith.constant 0 : i32
    return %c0_i32, %c0_i32_0 : i32, i32
  }
  func.func @transform_7(%arg0: i32) -> (i32, i32) {
    %c0_i32 = arith.constant 0 : i32
    %c0_i32_0 = arith.constant 0 : i32
    %c0_i32_1 = arith.constant 0 : i32
    return %c0_i32, %c0_i32_0 : i32, i32
  }
  func.func @transform_8(%arg0: i32) -> (i32, i32) {
    %c0_i32 = arith.constant 0 : i32
    %c0_i32_0 = arith.constant 0 : i32
    %c0_i32_1 = arith.constant 0 : i32
    return %c0_i32, %c0_i32_0 : i32, i32
  }
  func.func @transform_9(%arg0: i32) -> (i32, i32) {
    %c0_i32 = arith.constant 0 : i32
    %c0_i32_0 = arith.constant 0 : i32
    %c0_i32_1 = arith.constant 0 : i32
    return %c0_i32, %c0_i32_0 : i32, i32
  }
  func.func @transform_10(%arg0: i32) -> (i32, i32, i32) {
    %c0_i32 = arith.constant 0 : i32
    %c0_i32_0 = arith.constant 0 : i32
    %c0_i32_1 = arith.constant 0 : i32
    return %c0_i32, %arg0, %c0_i32_0 : i32, i32, i32
  }
}

module attributes {stable_mosaic.version = 11 : i64} {
  func.func @_proj_logsoftmax_kernel(%arg0: i32, %arg1: memref<64x128xf32, #tpu.memory_space<vmem>>, %arg2: memref<128x256xf32, #tpu.memory_space<vmem>>, %arg3: memref<1x256xf32, #tpu.memory_space<vmem>>, %arg4: memref<64x256xf32, #tpu.memory_space<vmem>>) attributes {dimension_semantics = [#tpu.dimension_semantics<parallel>], iteration_bounds = array<i64: 1>, scalar_prefetch = 0 : i64, scratch_operands = 0 : i64, tpu.core_type = #tpu.core_type<tc>, window_params = [{transform_indices = @transform_0, window_bounds = array<i64: 64, 128>}, {pipeline_mode = #tpu.pipeline_mode<synchronous>, transform_indices = @transform_1, window_bounds = array<i64: 128, 256>}, {pipeline_mode = #tpu.pipeline_mode<synchronous>, transform_indices = @transform_2, window_bounds = array<i64: 1, 256>}, {transform_indices = @transform_3, window_bounds = array<i64: 64, 256>}]} {
    %c0 = arith.constant 0 : index
    %c0_0 = arith.constant 0 : index
    %0 = vector.load %arg1[%c0, %c0_0] : memref<64x128xf32, #tpu.memory_space<vmem>>, vector<64x128xf32>
    %1 = arith.truncf %0 : vector<64x128xf32> to vector<64x128xbf16>
    %c0_1 = arith.constant 0 : index
    %c0_2 = arith.constant 0 : index
    %2 = vector.load %arg2[%c0_1, %c0_2] : memref<128x256xf32, #tpu.memory_space<vmem>>, vector<128x256xf32>
    %3 = arith.truncf %2 : vector<128x256xf32> to vector<128x256xbf16>
    %cst = arith.constant dense<0.000000e+00> : vector<64x256xf32>
    %4 = tpu.matmul %1, %3, %cst {dimension_numbers = #tpu.dot_dimension_numbers<[1], [0], [0], [1], [0, 0, 1, 1], [], []>} : vector<64x128xbf16>, vector<128x256xbf16>, vector<64x256xf32> -> vector<64x256xf32>
    %c0_3 = arith.constant 0 : index
    %c0_4 = arith.constant 0 : index
    %5 = vector.load %arg3[%c0_3, %c0_4] : memref<1x256xf32, #tpu.memory_space<vmem>>, vector<1x256xf32>
    %6 = vector.broadcast %5 : vector<1x256xf32> to vector<64x256xf32>
    %7 = arith.addf %4, %6 : vector<64x256xf32>
    %cst_5 = arith.constant dense<0xFF800000> : vector<64xf32>
    %8 = vector.multi_reduction <maximumf>, %7, %cst_5 [1] : vector<64x256xf32> to vector<64xf32>
    %9 = vector.shape_cast %8 : vector<64xf32> to vector<64x1xf32>
    %10 = vector.broadcast %9 : vector<64x1xf32> to vector<64x256xf32>
    %11 = arith.subf %7, %10 : vector<64x256xf32>
    %12 = math.exp %11 : vector<64x256xf32>
    %cst_6 = arith.constant dense<0.000000e+00> : vector<64xf32>
    %13 = vector.multi_reduction <add>, %12, %cst_6 [1] : vector<64x256xf32> to vector<64xf32>
    %14 = vector.shape_cast %13 : vector<64xf32> to vector<64x1xf32>
    %15 = math.log %14 : vector<64x1xf32>
    %16 = arith.addf %9, %15 : vector<64x1xf32>
    %17 = vector.broadcast %16 : vector<64x1xf32> to vector<64x256xf32>
    %18 = arith.subf %7, %17 : vector<64x256xf32>
    %c0_7 = arith.constant 0 : index
    %c0_8 = arith.constant 0 : index
    %19 = vector.load %arg4[%c0_7, %c0_8] : memref<64x256xf32, #tpu.memory_space<vmem>>, vector<64x256xf32>
    tpu.vector_store %arg4[%c0_7, %c0_8], %18 {strides = array<i32>} : memref<64x256xf32, #tpu.memory_space<vmem>>, vector<64x256xf32>,
    return
  }
  func.func @transform_0(%arg0: i32) -> (i32, i32) {
    %c0_i32 = arith.constant 0 : i32
    %c0_i32_0 = arith.constant 0 : i32
    return %arg0, %c0_i32 : i32, i32
  }
  func.func @transform_1(%arg0: i32) -> (i32, i32) {
    %c0_i32 = arith.constant 0 : i32
    %c0_i32_0 = arith.constant 0 : i32
    %c0_i32_1 = arith.constant 0 : i32
    return %c0_i32, %c0_i32_0 : i32, i32
  }
  func.func @transform_2(%arg0: i32) -> (i32, i32) {
    %c0_i32 = arith.constant 0 : i32
    %c0_i32_0 = arith.constant 0 : i32
    %c0_i32_1 = arith.constant 0 : i32
    return %c0_i32, %c0_i32_0 : i32, i32
  }
  func.func @transform_3(%arg0: i32) -> (i32, i32) {
    %c0_i32 = arith.constant 0 : i32
    %c0_i32_0 = arith.constant 0 : i32
    return %arg0, %c0_i32 : i32, i32
  }
}

</mosaic_0001>

<llo_original>
// kernel: forward.5
$region0: #{forward.5}
  #allocation0 [shape = 'u32[]', space=smem, size = 0x4, offset = 0x4, fixed_abs, tag = 'smem constant byte address 0x4 - core index']
  #allocation1 [shape = 'u32[144,128]{1,0:T(1,128)}', space=vmem, size = 0x12000, scoped, tag = 'internal scratch']
  %s0 = inlined_call_operand.vmem [shape: f32[64,128], index: 0, kind: input, shape index: {}]
  %s1 = inlined_call_operand.vmem [shape: f32[128,256], index: 1, kind: input, shape index: {}]
  %s2 = inlined_call_operand.vmem [shape: f32[1,256], index: 2, kind: input, shape index: {}]
  %s3 = inlined_call_operand.vmem [shape: f32[64,256], index: 3, kind: output, shape index: {}]
  %s4 = sld [smem:[#allocation0]]
  $region22: #{forward.5} parent=0
    _
  %s6 = ssub.s32 1, %s4
  %s7 = scalar_select 0, %s6, %s4
  // Predicated region
  $region2: #{forward.5} parent=0 // pred_check
    _
  $region3: #{forward.5} parent=0 // pred_check_branch
    %9 = sbr.rel (0) target = $region5
  $region4: #{forward.5} parent=0 // pred_region
    _
  $region5: #{forward.5} parent=0 // pred_fallthru
    _
  // Predicated region
  $region6: #{forward.5} parent=0 // pred_check
    _
  $region7: #{forward.5} parent=0 // pred_check_branch
    %11 = sbr.rel (0) target = $region9
  $region8: #{forward.5} parent=0 // pred_region
    _
  $region9: #{forward.5} parent=0 // pred_fallthru
    _
  // Predicated region
  $region10: #{forward.5} parent=0 // pred_check
    _
  $region11: #{forward.5} parent=0 // pred_check_branch
    %13 = sbr.rel (0) target = $region13
  $region12: #{forward.5} parent=0 // pred_region
    _
  $region13: #{forward.5} parent=0 // pred_fallthru
    _
  %v15 = vld [vmem:[%s0] sm:$0xff]
  %v16 = vld [vmem:[%s0 + $0x8] sm:$0xff]
  %v17 = vld [vmem:[%s0 + $0x10] sm:$0xff]
  %v18 = vld [vmem:[%s0 + $0x18] sm:$0xff]
  %v19 = vld [vmem:[%s0 + $0x20] sm:$0xff]
  %v20 = vld [vmem:[%s0 + $0x28] sm:$0xff]
  %v21 = vld [vmem:[%s0 + $0x30] sm:$0xff]
  %v22 = vld [vmem:[%s0 + $0x38] sm:$0xff]
  %v23 = vpack.c.bf16 %v16, %v15
  %v24 = vpack.c.bf16 %v18, %v17
  %v25 = vpack.c.bf16 %v20, %v19
  %v26 = vpack.c.bf16 %v22, %v21
  %v27 = vld [vmem:[%s1] sm:$0xff]
  %v28 = vld [vmem:[%s1 + $0x8] sm:$0xff]
  %v29 = vld [vmem:[%s1 + $0x10] sm:$0xff]
  %v30 = vld [vmem:[%s1 + $0x18] sm:$0xff]
  %v31 = vld [vmem:[%s1 + $0x20] sm:$0xff]
  %v32 = vld [vmem:[%s1 + $0x28] sm:$0xff]
  %v33 = vld [vmem:[%s1 + $0x30] sm:$0xff]
  %v34 = vld [vmem:[%s1 + $0x38] sm:$0xff]
  %v35 = vld [vmem:[%s1 + $0x40] sm:$0xff]
  %v36 = vld [vmem:[%s1 + $0x48] sm:$0xff]
  %v37 = vld [vmem:[%s1 + $0x50] sm:$0xff]
  %v38 = vld [vmem:[%s1 + $0x58] sm:$0xff]
  %v39 = vld [vmem:[%s1 + $0x60] sm:$0xff]
  %v40 = vld [vmem:[%s1 + $0x68] sm:$0xff]
  %v41 = vld [vmem:[%s1 + $0x70] sm:$0xff]
  %v42 = vld [vmem:[%s1 + $0x78] sm:$0xff]
  %v43 = vld [vmem:[%s1 + $0x80] sm:$0xff]
  %v44 = vld [vmem:[%s1 + $0x88] sm:$0xff]
  %v45 = vld [vmem:[%s1 + $0x90] sm:$0xff]
  %v46 = vld [vmem:[%s1 + $0x98] sm:$0xff]
  %v47 = vld [vmem:[%s1 + $0xa0] sm:$0xff]
  %v48 = vld [vmem:[%s1 + $0xa8] sm:$0xff]
  %v49 = vld [vmem:[%s1 + $0xb0] sm:$0xff]
  %v50 = vld [vmem:[%s1 + $0xb8] sm:$0xff]
  %v51 = vld [vmem:[%s1 + $0xc0] sm:$0xff]
  %v52 = vld [vmem:[%s1 + $0xc8] sm:$0xff]
  %v53 = vld [vmem:[%s1 + $0xd0] sm:$0xff]
  %v54 = vld [vmem:[%s1 + $0xd8] sm:$0xff]
  %v55 = vld [vmem:[%s1 + $0xe0] sm:$0xff]
  %v56 = vld [vmem:[%s1 + $0xe8] sm:$0xff]
  %v57 = vld [vmem:[%s1 + $0xf0] sm:$0xff]
  %v58 = vld [vmem:[%s1 + $0xf8] sm:$0xff]
  %v59 = vpack.c.bf16 %v29, %v27
  %v60 = vpack.c.bf16 %v30, %v28
  %v61 = vpack.c.bf16 %v33, %v31
  %v62 = vpack.c.bf16 %v34, %v32
  %v63 = vpack.c.bf16 %v37, %v35
  %v64 = vpack.c.bf16 %v38, %v36
  %v65 = vpack.c.bf16 %v41, %v39
  %v66 = vpack.c.bf16 %v42, %v40
  %v67 = vpack.c.bf16 %v45, %v43
  %v68 = vpack.c.bf16 %v46, %v44
  %v69 = vpack.c.bf16 %v49, %v47
  %v70 = vpack.c.bf16 %v50, %v48
  %v71 = vpack.c.bf16 %v53, %v51
  %v72 = vpack.c.bf16 %v54, %v52
  %v73 = vpack.c.bf16 %v57, %v55
  %v74 = vpack.c.bf16 %v58, %v56
  %v75 = vld [vmem:[%s2] sm:$0x3]
  %v77 = vlaneseq
  %v78 = vshrl.u32 %v77, 7
  %v79 = vsub.s32 0, %v78
  %v80 = vrot.slane %v75, %v79
  %v81 = vlaneseq
  %v82 = vshrl.u32 %v81, 7
  %v83 = vsub.s32 1, %v82
  %v84 = vrot.slane %v75, %v83
  %87 = vmatprep.subr.bf16.mxu0 %v74
  %88 = vmatpush1.bf16.msra.mxu0 %v73
  %89 = vmatprep.subr.bf16.mxu0 %v72
  %90 = vmatpush1.bf16.msra.mxu0 %v71
  %91 = vmatprep.subr.bf16.mxu0 %v70
  %92 = vmatpush1.bf16.msra.mxu0 %v69
  %93 = vmatprep.subr.bf16.mxu0 %v68
  %94 = vmatpush1.bf16.msra.mxu0 %v67
  %95 = vmatprep.subr.bf16.mxu0 %v66
  %96 = vmatpush1.bf16.msra.mxu0 %v65
  %97 = vmatprep.subr.bf16.mxu0 %v64
  %98 = vmatpush1.bf16.msra.mxu0 %v63
  %99 = vmatprep.subr.bf16.mxu0 %v62
  %100 = vmatpush1.bf16.msra.mxu0 %v61
  %101 = vmatprep.subr.bf16.mxu0 %v60
  %102 = vmatpush1.bf16.msra.mxu0 %v59
  %103 = vmatprep.subr.bf16.mxu0 0
  %104 = vmatpush2.bf16.msra.mxu0 0
  %105 = vmatprep.subr.bf16.mxu0 0
  %106 = vmatpush2.bf16.msra.mxu0 0
  %107 = vmatprep.subr.bf16.mxu0 0
  %108 = vmatpush2.bf16.msra.mxu0 0
  %109 = vmatprep.subr.bf16.mxu0 0
  %110 = vmatpush2.bf16.msra.mxu0 0
  %111 = vmatprep.subr.bf16.mxu0 0
  %112 = vmatpush2.bf16.msra.mxu0 0
  %113 = vmatprep.subr.bf16.mxu0 0
  %114 = vmatpush2.bf16.msra.mxu0 0
  %115 = vmatprep.subr.bf16.mxu0 0
  %116 = vmatpush2.bf16.msra.mxu0 0
  %117 = vmatprep.subr.bf16.mxu0 0
  %118 = vmatpush2.bf16.msra.mxu0 0
  %119 = vmatprep.mubr.bf16.mxu0 0
  %120 = vmatmul.mubr.bf16.gmra.mxu0 %v23
  %v121 = vpop.f32.mrf.mxu0
  %v122 = vadd.f32 %v80, %v121
  %v123 = vpop.f32.mrf.mxu0
  %v124 = vadd.f32 %v84, %v123
  %v125 = vpop.f32.mrf.mxu0
  %v126 = vadd.f32 %v80, %v125
  %v127 = vpop.f32.mrf.mxu0
  %v128 = vadd.f32 %v84, %v127
  %129 = vmatprep.mubr.bf16.mxu0 0
  %130 = vmatmul.mubr.bf16.gmra.mxu0 %v24
  %v131 = vpop.f32.mrf.mxu0
  %v132 = vadd.f32 %v80, %v131
  %v133 = vpop.f32.mrf.mxu0
  %v134 = vadd.f32 %v84, %v133
  %v135 = vpop.f32.mrf.mxu0
  %v136 = vadd.f32 %v80, %v135
  %v137 = vpop.f32.mrf.mxu0
  %v138 = vadd.f32 %v84, %v137
  %139 = vmatprep.mubr.bf16.mxu0 0
  %140 = vmatmul.mubr.bf16.gmra.mxu0 %v25
  %v141 = vpop.f32.mrf.mxu0
  %v142 = vadd.f32 %v80, %v141
  %v143 = vpop.f32.mrf.mxu0
  %v144 = vadd.f32 %v84, %v143
  %v145 = vpop.f32.mrf.mxu0
  %v146 = vadd.f32 %v80, %v145
  %v147 = vpop.f32.mrf.mxu0
  %v148 = vadd.f32 %v84, %v147
  %149 = vmatprep.mubr.bf16.mxu0 0
  %150 = vmatmul.mubr.bf16.gmra.mxu0 %v26
  %v151 = vpop.f32.mrf.mxu0
  %v152 = vadd.f32 %v80, %v151
  %v153 = vpop.f32.mrf.mxu0
  %v154 = vadd.f32 %v84, %v153
  %v155 = vpop.f32.mrf.mxu0
  %v156 = vadd.f32 %v80, %v155
  %v157 = vpop.f32.mrf.mxu0
  %v158 = vadd.f32 %v84, %v157
  %159 = vdwg.mxu0
  %v160 = vmax.f32 %v122, %v124
  %161 = vmax.xlane.f32.xlu0 %v160
  %v162 = vpop.xlane.xlu0 %161
  %v163 = vmax.f32 %v126, %v128
  %164 = vmax.xlane.f32.xlu0 %v163
  %v165 = vpop.xlane.xlu0 %164
  %v166 = vmax.f32 %v132, %v134
  %167 = vmax.xlane.f32.xlu0 %v166
  %v168 = vpop.xlane.xlu0 %167
  %v169 = vmax.f32 %v136, %v138
  %170 = vmax.xlane.f32.xlu0 %v169
  %v171 = vpop.xlane.xlu0 %170
  %v172 = vmax.f32 %v142, %v144
  %173 = vmax.xlane.f32.xlu0 %v172
  %v174 = vpop.xlane.xlu0 %173
  %v175 = vmax.f32 %v146, %v148
  %176 = vmax.xlane.f32.xlu0 %v175
  %v177 = vpop.xlane.xlu0 %176
  %v178 = vmax.f32 %v152, %v154
  %179 = vmax.xlane.f32.xlu0 %v178
  %v180 = vpop.xlane.xlu0 %179
  %v181 = vmax.f32 %v156, %v158
  %182 = vmax.xlane.f32.xlu0 %v181
  %v183 = vpop.xlane.xlu0 %182
  %v184 = vsub.f32 %v122, %v162
  %v185 = vsub.f32 %v124, %v162
  %v186 = vsub.f32 %v126, %v165
  %v187 = vsub.f32 %v128, %v165
  %v188 = vsub.f32 %v132, %v168
  %v189 = vsub.f32 %v134, %v168
  %v190 = vsub.f32 %v136, %v171
  %v191 = vsub.f32 %v138, %v171
  %v192 = vsub.f32 %v142, %v174
  %v193 = vsub.f32 %v144, %v174
  %v194 = vsub.f32 %v146, %v177
  %v195 = vsub.f32 %v148, %v177
  %v196 = vsub.f32 %v152, %v180
  %v197 = vsub.f32 %v154, %v180
  %v198 = vsub.f32 %v156, %v183
  %v199 = vsub.f32 %v158, %v183
  %v200 = vmul.f32 %v184, 1.442695
  %v201 = vpow.pop %v200
  %v202 = vmul.f32 %v185, 1.442695
  %v203 = vpow.pop %v202
  %v204 = vmul.f32 %v186, 1.442695
  %v205 = vpow.pop %v204
  %v206 = vmul.f32 %v187, 1.442695
  %v207 = vpow.pop %v206
  %v208 = vmul.f32 %v188, 1.442695
  %v209 = vpow.pop %v208
  %v210 = vmul.f32 %v189, 1.442695
  %v211 = vpow.pop %v210
  %v212 = vmul.f32 %v190, 1.442695
  %v213 = vpow.pop %v212
  %v214 = vmul.f32 %v191, 1.442695
  %v215 = vpow.pop %v214
  %v216 = vmul.f32 %v192, 1.442695
  %v217 = vpow.pop %v216
  %v218 = vmul.f32 %v193, 1.442695
  %v219 = vpow.pop %v218
  %v220 = vmul.f32 %v194, 1.442695
  %v221 = vpow.pop %v220
  %v222 = vmul.f32 %v195, 1.442695
  %v223 = vpow.pop %v222
  %v224 = vmul.f32 %v196, 1.442695
  %v225 = vpow.pop %v224
  %v226 = vmul.f32 %v197, 1.442695
  %v227 = vpow.pop %v226
  %v228 = vmul.f32 %v198, 1.442695
  %v229 = vpow.pop %v228
  %v230 = vmul.f32 %v199, 1.442695
  %v231 = vpow.pop %v230
  %v232 = vadd.f32 %v201, %v203
  %233 = vadd.xlane.f32.xlu0 %v232
  %v234 = vpop.xlane.xlu0 %233
  %v235 = vadd.f32 %v205, %v207
  %236 = vadd.xlane.f32.xlu0 %v235
  %v237 = vpop.xlane.xlu0 %236
  %v238 = vadd.f32 %v209, %v211
  %239 = vadd.xlane.f32.xlu0 %v238
  %v240 = vpop.xlane.xlu0 %239
  %v241 = vadd.f32 %v213, %v215
  %242 = vadd.xlane.f32.xlu0 %v241
  %v243 = vpop.xlane.xlu0 %242
  %v244 = vadd.f32 %v217, %v219
  %245 = vadd.xlane.f32.xlu0 %v244
  %v246 = vpop.xlane.xlu0 %245
  %v247 = vadd.f32 %v221, %v223
  %248 = vadd.xlane.f32.xlu0 %v247
  %v249 = vpop.xlane.xlu0 %248
  %v250 = vadd.f32 %v225, %v227
  %251 = vadd.xlane.f32.xlu0 %v250
  %v252 = vpop.xlane.xlu0 %251
  %v253 = vadd.f32 %v229, %v231
  %254 = vadd.xlane.f32.xlu0 %v253
  %v255 = vpop.xlane.xlu0 %254
  %v256 = vlog2.pop %v234
  %v257 = vmul.f32 %v256, 0.6931472
  %v258 = vlog2.pop %v237
  %v259 = vmul.f32 %v258, 0.6931472
  %v260 = vlog2.pop %v240
  %v261 = vmul.f32 %v260, 0.6931472
  %v262 = vlog2.pop %v243
  %v263 = vmul.f32 %v262, 0.6931472
  %v264 = vlog2.pop %v246
  %v265 = vmul.f32 %v264, 0.6931472
  %v266 = vlog2.pop %v249
  %v267 = vmul.f32 %v266, 0.6931472
  %v268 = vlog2.pop %v252
  %v269 = vmul.f32 %v268, 0.6931472
  %v270 = vlog2.pop %v255
  %v271 = vmul.f32 %v270, 0.6931472
  %v272 = vadd.f32 %v162, %v257
  %v273 = vadd.f32 %v165, %v259
  %v274 = vadd.f32 %v168, %v261
  %v275 = vadd.f32 %v171, %v263
  %v276 = vadd.f32 %v174, %v265
  %v277 = vadd.f32 %v177, %v267
  %v278 = vadd.f32 %v180, %v269
  %v279 = vadd.f32 %v183, %v271
  %v280 = vsub.f32 %v122, %v272
  %v281 = vsub.f32 %v124, %v272
  %v282 = vsub.f32 %v126, %v273
  %v283 = vsub.f32 %v128, %v273
  %v284 = vsub.f32 %v132, %v274
  %v285 = vsub.f32 %v134, %v274
  %v286 = vsub.f32 %v136, %v275
  %v287 = vsub.f32 %v138, %v275
  %v288 = vsub.f32 %v142, %v276
  %v289 = vsub.f32 %v144, %v276
  %v290 = vsub.f32 %v146, %v277
  %v291 = vsub.f32 %v148, %v277
  %v292 = vsub.f32 %v152, %v278
  %v293 = vsub.f32 %v154, %v278
  %v294 = vsub.f32 %v156, %v279
  %v295 = vsub.f32 %v158, %v279
  %296 = vst [vmem:[%s3] sm:$0xff] %v280
  %297 = vst [vmem:[%s3 + $0x8] sm:$0xff] %v281
  %298 = vst [vmem:[%s3 + $0x10] sm:$0xff] %v282
  %299 = vst [vmem:[%s3 + $0x18] sm:$0xff] %v283
  %300 = vst [vmem:[%s3 + $0x20] sm:$0xff] %v284
  %301 = vst [vmem:[%s3 + $0x28] sm:$0xff] %v285
  %302 = vst [vmem:[%s3 + $0x30] sm:$0xff] %v286
  %303 = vst [vmem:[%s3 + $0x38] sm:$0xff] %v287
  %304 = vst [vmem:[%s3 + $0x40] sm:$0xff] %v288
  %305 = vst [vmem:[%s3 + $0x48] sm:$0xff] %v289
  %306 = vst [vmem:[%s3 + $0x50] sm:$0xff] %v290
  %307 = vst [vmem:[%s3 + $0x58] sm:$0xff] %v291
  %308 = vst [vmem:[%s3 + $0x60] sm:$0xff] %v292
  %309 = vst [vmem:[%s3 + $0x68] sm:$0xff] %v293
  %310 = vst [vmem:[%s3 + $0x70] sm:$0xff] %v294
  %311 = vst [vmem:[%s3 + $0x78] sm:$0xff] %v295
  // Predicated region
  $region14: #{forward.5} parent=0 // pred_check
    _
  $region15: #{forward.5} parent=0 // pred_check_branch
    %313 = sbr.rel (0) target = $region17
  $region16: #{forward.5} parent=0 // pred_region
    _
  $region17: #{forward.5} parent=0 // pred_fallthru
    _
  // Predicated region
  $region18: #{forward.5} parent=0 // pred_check
    _
  $region19: #{forward.5} parent=0 // pred_check_branch
    %315 = sbr.rel (0) target = $region21
  $region20: #{forward.5} parent=0 // pred_region
    _
  $region21: #{forward.5} parent=0 // pred_fallthru
    _

// kernel: forward.3
$region0: #{forward.3}
  #allocation0 [shape = 'u32[]', space=smem, size = 0x4, offset = 0x4, fixed_abs, tag = 'smem constant byte address 0x4 - core index']
  #allocation1 [shape = 'u32[144,128]{1,0:T(1,128)}', space=vmem, size = 0x12000, scoped, tag = 'internal scratch']
  #allocation2 [shape = 'f32[8,8,512]{2,1,0:T(8,128)}', space=vmem, size = 0x20000, scoped, tag = 'scratch operand']
  %s0 = inlined_call_operand.vmem [shape: f32[8,8,128], index: 0, kind: input, shape index: {}]
  %s1 = inlined_call_operand.vmem [shape: f32[128,512], index: 1, kind: input, shape index: {}]
  %s2 = inlined_call_operand.vmem [shape: f32[128,512], index: 2, kind: input, shape index: {}]
  %s3 = inlined_call_operand.vmem [shape: f32[1,512], index: 3, kind: input, shape index: {}]
  %s4 = inlined_call_operand.vmem [shape: f32[8,8,128], index: 4, kind: output, shape index: {0}]
  %s5 = inlined_call_operand.vmem [shape: f32[8,128], index: 5, kind: output, shape index: {1}]
  %s6 = inlined_call_operand.vmem [shape: f32[8,128], index: 6, kind: output, shape index: {2}]
  %7 = xla_tuple %s4, %s5, %s6
  %s8 = sld [smem:[#allocation0]]
  $region49: #{forward.3} parent=0
    _
  %s10 = ssub.s32 1, %s8
  %s11 = scalar_select 0, %s10, %s8
  // Predicated region
  $region2: #{forward.3} parent=0 // pred_check
    _
  $region3: #{forward.3} parent=0 // pred_check_branch
    %13 = sbr.rel (0) target = $region5
  $region4: #{forward.3} parent=0 // pred_region
    _
  $region5: #{forward.3} parent=0 // pred_fallthru
    _
  // Predicated region
  $region6: #{forward.3} parent=0 // pred_check
    _
  $region7: #{forward.3} parent=0 // pred_check_branch
    %15 = sbr.rel (0) target = $region9
  $region8: #{forward.3} parent=0 // pred_region
    _
  $region9: #{forward.3} parent=0 // pred_fallthru
    _
  // Predicated region
  $region10: #{forward.3} parent=0 // pred_check
    _
  $region11: #{forward.3} parent=0 // pred_check_branch
    %17 = sbr.rel (0) target = $region13
  $region12: #{forward.3} parent=0 // pred_region
    _
  $region13: #{forward.3} parent=0 // pred_fallthru
    _
  // Predicated region
  $region14: #{forward.3} parent=0 // pred_check
    _
  $region15: #{forward.3} parent=0 // pred_check_branch
    %19 = sbr.rel (0) target = $region17
  $region16: #{forward.3} parent=0 // pred_region
    _
  $region17: #{forward.3} parent=0 // pred_fallthru
    _
  %v21 = vld [vmem:[%s1] sm:$0xff]
  %v22 = vld [vmem:[%s1 + $0x8] sm:$0xff]
  %v23 = vld [vmem:[%s1 + $0x10] sm:$0xff]
  %v24 = vld [vmem:[%s1 + $0x18] sm:$0xff]
  %v25 = vld [vmem:[%s1 + $0x20] sm:$0xff]
  %v26 = vld [vmem:[%s1 + $0x28] sm:$0xff]
  %v27 = vld [vmem:[%s1 + $0x30] sm:$0xff]
  %v28 = vld [vmem:[%s1 + $0x38] sm:$0xff]
  %v29 = vld [vmem:[%s1 + $0x40] sm:$0xff]
  %v30 = vld [vmem:[%s1 + $0x48] sm:$0xff]
  %v31 = vld [vmem:[%s1 + $0x50] sm:$0xff]
  %v32 = vld [vmem:[%s1 + $0x58] sm:$0xff]
  %v33 = vld [vmem:[%s1 + $0x60] sm:$0xff]
  %v34 = vld [vmem:[%s1 + $0x68] sm:$0xff]
  %v35 = vld [vmem:[%s1 + $0x70] sm:$0xff]
  %v36 = vld [vmem:[%s1 + $0x78] sm:$0xff]
  %v37 = vld [vmem:[%s1 + $0x80] sm:$0xff]
  %v38 = vld [vmem:[%s1 + $0x88] sm:$0xff]
  %v39 = vld [vmem:[%s1 + $0x90] sm:$0xff]
  %v40 = vld [vmem:[%s1 + $0x98] sm:$0xff]
  %v41 = vld [vmem:[%s1 + $0xa0] sm:$0xff]
  %v42 = vld [vmem:[%s1 + $0xa8] sm:$0xff]
  %v43 = vld [vmem:[%s1 + $0xb0] sm:$0xff]
  %v44 = vld [vmem:[%s1 + $0xb8] sm:$0xff]
  %v45 = vld [vmem:[%s1 + $0xc0] sm:$0xff]
  %v46 = vld [vmem:[%s1 + $0xc8] sm:$0xff]
  %v47 = vld [vmem:[%s1 + $0xd0] sm:$0xff]
  %v48 = vld [vmem:[%s1 + $0xd8] sm:$0xff]
  %v49 = vld [vmem:[%s1 + $0xe0] sm:$0xff]
  %v50 = vld [vmem:[%s1 + $0xe8] sm:$0xff]
  %v51 = vld [vmem:[%s1 + $0xf0] sm:$0xff]
  %v52 = vld [vmem:[%s1 + $0xf8] sm:$0xff]
  %v53 = vld [vmem:[%s1 + $0x100] sm:$0xff]
  %v54 = vld [vmem:[%s1 + $0x108] sm:$0xff]
  %v55 = vld [vmem:[%s1 + $0x110] sm:$0xff]
  %v56 = vld [vmem:[%s1 + $0x118] sm:$0xff]
  %v57 = vld [vmem:[%s1 + $0x120] sm:$0xff]
  %v58 = vld [vmem:[%s1 + $0x128] sm:$0xff]
  %v59 = vld [vmem:[%s1 + $0x130] sm:$0xff]
  %v60 = vld [vmem:[%s1 + $0x138] sm:$0xff]
  %v61 = vld [vmem:[%s1 + $0x140] sm:$0xff]
  %v62 = vld [vmem:[%s1 + $0x148] sm:$0xff]
  %v63 = vld [vmem:[%s1 + $0x150] sm:$0xff]
  %v64 = vld [vmem:[%s1 + $0x158] sm:$0xff]
  %v65 = vld [vmem:[%s1 + $0x160] sm:$0xff]
  %v66 = vld [vmem:[%s1 + $0x168] sm:$0xff]
  %v67 = vld [vmem:[%s1 + $0x170] sm:$0xff]
  %v68 = vld [vmem:[%s1 + $0x178] sm:$0xff]
  %v69 = vld [vmem:[%s1 + $0x180] sm:$0xff]
  %v70 = vld [vmem:[%s1 + $0x188] sm:$0xff]
  %v71 = vld [vmem:[%s1 + $0x190] sm:$0xff]
  %v72 = vld [vmem:[%s1 + $0x198] sm:$0xff]
  %v73 = vld [vmem:[%s1 + $0x1a0] sm:$0xff]
  %v74 = vld [vmem:[%s1 + $0x1a8] sm:$0xff]
  %v75 = vld [vmem:[%s1 + $0x1b0] sm:$0xff]
  %v76 = vld [vmem:[%s1 + $0x1b8] sm:$0xff]
  %v77 = vld [vmem:[%s1 + $0x1c0] sm:$0xff]
  %v78 = vld [vmem:[%s1 + $0x1c8] sm:$0xff]
  %v79 = vld [vmem:[%s1 + $0x1d0] sm:$0xff]
  %v80 = vld [vmem:[%s1 + $0x1d8] sm:$0xff]
  %v81 = vld [vmem:[%s1 + $0x1e0] sm:$0xff]
  %v82 = vld [vmem:[%s1 + $0x1e8] sm:$0xff]
  %v83 = vld [vmem:[%s1 + $0x1f0] sm:$0xff]
  %v84 = vld [vmem:[%s1 + $0x1f8] sm:$0xff]
  %v85 = vpack.c.bf16 %v25, %v21
  %v86 = vpack.c.bf16 %v26, %v22
  %v87 = vpack.c.bf16 %v27, %v23
  %v88 = vpack.c.bf16 %v28, %v24
  %v89 = vpack.c.bf16 %v33, %v29
  %v90 = vpack.c.bf16 %v34, %v30
  %v91 = vpack.c.bf16 %v35, %v31
  %v92 = vpack.c.bf16 %v36, %v32
  %v93 = vpack.c.bf16 %v41, %v37
  %v94 = vpack.c.bf16 %v42, %v38
  %v95 = vpack.c.bf16 %v43, %v39
  %v96 = vpack.c.bf16 %v44, %v40
  %v97 = vpack.c.bf16 %v49, %v45
  %v98 = vpack.c.bf16 %v50, %v46
  %v99 = vpack.c.bf16 %v51, %v47
  %v100 = vpack.c.bf16 %v52, %v48
  %v101 = vpack.c.bf16 %v57, %v53
  %v102 = vpack.c.bf16 %v58, %v54
  %v103 = vpack.c.bf16 %v59, %v55
  %v104 = vpack.c.bf16 %v60, %v56
  %v105 = vpack.c.bf16 %v65, %v61
  %v106 = vpack.c.bf16 %v66, %v62
  %v107 = vpack.c.bf16 %v67, %v63
  %v108 = vpack.c.bf16 %v68, %v64
  %v109 = vpack.c.bf16 %v73, %v69
  %v110 = vpack.c.bf16 %v74, %v70
  %v111 = vpack.c.bf16 %v75, %v71
  %v112 = vpack.c.bf16 %v76, %v72
  %v113 = vpack.c.bf16 %v81, %v77
  %v114 = vpack.c.bf16 %v82, %v78
  %v115 = vpack.c.bf16 %v83, %v79
  %v116 = vpack.c.bf16 %v84, %v80
  %v117 = vld [vmem:[%s0] sm:$0xff]
  %v118 = vld [vmem:[%s0 + $0x8] sm:$0xff]
  %v119 = vld [vmem:[%s0 + $0x10] sm:$0xff]
  %v120 = vld [vmem:[%s0 + $0x18] sm:$0xff]
  %v121 = vld [vmem:[%s0 + $0x20] sm:$0xff]
  %v122 = vld [vmem:[%s0 + $0x28] sm:$0xff]
  %v123 = vld [vmem:[%s0 + $0x30] sm:$0xff]
  %v124 = vld [vmem:[%s0 + $0x38] sm:$0xff]
  %v125 = vpack.c.bf16 %v118, %v117
  %v126 = vpack.c.bf16 %v120, %v119
  %v127 = vpack.c.bf16 %v122, %v121
  %v128 = vpack.c.bf16 %v124, %v123
  %v129 = vld [vmem:[%s3] sm:$0xf]
  %v131 = vlaneseq
  %v132 = vshrl.u32 %v131, 7
  %v133 = vsub.s32 0, %v132
  %v134 = vrot.slane %v129, %v133
  %v135 = vlaneseq
  %v136 = vshrl.u32 %v135, 7
  %v137 = vsub.s32 1, %v136
  %v138 = vrot.slane %v129, %v137
  %v139 = vlaneseq
  %v140 = vshrl.u32 %v139, 7
  %v141 = vsub.s32 2, %v140
  %v142 = vrot.slane %v129, %v141
  %v143 = vlaneseq
  %v144 = vshrl.u32 %v143, 7
  %v145 = vsub.s32 3, %v144
  %v146 = vrot.slane %v129, %v145
  %151 = vmatprep.subr.bf16.mxu0 %v114
  %152 = vmatpush1.bf16.msra.mxu0 %v113
  %153 = vmatprep.subr.bf16.mxu0 %v110
  %154 = vmatpush1.bf16.msra.mxu0 %v109
  %155 = vmatprep.subr.bf16.mxu0 %v106
  %156 = vmatpush1.bf16.msra.mxu0 %v105
  %157 = vmatprep.subr.bf16.mxu0 %v102
  %158 = vmatpush1.bf16.msra.mxu0 %v101
  %159 = vmatprep.subr.bf16.mxu0 %v98
  %160 = vmatpush1.bf16.msra.mxu0 %v97
  %161 = vmatprep.subr.bf16.mxu0 %v94
  %162 = vmatpush1.bf16.msra.mxu0 %v93
  %163 = vmatprep.subr.bf16.mxu0 %v90
  %164 = vmatpush1.bf16.msra.mxu0 %v89
  %165 = vmatprep.subr.bf16.mxu0 %v86
  %166 = vmatpush1.bf16.msra.mxu0 %v85
  %167 = vmatprep.subr.bf16.mxu0 0
  %168 = vmatpush2.bf16.msra.mxu0 0
  %169 = vmatprep.subr.bf16.mxu0 0
  %170 = vmatpush2.bf16.msra.mxu0 0
  %171 = vmatprep.subr.bf16.mxu0 0
  %172 = vmatpush2.bf16.msra.mxu0 0
  %173 = vmatprep.subr.bf16.mxu0 0
  %174 = vmatpush2.bf16.msra.mxu0 0
  %175 = vmatprep.subr.bf16.mxu0 0
  %176 = vmatpush2.bf16.msra.mxu0 0
  %177 = vmatprep.subr.bf16.mxu0 0
  %178 = vmatpush2.bf16.msra.mxu0 0
  %179 = vmatprep.subr.bf16.mxu0 0
  %180 = vmatpush2.bf16.msra.mxu0 0
  %181 = vmatprep.subr.bf16.mxu0 0
  %182 = vmatpush2.bf16.msra.mxu0 0
  %183 = vmatprep.mubr.bf16.mxu0 0
  %184 = vmatmul.mubr.bf16.gmra.mxu0 %v125
  %v185 = vpop.f32.mrf.mxu0
  %v186 = vadd.f32 %v134, %v185
  %v187 = vpop.f32.mrf.mxu0
  %v188 = vadd.f32 %v138, %v187
  %v189 = vpop.f32.mrf.mxu0
  %v190 = vadd.f32 %v134, %v189
  %v191 = vpop.f32.mrf.mxu0
  %v192 = vadd.f32 %v138, %v191
  %193 = vmatprep.mubr.bf16.mxu0 0
  %194 = vmatmul.mubr.bf16.gmra.mxu0 %v126
  %v195 = vpop.f32.mrf.mxu0
  %v196 = vadd.f32 %v134, %v195
  %v197 = vpop.f32.mrf.mxu0
  %v198 = vadd.f32 %v138, %v197
  %v199 = vpop.f32.mrf.mxu0
  %v200 = vadd.f32 %v134, %v199
  %v201 = vpop.f32.mrf.mxu0
  %v202 = vadd.f32 %v138, %v201
  %203 = vmatprep.mubr.bf16.mxu0 0
  %204 = vmatmul.mubr.bf16.gmra.mxu0 %v127
  %v205 = vpop.f32.mrf.mxu0
  %v206 = vadd.f32 %v134, %v205
  %v207 = vpop.f32.mrf.mxu0
  %v208 = vadd.f32 %v138, %v207
  %v209 = vpop.f32.mrf.mxu0
  %v210 = vadd.f32 %v134, %v209
  %v211 = vpop.f32.mrf.mxu0
  %v212 = vadd.f32 %v138, %v211
  %213 = vmatprep.mubr.bf16.mxu0 0
  %214 = vmatmul.mubr.bf16.gmra.mxu0 %v128
  %v215 = vpop.f32.mrf.mxu0
  %v216 = vadd.f32 %v134, %v215
  %v217 = vpop.f32.mrf.mxu0
  %v218 = vadd.f32 %v138, %v217
  %v219 = vpop.f32.mrf.mxu0
  %v220 = vadd.f32 %v134, %v219
  %v221 = vpop.f32.mrf.mxu0
  %v222 = vadd.f32 %v138, %v221
  %223 = vdwg.mxu0
  %224 = vmatprep.subr.bf16.mxu0 %v116
  %225 = vmatpush1.bf16.msra.mxu0 %v115
  %226 = vmatprep.subr.bf16.mxu0 %v112
  %227 = vmatpush1.bf16.msra.mxu0 %v111
  %228 = vmatprep.subr.bf16.mxu0 %v108
  %229 = vmatpush1.bf16.msra.mxu0 %v107
  %230 = vmatprep.subr.bf16.mxu0 %v104
  %231 = vmatpush1.bf16.msra.mxu0 %v103
  %232 = vmatprep.subr.bf16.mxu0 %v100
  %233 = vmatpush1.bf16.msra.mxu0 %v99
  %234 = vmatprep.subr.bf16.mxu0 %v96
  %235 = vmatpush1.bf16.msra.mxu0 %v95
  %236 = vmatprep.subr.bf16.mxu0 %v92
  %237 = vmatpush1.bf16.msra.mxu0 %v91
  %238 = vmatprep.subr.bf16.mxu0 %v88
  %239 = vmatpush1.bf16.msra.mxu0 %v87
  %240 = vmatprep.subr.bf16.mxu0 0
  %241 = vmatpush2.bf16.msra.mxu0 0
  %242 = vmatprep.subr.bf16.mxu0 0
  %243 = vmatpush2.bf16.msra.mxu0 0
  %244 = vmatprep.subr.bf16.mxu0 0
  %245 = vmatpush2.bf16.msra.mxu0 0
  %246 = vmatprep.subr.bf16.mxu0 0
  %247 = vmatpush2.bf16.msra.mxu0 0
  %248 = vmatprep.subr.bf16.mxu0 0
  %249 = vmatpush2.bf16.msra.mxu0 0
  %250 = vmatprep.subr.bf16.mxu0 0
  %251 = vmatpush2.bf16.msra.mxu0 0
  %252 = vmatprep.subr.bf16.mxu0 0
  %253 = vmatpush2.bf16.msra.mxu0 0
  %254 = vmatprep.subr.bf16.mxu0 0
  %255 = vmatpush2.bf16.msra.mxu0 0
  %256 = vmatprep.mubr.bf16.mxu0 0
  %257 = vmatmul.mubr.bf16.gmra.mxu0 %v125
  %v258 = vpop.f32.mrf.mxu0
  %v259 = vadd.f32 %v142, %v258
  %v260 = vpop.f32.mrf.mxu0
  %v261 = vadd.f32 %v146, %v260
  %v262 = vpop.f32.mrf.mxu0
  %v263 = vadd.f32 %v142, %v262
  %v264 = vpop.f32.mrf.mxu0
  %v265 = vadd.f32 %v146, %v264
  %266 = vmatprep.mubr.bf16.mxu0 0
  %267 = vmatmul.mubr.bf16.gmra.mxu0 %v126
  %v268 = vpop.f32.mrf.mxu0
  %v269 = vadd.f32 %v142, %v268
  %v270 = vpop.f32.mrf.mxu0
  %v271 = vadd.f32 %v146, %v270
  %v272 = vpop.f32.mrf.mxu0
  %v273 = vadd.f32 %v142, %v272
  %v274 = vpop.f32.mrf.mxu0
  %v275 = vadd.f32 %v146, %v274
  %276 = vmatprep.mubr.bf16.mxu0 0
  %277 = vmatmul.mubr.bf16.gmra.mxu0 %v127
  %v278 = vpop.f32.mrf.mxu0
  %v279 = vadd.f32 %v142, %v278
  %v280 = vpop.f32.mrf.mxu0
  %v281 = vadd.f32 %v146, %v280
  %v282 = vpop.f32.mrf.mxu0
  %v283 = vadd.f32 %v142, %v282
  %v284 = vpop.f32.mrf.mxu0
  %v285 = vadd.f32 %v146, %v284
  %286 = vmatprep.mubr.bf16.mxu0 0
  %287 = vmatmul.mubr.bf16.gmra.mxu0 %v128
  %v288 = vpop.f32.mrf.mxu0
  %v289 = vadd.f32 %v142, %v288
  %v290 = vpop.f32.mrf.mxu0
  %v291 = vadd.f32 %v146, %v290
  %v292 = vpop.f32.mrf.mxu0
  %v293 = vadd.f32 %v142, %v292
  %v294 = vpop.f32.mrf.mxu0
  %v295 = vadd.f32 %v146, %v294
  %296 = vdwg.mxu0
  %297 = vst [vmem:[#allocation2] sm:$0xff] %v186
  %298 = vst [vmem:[#allocation2 + $0x8] sm:$0xff] %v188
  %299 = vst [vmem:[#allocation2 + $0x10] sm:$0xff] %v259
  %300 = vst [vmem:[#allocation2 + $0x18] sm:$0xff] %v261
  %301 = vst [vmem:[#allocation2 + $0x20] sm:$0xff] %v190
  %302 = vst [vmem:[#allocation2 + $0x28] sm:$0xff] %v192
  %303 = vst [vmem:[#allocation2 + $0x30] sm:$0xff] %v263
  %304 = vst [vmem:[#allocation2 + $0x38] sm:$0xff] %v265
  %305 = vst [vmem:[#allocation2 + $0x40] sm:$0xff] %v196
  %306 = vst [vmem:[#allocation2 + $0x48] sm:$0xff] %v198
  %307 = vst [vmem:[#allocation2 + $0x50] sm:$0xff] %v269
  %308 = vst [vmem:[#allocation2 + $0x58] sm:$0xff] %v271
  %309 = vst [vmem:[#allocation2 + $0x60] sm:$0xff] %v200
  %310 = vst [vmem:[#allocation2 + $0x68] sm:$0xff] %v202
  %311 = vst [vmem:[#allocation2 + $0x70] sm:$0xff] %v273
  %312 = vst [vmem:[#allocation2 + $0x78] sm:$0xff] %v275
  %313 = vst [vmem:[#allocation2 + $0x80] sm:$0xff] %v206
  %314 = vst [vmem:[#allocation2 + $0x88] sm:$0xff] %v208
  %315 = vst [vmem:[#allocation2 + $0x90] sm:$0xff] %v279
  %316 = vst [vmem:[#allocation2 + $0x98] sm:$0xff] %v281
  %317 = vst [vmem:[#allocation2 + $0xa0] sm:$0xff] %v210
  %318 = vst [vmem:[#allocation2 + $0xa8] sm:$0xff] %v212
  %319 = vst [vmem:[#allocation2 + $0xb0] sm:$0xff] %v283
  %320 = vst [vmem:[#allocation2 + $0xb8] sm:$0xff] %v285
  %321 = vst [vmem:[#allocation2 + $0xc0] sm:$0xff] %v216
  %322 = vst [vmem:[#allocation2 + $0xc8] sm:$0xff] %v218
  %323 = vst [vmem:[#allocation2 + $0xd0] sm:$0xff] %v289
  %324 = vst [vmem:[#allocation2 + $0xd8] sm:$0xff] %v291
  %325 = vst [vmem:[#allocation2 + $0xe0] sm:$0xff] %v220
  %326 = vst [vmem:[#allocation2 + $0xe8] sm:$0xff] %v222
  %327 = vst [vmem:[#allocation2 + $0xf0] sm:$0xff] %v293
  %328 = vst [vmem:[#allocation2 + $0xf8] sm:$0xff] %v295
  %v329 = vld [vmem:[%s2] sm:$0xff]
  %v330 = vld [vmem:[%s2 + $0x8] sm:$0xff]
  %v331 = vld [vmem:[%s2 + $0x10] sm:$0xff]
  %v332 = vld [vmem:[%s2 + $0x18] sm:$0xff]
  %v333 = vld [vmem:[%s2 + $0x20] sm:$0xff]
  %v334 = vld [vmem:[%s2 + $0x28] sm:$0xff]
  %v335 = vld [vmem:[%s2 + $0x30] sm:$0xff]
  %v336 = vld [vmem:[%s2 + $0x38] sm:$0xff]
  %v337 = vld [vmem:[%s2 + $0x40] sm:$0xff]
  %v338 = vld [vmem:[%s2 + $0x48] sm:$0xff]
  %v339 = vld [vmem:[%s2 + $0x50] sm:$0xff]
  %v340 = vld [vmem:[%s2 + $0x58] sm:$0xff]
  %v341 = vld [vmem:[%s2 + $0x60] sm:$0xff]
  %v342 = vld [vmem:[%s2 + $0x68] sm:$0xff]
  %v343 = vld [vmem:[%s2 + $0x70] sm:$0xff]
  %v344 = vld [vmem:[%s2 + $0x78] sm:$0xff]
  %v345 = vld [vmem:[%s2 + $0x80] sm:$0xff]
  %v346 = vld [vmem:[%s2 + $0x88] sm:$0xff]
  %v347 = vld [vmem:[%s2 + $0x90] sm:$0xff]
  %v348 = vld [vmem:[%s2 + $0x98] sm:$0xff]
  %v349 = vld [vmem:[%s2 + $0xa0] sm:$0xff]
  %v350 = vld [vmem:[%s2 + $0xa8] sm:$0xff]
  %v351 = vld [vmem:[%s2 + $0xb0] sm:$0xff]
  %v352 = vld [vmem:[%s2 + $0xb8] sm:$0xff]
  %v353 = vld [vmem:[%s2 + $0xc0] sm:$0xff]
  %v354 = vld [vmem:[%s2 + $0xc8] sm:$0xff]
  %v355 = vld [vmem:[%s2 + $0xd0] sm:$0xff]
  %v356 = vld [vmem:[%s2 + $0xd8] sm:$0xff]
  %v357 = vld [vmem:[%s2 + $0xe0] sm:$0xff]
  %v358 = vld [vmem:[%s2 + $0xe8] sm:$0xff]
  %v359 = vld [vmem:[%s2 + $0xf0] sm:$0xff]
  %v360 = vld [vmem:[%s2 + $0xf8] sm:$0xff]
  %v361 = vld [vmem:[%s2 + $0x100] sm:$0xff]
  %v362 = vld [vmem:[%s2 + $0x108] sm:$0xff]
  %v363 = vld [vmem:[%s2 + $0x110] sm:$0xff]
  %v364 = vld [vmem:[%s2 + $0x118] sm:$0xff]
  %v365 = vld [vmem:[%s2 + $0x120] sm:$0xff]
  %v366 = vld [vmem:[%s2 + $0x128] sm:$0xff]
  %v367 = vld [vmem:[%s2 + $0x130] sm:$0xff]
  %v368 = vld [vmem:[%s2 + $0x138] sm:$0xff]
  %v369 = vld [vmem:[%s2 + $0x140] sm:$0xff]
  %v370 = vld [vmem:[%s2 + $0x148] sm:$0xff]
  %v371 = vld [vmem:[%s2 + $0x150] sm:$0xff]
  %v372 = vld [vmem:[%s2 + $0x158] sm:$0xff]
  %v373 = vld [vmem:[%s2 + $0x160] sm:$0xff]
  %v374 = vld [vmem:[%s2 + $0x168] sm:$0xff]
  %v375 = vld [vmem:[%s2 + $0x170] sm:$0xff]
  %v376 = vld [vmem:[%s2 + $0x178] sm:$0xff]
  %v377 = vld [vmem:[%s2 + $0x180] sm:$0xff]
  %v378 = vld [vmem:[%s2 + $0x188] sm:$0xff]
  %v379 = vld [vmem:[%s2 + $0x190] sm:$0xff]
  %v380 = vld [vmem:[%s2 + $0x198] sm:$0xff]
  %v381 = vld [vmem:[%s2 + $0x1a0] sm:$0xff]
  %v382 = vld [vmem:[%s2 + $0x1a8] sm:$0xff]
  %v383 = vld [vmem:[%s2 + $0x1b0] sm:$0xff]
  %v384 = vld [vmem:[%s2 + $0x1b8] sm:$0xff]
  %v385 = vld [vmem:[%s2 + $0x1c0] sm:$0xff]
  %v386 = vld [vmem:[%s2 + $0x1c8] sm:$0xff]
  %v387 = vld [vmem:[%s2 + $0x1d0] sm:$0xff]
  %v388 = vld [vmem:[%s2 + $0x1d8] sm:$0xff]
  %v389 = vld [vmem:[%s2 + $0x1e0] sm:$0xff]
  %v390 = vld [vmem:[%s2 + $0x1e8] sm:$0xff]
  %v391 = vld [vmem:[%s2 + $0x1f0] sm:$0xff]
  %v392 = vld [vmem:[%s2 + $0x1f8] sm:$0xff]
  %v393 = vpack.c.bf16 %v333, %v329
  %v394 = vpack.c.bf16 %v334, %v330
  %v395 = vpack.c.bf16 %v335, %v331
  %v396 = vpack.c.bf16 %v336, %v332
  %v397 = vpack.c.bf16 %v341, %v337
  %v398 = vpack.c.bf16 %v342, %v338
  %v399 = vpack.c.bf16 %v343, %v339
  %v400 = vpack.c.bf16 %v344, %v340
  %v401 = vpack.c.bf16 %v349, %v345
  %v402 = vpack.c.bf16 %v350, %v346
  %v403 = vpack.c.bf16 %v351, %v347
  %v404 = vpack.c.bf16 %v352, %v348
  %v405 = vpack.c.bf16 %v357, %v353
  %v406 = vpack.c.bf16 %v358, %v354
  %v407 = vpack.c.bf16 %v359, %v355
  %v408 = vpack.c.bf16 %v360, %v356
  %v409 = vpack.c.bf16 %v365, %v361
  %v410 = vpack.c.bf16 %v366, %v362
  %v411 = vpack.c.bf16 %v367, %v363
  %v412 = vpack.c.bf16 %v368, %v364
  %v413 = vpack.c.bf16 %v373, %v369
  %v414 = vpack.c.bf16 %v374, %v370
  %v415 = vpack.c.bf16 %v375, %v371
  %v416 = vpack.c.bf16 %v376, %v372
  %v417 = vpack.c.bf16 %v381, %v377
  %v418 = vpack.c.bf16 %v382, %v378
  %v419 = vpack.c.bf16 %v383, %v379
  %v420 = vpack.c.bf16 %v384, %v380
  %v421 = vpack.c.bf16 %v389, %v385
  %v422 = vpack.c.bf16 %v390, %v386
  %v423 = vpack.c.bf16 %v391, %v387
  %v424 = vpack.c.bf16 %v392, %v388
  loop: start=0, step=1, limit=8
  $region18: #{forward.3} parent=0 // loop_pre_header
    _
  $region19: #{forward.3} parent=0 // loop_header
    %s426 = sphi 0, %s430
    %p427 = scmp.ge.s32.totalorder %s426, 8
    %v431 = vphi 0.0, %v550
    %v432 = vphi 0.0, %v548
  $region20: #{forward.3} parent=0 // loop_header_branch
    %429 = sbr.rel (%p427) target = $region24
  $region21: #{forward.3} parent=0 // loop_body
    %s433 = smul.u32 %s426, 4
    %s434 = smul.addr %s433, 8
    %s435 = scalar_lea.vmem [#allocation2], %s434
    %v436 = vld [vmem:[%s435] sm:$0xff]
    %v437 = vld [vmem:[%s435 + $0x8] sm:$0xff]
    %v438 = vld [vmem:[%s435 + $0x10] sm:$0xff]
    %v439 = vld [vmem:[%s435 + $0x18] sm:$0xff]
    %v440 = vpack.c.bf16 %v431, %v431
    %441 = vmatprep.subr.bf16.mxu0 %v422
    %442 = vmatpush1.bf16.msra.mxu0 %v421
    %443 = vmatprep.subr.bf16.mxu0 %v418
    %444 = vmatpush1.bf16.msra.mxu0 %v417
    %445 = vmatprep.subr.bf16.mxu0 %v414
    %446 = vmatpush1.bf16.msra.mxu0 %v413
    %447 = vmatprep.subr.bf16.mxu0 %v410
    %448 = vmatpush1.bf16.msra.mxu0 %v409
    %449 = vmatprep.subr.bf16.mxu0 %v406
    %450 = vmatpush1.bf16.msra.mxu0 %v405
    %451 = vmatprep.subr.bf16.mxu0 %v402
    %452 = vmatpush1.bf16.msra.mxu0 %v401
    %453 = vmatprep.subr.bf16.mxu0 %v398
    %454 = vmatpush1.bf16.msra.mxu0 %v397
    %455 = vmatprep.subr.bf16.mxu0 %v394
    %456 = vmatpush1.bf16.msra.mxu0 %v393
    %457 = vmatprep.subr.bf16.mxu0 0
    %458 = vmatpush2.bf16.msra.mxu0 0
    %459 = vmatprep.subr.bf16.mxu0 0
    %460 = vmatpush2.bf16.msra.mxu0 0
    %461 = vmatprep.subr.bf16.mxu0 0
    %462 = vmatpush2.bf16.msra.mxu0 0
    %463 = vmatprep.subr.bf16.mxu0 0
    %464 = vmatpush2.bf16.msra.mxu0 0
    %465 = vmatprep.subr.bf16.mxu0 0
    %466 = vmatpush2.bf16.msra.mxu0 0
    %467 = vmatprep.subr.bf16.mxu0 0
    %468 = vmatpush2.bf16.msra.mxu0 0
    %469 = vmatprep.subr.bf16.mxu0 0
    %470 = vmatpush2.bf16.msra.mxu0 0
    %471 = vmatprep.subr.bf16.mxu0 0
    %472 = vmatpush2.bf16.msra.mxu0 0
    %473 = vmatprep.mubr.bf16.mxu0 0
    %474 = vmatmul.mubr.bf16.gmra.mxu0 %v440
    %v475 = vpop.f32.mrf.mxu0
    %v476 = vadd.f32 0.0, %v475
    %v477 = vpop.f32.mrf.mxu0
    %v478 = vadd.f32 0.0, %v477
    %v479 = vpop.f32.mrf.mxu0
    %v480 = vpop.f32.mrf.mxu0
    %481 = vdwg.mxu0
    %482 = vmatprep.subr.bf16.mxu0 %v424
    %483 = vmatpush1.bf16.msra.mxu0 %v423
    %484 = vmatprep.subr.bf16.mxu0 %v420
    %485 = vmatpush1.bf16.msra.mxu0 %v419
    %486 = vmatprep.subr.bf16.mxu0 %v416
    %487 = vmatpush1.bf16.msra.mxu0 %v415
    %488 = vmatprep.subr.bf16.mxu0 %v412
    %489 = vmatpush1.bf16.msra.mxu0 %v411
    %490 = vmatprep.subr.bf16.mxu0 %v408
    %491 = vmatpush1.bf16.msra.mxu0 %v407
    %492 = vmatprep.subr.bf16.mxu0 %v404
    %493 = vmatpush1.bf16.msra.mxu0 %v403
    %494 = vmatprep.subr.bf16.mxu0 %v400
    %495 = vmatpush1.bf16.msra.mxu0 %v399
    %496 = vmatprep.subr.bf16.mxu0 %v396
    %497 = vmatpush1.bf16.msra.mxu0 %v395
    %498 = vmatprep.subr.bf16.mxu0 0
    %499 = vmatpush2.bf16.msra.mxu0 0
    %500 = vmatprep.subr.bf16.mxu0 0
    %501 = vmatpush2.bf16.msra.mxu0 0
    %502 = vmatprep.subr.bf16.mxu0 0
    %503 = vmatpush2.bf16.msra.mxu0 0
    %504 = vmatprep.subr.bf16.mxu0 0
    %505 = vmatpush2.bf16.msra.mxu0 0
    %506 = vmatprep.subr.bf16.mxu0 0
    %507 = vmatpush2.bf16.msra.mxu0 0
    %508 = vmatprep.subr.bf16.mxu0 0
    %509 = vmatpush2.bf16.msra.mxu0 0
    %510 = vmatprep.subr.bf16.mxu0 0
    %511 = vmatpush2.bf16.msra.mxu0 0
    %512 = vmatprep.subr.bf16.mxu0 0
    %513 = vmatpush2.bf16.msra.mxu0 0
    %514 = vmatprep.mubr.bf16.mxu0 0
    %515 = vmatmul.mubr.bf16.gmra.mxu0 %v440
    %v516 = vpop.f32.mrf.mxu0
    %v517 = vadd.f32 0.0, %v516
    %v518 = vpop.f32.mrf.mxu0
    %v519 = vadd.f32 0.0, %v518
    %v520 = vpop.f32.mrf.mxu0
    %v521 = vpop.f32.mrf.mxu0
    %522 = vdwg.mxu0
    %v523 = vadd.f32 %v436, %v476
    %v524 = vadd.f32 %v437, %v478
    %v525 = vadd.f32 %v438, %v517
    %v526 = vadd.f32 %v439, %v519
    %v527 = vxor.u32 %v523, 2147483648
    %v528 = vmul.f32 %v527, 1.442695
    %v529 = vpow.pop %v528
    %v530 = vadd.f32 %v529, 1.0
    %v531 = vrcp.pop %v530
    %v532 = vmul.f32 1.0, %v531
    %v533 = vxor.u32 %v524, 2147483648
    %v534 = vmul.f32 %v533, 1.442695
    %v535 = vpow.pop %v534
    %v536 = vadd.f32 %v535, 1.0
    %v537 = vrcp.pop %v536
    %v538 = vmul.f32 1.0, %v537
    %v539 = vtanh.pop %v525
    %v540 = vxor.u32 %v526, 2147483648
    %v541 = vmul.f32 %v540, 1.442695
    %v542 = vpow.pop %v541
    %v543 = vadd.f32 %v542, 1.0
    %v544 = vrcp.pop %v543
    %v545 = vmul.f32 1.0, %v544
    %v546 = vmul.f32 %v538, %v432
    %v547 = vmul.f32 %v532, %v539
    %v548 = vadd.f32 %v546, %v547
    %v549 = vtanh.pop %v548
    %v550 = vmul.f32 %v545, %v549
    %s551 = smul.u32 %s426, 8
    %s552 = scalar_lea.vmem %s4, %s551
    %553 = vst [vmem:[%s552] sm:$0xff] %v550
  $region22: #{forward.3} parent=0 // loop_footer
    %s430 = sadd.s32 1, %s426
  $region23: #{forward.3} parent=0 // loop_footer_branch
    %425 = sbr.rel target = $region19
  $region24: #{forward.3} parent=0 // loop_exit
    _
  %554 = vst [vmem:[%s5] sm:$0xff] %v431
  %555 = vst [vmem:[%s6] sm:$0xff] %v432
  // Predicated region
  $region25: #{forward.3} parent=0 // pred_check
    _
  $region26: #{forward.3} parent=0 // pred_check_branch
    %557 = sbr.rel (0) target = $region28
  $region27: #{forward.3} parent=0 // pred_region
    _
  $region28: #{forward.3} parent=0 // pred_fallthru
    _
  // Predicated region
  $region29: #{forward.3} parent=0 // pred_check
    _
  $region30: #{forward.3} parent=0 // pred_check_branch
    %559 = sbr.rel (0) target = $region32
  $region31: #{forward.3} parent=0 // pred_region
    _
  $region32: #{forward.3} parent=0 // pred_fallthru
    _
  // Predicated region
  $region33: #{forward.3} parent=0 // pred_check
    _
  $region34: #{forward.3} parent=0 // pred_check_branch
    %561 = sbr.rel (0) target = $region36
  $region35: #{forward.3} parent=0 // pred_region
    _
  $region36: #{forward.3} parent=0 // pred_fallthru
    _
  // Predicated region
  $region37: #{forward.3} parent=0 // pred_check
    _
  $region38: #{forward.3} parent=0 // pred_check_branch
    %563 = sbr.rel (0) target = $region40
  $region39: #{forward.3} parent=0 // pred_region
    _
  $region40: #{forward.3} parent=0 // pred_fallthru
    _
  // Predicated region
  $region41: #{forward.3} parent=0 // pred_check
    _
  $region42: #{forward.3} parent=0 // pred_check_branch
    %565 = sbr.rel (0) target = $region44
  $region43: #{forward.3} parent=0 // pred_region
    _
  $region44: #{forward.3} parent=0 // pred_fallthru
    _
  // Predicated region
  $region45: #{forward.3} parent=0 // pred_check
    _
  $region46: #{forward.3} parent=0 // pred_check_branch
    %567 = sbr.rel (0) target = $region48
  $region47: #{forward.3} parent=0 // pred_region
    _
  $region48: #{forward.3} parent=0 // pred_fallthru
    _

// kernel: forward.4
$region0: #{forward.4}
  #allocation0 [shape = 'u32[]', space=smem, size = 0x4, offset = 0x4, fixed_abs, tag = 'smem constant byte address 0x4 - core index']
  #allocation1 [shape = 'u32[144,128]{1,0:T(1,128)}', space=vmem, size = 0x12000, scoped, tag = 'internal scratch']
  #allocation2 [shape = 'f32[8,8,512]{2,1,0:T(8,128)}', space=vmem, size = 0x20000, scoped, tag = 'scratch operand']
  %s0 = inlined_call_operand.vmem [shape: f32[8,8,128], index: 0, kind: input, shape index: {}]
  %s1 = inlined_call_operand.vmem [shape: f32[8,8,128], index: 1, kind: input, shape index: {}]
  %s2 = inlined_call_operand.vmem [shape: f32[8,128,8], index: 2, kind: input, shape index: {}]
  %s3 = inlined_call_operand.vmem [shape: f32[8,128], index: 3, kind: input, shape index: {}]
  %s4 = inlined_call_operand.vmem [shape: f32[8,128], index: 4, kind: input, shape index: {}]
  %s5 = inlined_call_operand.vmem [shape: f32[128,512], index: 5, kind: input, shape index: {}]
  %s6 = inlined_call_operand.vmem [shape: f32[128,512], index: 6, kind: input, shape index: {}]
  %s7 = inlined_call_operand.vmem [shape: f32[1,512], index: 7, kind: input, shape index: {}]
  %s8 = inlined_call_operand.vmem [shape: f32[128,128], index: 8, kind: input, shape index: {}]
  %s9 = inlined_call_operand.vmem [shape: f32[128,128], index: 9, kind: input, shape index: {}]
  %s10 = inlined_call_operand.vmem [shape: f32[8,8,128], index: 10, kind: output, shape index: {}]
  %s11 = sld [smem:[#allocation0]]
  $region57: #{forward.4} parent=0
    _
  %s13 = ssub.s32 1, %s11
  %s14 = scalar_select 0, %s13, %s11
  // Predicated region
  $region2: #{forward.4} parent=0 // pred_check
    _
  $region3: #{forward.4} parent=0 // pred_check_branch
    %16 = sbr.rel (0) target = $region5
  $region4: #{forward.4} parent=0 // pred_region
    _
  $region5: #{forward.4} parent=0 // pred_fallthru
    _
  // Predicated region
  $region6: #{forward.4} parent=0 // pred_check
    _
  $region7: #{forward.4} parent=0 // pred_check_branch
    %18 = sbr.rel (0) target = $region9
  $region8: #{forward.4} parent=0 // pred_region
    _
  $region9: #{forward.4} parent=0 // pred_fallthru
    _
  // Predicated region
  $region10: #{forward.4} parent=0 // pred_check
    _
  $region11: #{forward.4} parent=0 // pred_check_branch
    %20 = sbr.rel (0) target = $region13
  $region12: #{forward.4} parent=0 // pred_region
    _
  $region13: #{forward.4} parent=0 // pred_fallthru
    _
  // Predicated region
  $region14: #{forward.4} parent=0 // pred_check
    _
  $region15: #{forward.4} parent=0 // pred_check_branch
    %22 = sbr.rel (0) target = $region17
  $region16: #{forward.4} parent=0 // pred_region
    _
  $region17: #{forward.4} parent=0 // pred_fallthru
    _
  // Predicated region
  $region18: #{forward.4} parent=0 // pred_check
    _
  $region19: #{forward.4} parent=0 // pred_check_branch
    %24 = sbr.rel (0) target = $region21
  $region20: #{forward.4} parent=0 // pred_region
    _
  $region21: #{forward.4} parent=0 // pred_fallthru
    _
  // Predicated region
  $region22: #{forward.4} parent=0 // pred_check
    _
  $region23: #{forward.4} parent=0 // pred_check_branch
    %26 = sbr.rel (0) target = $region25
  $region24: #{forward.4} parent=0 // pred_region
    _
  $region25: #{forward.4} parent=0 // pred_fallthru
    _
  // Predicated region
  $region26: #{forward.4} parent=0 // pred_check
    _
  $region27: #{forward.4} parent=0 // pred_check_branch
    %28 = sbr.rel (0) target = $region29
  $region28: #{forward.4} parent=0 // pred_region
    _
  $region29: #{forward.4} parent=0 // pred_fallthru
    _
  // Predicated region
  $region30: #{forward.4} parent=0 // pred_check
    _
  $region31: #{forward.4} parent=0 // pred_check_branch
    %30 = sbr.rel (0) target = $region33
  $region32: #{forward.4} parent=0 // pred_region
    _
  $region33: #{forward.4} parent=0 // pred_fallthru
    _
  // Predicated region
  $region34: #{forward.4} parent=0 // pred_check
    _
  $region35: #{forward.4} parent=0 // pred_check_branch
    %32 = sbr.rel (0) target = $region37
  $region36: #{forward.4} parent=0 // pred_region
    _
  $region37: #{forward.4} parent=0 // pred_fallthru
    _
  // Predicated region
  $region38: #{forward.4} parent=0 // pred_check
    _
  $region39: #{forward.4} parent=0 // pred_check_branch
    %34 = sbr.rel (0) target = $region41
  $region40: #{forward.4} parent=0 // pred_region
    _
  $region41: #{forward.4} parent=0 // pred_fallthru
    _
  %v36 = vld [vmem:[%s5] sm:$0xff]
  %v37 = vld [vmem:[%s5 + $0x8] sm:$0xff]
  %v38 = vld [vmem:[%s5 + $0x10] sm:$0xff]
  %v39 = vld [vmem:[%s5 + $0x18] sm:$0xff]
  %v40 = vld [vmem:[%s5 + $0x20] sm:$0xff]
  %v41 = vld [vmem:[%s5 + $0x28] sm:$0xff]
  %v42 = vld [vmem:[%s5 + $0x30] sm:$0xff]
  %v43 = vld [vmem:[%s5 + $0x38] sm:$0xff]
  %v44 = vld [vmem:[%s5 + $0x40] sm:$0xff]
  %v45 = vld [vmem:[%s5 + $0x48] sm:$0xff]
  %v46 = vld [vmem:[%s5 + $0x50] sm:$0xff]
  %v47 = vld [vmem:[%s5 + $0x58] sm:$0xff]
  %v48 = vld [vmem:[%s5 + $0x60] sm:$0xff]
  %v49 = vld [vmem:[%s5 + $0x68] sm:$0xff]
  %v50 = vld [vmem:[%s5 + $0x70] sm:$0xff]
  %v51 = vld [vmem:[%s5 + $0x78] sm:$0xff]
  %v52 = vld [vmem:[%s5 + $0x80] sm:$0xff]
  %v53 = vld [vmem:[%s5 + $0x88] sm:$0xff]
  %v54 = vld [vmem:[%s5 + $0x90] sm:$0xff]
  %v55 = vld [vmem:[%s5 + $0x98] sm:$0xff]
  %v56 = vld [vmem:[%s5 + $0xa0] sm:$0xff]
  %v57 = vld [vmem:[%s5 + $0xa8] sm:$0xff]
  %v58 = vld [vmem:[%s5 + $0xb0] sm:$0xff]
  %v59 = vld [vmem:[%s5 + $0xb8] sm:$0xff]
  %v60 = vld [vmem:[%s5 + $0xc0] sm:$0xff]
  %v61 = vld [vmem:[%s5 + $0xc8] sm:$0xff]
  %v62 = vld [vmem:[%s5 + $0xd0] sm:$0xff]
  %v63 = vld [vmem:[%s5 + $0xd8] sm:$0xff]
  %v64 = vld [vmem:[%s5 + $0xe0] sm:$0xff]
  %v65 = vld [vmem:[%s5 + $0xe8] sm:$0xff]
  %v66 = vld [vmem:[%s5 + $0xf0] sm:$0xff]
  %v67 = vld [vmem:[%s5 + $0xf8] sm:$0xff]
  %v68 = vld [vmem:[%s5 + $0x100] sm:$0xff]
  %v69 = vld [vmem:[%s5 + $0x108] sm:$0xff]
  %v70 = vld [vmem:[%s5 + $0x110] sm:$0xff]
  %v71 = vld [vmem:[%s5 + $0x118] sm:$0xff]
  %v72 = vld [vmem:[%s5 + $0x120] sm:$0xff]
  %v73 = vld [vmem:[%s5 + $0x128] sm:$0xff]
  %v74 = vld [vmem:[%s5 + $0x130] sm:$0xff]
  %v75 = vld [vmem:[%s5 + $0x138] sm:$0xff]
  %v76 = vld [vmem:[%s5 + $0x140] sm:$0xff]
  %v77 = vld [vmem:[%s5 + $0x148] sm:$0xff]
  %v78 = vld [vmem:[%s5 + $0x150] sm:$0xff]
  %v79 = vld [vmem:[%s5 + $0x158] sm:$0xff]
  %v80 = vld [vmem:[%s5 + $0x160] sm:$0xff]
  %v81 = vld [vmem:[%s5 + $0x168] sm:$0xff]
  %v82 = vld [vmem:[%s5 + $0x170] sm:$0xff]
  %v83 = vld [vmem:[%s5 + $0x178] sm:$0xff]
  %v84 = vld [vmem:[%s5 + $0x180] sm:$0xff]
  %v85 = vld [vmem:[%s5 + $0x188] sm:$0xff]
  %v86 = vld [vmem:[%s5 + $0x190] sm:$0xff]
  %v87 = vld [vmem:[%s5 + $0x198] sm:$0xff]
  %v88 = vld [vmem:[%s5 + $0x1a0] sm:$0xff]
  %v89 = vld [vmem:[%s5 + $0x1a8] sm:$0xff]
  %v90 = vld [vmem:[%s5 + $0x1b0] sm:$0xff]
  %v91 = vld [vmem:[%s5 + $0x1b8] sm:$0xff]
  %v92 = vld [vmem:[%s5 + $0x1c0] sm:$0xff]
  %v93 = vld [vmem:[%s5 + $0x1c8] sm:$0xff]
  %v94 = vld [vmem:[%s5 + $0x1d0] sm:$0xff]
  %v95 = vld [vmem:[%s5 + $0x1d8] sm:$0xff]
  %v96 = vld [vmem:[%s5 + $0x1e0] sm:$0xff]
  %v97 = vld [vmem:[%s5 + $0x1e8] sm:$0xff]
  %v98 = vld [vmem:[%s5 + $0x1f0] sm:$0xff]
  %v99 = vld [vmem:[%s5 + $0x1f8] sm:$0xff]
  %v100 = vpack.c.bf16 %v40, %v36
  %v101 = vpack.c.bf16 %v41, %v37
  %v102 = vpack.c.bf16 %v42, %v38
  %v103 = vpack.c.bf16 %v43, %v39
  %v104 = vpack.c.bf16 %v48, %v44
  %v105 = vpack.c.bf16 %v49, %v45
  %v106 = vpack.c.bf16 %v50, %v46
  %v107 = vpack.c.bf16 %v51, %v47
  %v108 = vpack.c.bf16 %v56, %v52
  %v109 = vpack.c.bf16 %v57, %v53
  %v110 = vpack.c.bf16 %v58, %v54
  %v111 = vpack.c.bf16 %v59, %v55
  %v112 = vpack.c.bf16 %v64, %v60
  %v113 = vpack.c.bf16 %v65, %v61
  %v114 = vpack.c.bf16 %v66, %v62
  %v115 = vpack.c.bf16 %v67, %v63
  %v116 = vpack.c.bf16 %v72, %v68
  %v117 = vpack.c.bf16 %v73, %v69
  %v118 = vpack.c.bf16 %v74, %v70
  %v119 = vpack.c.bf16 %v75, %v71
  %v120 = vpack.c.bf16 %v80, %v76
  %v121 = vpack.c.bf16 %v81, %v77
  %v122 = vpack.c.bf16 %v82, %v78
  %v123 = vpack.c.bf16 %v83, %v79
  %v124 = vpack.c.bf16 %v88, %v84
  %v125 = vpack.c.bf16 %v89, %v85
  %v126 = vpack.c.bf16 %v90, %v86
  %v127 = vpack.c.bf16 %v91, %v87
  %v128 = vpack.c.bf16 %v96, %v92
  %v129 = vpack.c.bf16 %v97, %v93
  %v130 = vpack.c.bf16 %v98, %v94
  %v131 = vpack.c.bf16 %v99, %v95
  %v132 = vld [vmem:[%s0] sm:$0xff]
  %v133 = vld [vmem:[%s0 + $0x8] sm:$0xff]
  %v134 = vld [vmem:[%s0 + $0x10] sm:$0xff]
  %v135 = vld [vmem:[%s0 + $0x18] sm:$0xff]
  %v136 = vld [vmem:[%s0 + $0x20] sm:$0xff]
  %v137 = vld [vmem:[%s0 + $0x28] sm:$0xff]
  %v138 = vld [vmem:[%s0 + $0x30] sm:$0xff]
  %v139 = vld [vmem:[%s0 + $0x38] sm:$0xff]
  %v140 = vpack.c.bf16 %v133, %v132
  %v141 = vpack.c.bf16 %v135, %v134
  %v142 = vpack.c.bf16 %v137, %v136
  %v143 = vpack.c.bf16 %v139, %v138
  %v144 = vld [vmem:[%s7] sm:$0xf]
  %v146 = vlaneseq
  %v147 = vshrl.u32 %v146, 7
  %v148 = vsub.s32 0, %v147
  %v149 = vrot.slane %v144, %v148
  %v150 = vlaneseq
  %v151 = vshrl.u32 %v150, 7
  %v152 = vsub.s32 1, %v151
  %v153 = vrot.slane %v144, %v152
  %v154 = vlaneseq
  %v155 = vshrl.u32 %v154, 7
  %v156 = vsub.s32 2, %v155
  %v157 = vrot.slane %v144, %v156
  %v158 = vlaneseq
  %v159 = vshrl.u32 %v158, 7
  %v160 = vsub.s32 3, %v159
  %v161 = vrot.slane %v144, %v160
  %166 = vmatprep.subr.bf16.mxu0 %v129
  %167 = vmatpush1.bf16.msra.mxu0 %v128
  %168 = vmatprep.subr.bf16.mxu0 %v125
  %169 = vmatpush1.bf16.msra.mxu0 %v124
  %170 = vmatprep.subr.bf16.mxu0 %v121
  %171 = vmatpush1.bf16.msra.mxu0 %v120
  %172 = vmatprep.subr.bf16.mxu0 %v117
  %173 = vmatpush1.bf16.msra.mxu0 %v116
  %174 = vmatprep.subr.bf16.mxu0 %v113
  %175 = vmatpush1.bf16.msra.mxu0 %v112
  %176 = vmatprep.subr.bf16.mxu0 %v109
  %177 = vmatpush1.bf16.msra.mxu0 %v108
  %178 = vmatprep.subr.bf16.mxu0 %v105
  %179 = vmatpush1.bf16.msra.mxu0 %v104
  %180 = vmatprep.subr.bf16.mxu0 %v101
  %181 = vmatpush1.bf16.msra.mxu0 %v100
  %182 = vmatprep.subr.bf16.mxu0 0
  %183 = vmatpush2.bf16.msra.mxu0 0
  %184 = vmatprep.subr.bf16.mxu0 0
  %185 = vmatpush2.bf16.msra.mxu0 0
  %186 = vmatprep.subr.bf16.mxu0 0
  %187 = vmatpush2.bf16.msra.mxu0 0
  %188 = vmatprep.subr.bf16.mxu0 0
  %189 = vmatpush2.bf16.msra.mxu0 0
  %190 = vmatprep.subr.bf16.mxu0 0
  %191 = vmatpush2.bf16.msra.mxu0 0
  %192 = vmatprep.subr.bf16.mxu0 0
  %193 = vmatpush2.bf16.msra.mxu0 0
  %194 = vmatprep.subr.bf16.mxu0 0
  %195 = vmatpush2.bf16.msra.mxu0 0
  %196 = vmatprep.subr.bf16.mxu0 0
  %197 = vmatpush2.bf16.msra.mxu0 0
  %198 = vmatprep.mubr.bf16.mxu0 0
  %199 = vmatmul.mubr.bf16.gmra.mxu0 %v140
  %v200 = vpop.f32.mrf.mxu0
  %v201 = vadd.f32 %v149, %v200
  %v202 = vpop.f32.mrf.mxu0
  %v203 = vadd.f32 %v153, %v202
  %v204 = vpop.f32.mrf.mxu0
  %v205 = vadd.f32 %v149, %v204
  %v206 = vpop.f32.mrf.mxu0
  %v207 = vadd.f32 %v153, %v206
  %208 = vmatprep.mubr.bf16.mxu0 0
  %209 = vmatmul.mubr.bf16.gmra.mxu0 %v141
  %v210 = vpop.f32.mrf.mxu0
  %v211 = vadd.f32 %v149, %v210
  %v212 = vpop.f32.mrf.mxu0
  %v213 = vadd.f32 %v153, %v212
  %v214 = vpop.f32.mrf.mxu0
  %v215 = vadd.f32 %v149, %v214
  %v216 = vpop.f32.mrf.mxu0
  %v217 = vadd.f32 %v153, %v216
  %218 = vmatprep.mubr.bf16.mxu0 0
  %219 = vmatmul.mubr.bf16.gmra.mxu0 %v142
  %v220 = vpop.f32.mrf.mxu0
  %v221 = vadd.f32 %v149, %v220
  %v222 = vpop.f32.mrf.mxu0
  %v223 = vadd.f32 %v153, %v222
  %v224 = vpop.f32.mrf.mxu0
  %v225 = vadd.f32 %v149, %v224
  %v226 = vpop.f32.mrf.mxu0
  %v227 = vadd.f32 %v153, %v226
  %228 = vmatprep.mubr.bf16.mxu0 0
  %229 = vmatmul.mubr.bf16.gmra.mxu0 %v143
  %v230 = vpop.f32.mrf.mxu0
  %v231 = vadd.f32 %v149, %v230
  %v232 = vpop.f32.mrf.mxu0
  %v233 = vadd.f32 %v153, %v232
  %v234 = vpop.f32.mrf.mxu0
  %v235 = vadd.f32 %v149, %v234
  %v236 = vpop.f32.mrf.mxu0
  %v237 = vadd.f32 %v153, %v236
  %238 = vdwg.mxu0
  %239 = vmatprep.subr.bf16.mxu0 %v131
  %240 = vmatpush1.bf16.msra.mxu0 %v130
  %241 = vmatprep.subr.bf16.mxu0 %v127
  %242 = vmatpush1.bf16.msra.mxu0 %v126
  %243 = vmatprep.subr.bf16.mxu0 %v123
  %244 = vmatpush1.bf16.msra.mxu0 %v122
  %245 = vmatprep.subr.bf16.mxu0 %v119
  %246 = vmatpush1.bf16.msra.mxu0 %v118
  %247 = vmatprep.subr.bf16.mxu0 %v115
  %248 = vmatpush1.bf16.msra.mxu0 %v114
  %249 = vmatprep.subr.bf16.mxu0 %v111
  %250 = vmatpush1.bf16.msra.mxu0 %v110
  %251 = vmatprep.subr.bf16.mxu0 %v107
  %252 = vmatpush1.bf16.msra.mxu0 %v106
  %253 = vmatprep.subr.bf16.mxu0 %v103
  %254 = vmatpush1.bf16.msra.mxu0 %v102
  %255 = vmatprep.subr.bf16.mxu0 0
  %256 = vmatpush2.bf16.msra.mxu0 0
  %257 = vmatprep.subr.bf16.mxu0 0
  %258 = vmatpush2.bf16.msra.mxu0 0
  %259 = vmatprep.subr.bf16.mxu0 0
  %260 = vmatpush2.bf16.msra.mxu0 0
  %261 = vmatprep.subr.bf16.mxu0 0
  %262 = vmatpush2.bf16.msra.mxu0 0
  %263 = vmatprep.subr.bf16.mxu0 0
  %264 = vmatpush2.bf16.msra.mxu0 0
  %265 = vmatprep.subr.bf16.mxu0 0
  %266 = vmatpush2.bf16.msra.mxu0 0
  %267 = vmatprep.subr.bf16.mxu0 0
  %268 = vmatpush2.bf16.msra.mxu0 0
  %269 = vmatprep.subr.bf16.mxu0 0
  %270 = vmatpush2.bf16.msra.mxu0 0
  %271 = vmatprep.mubr.bf16.mxu0 0
  %272 = vmatmul.mubr.bf16.gmra.mxu0 %v140
  %v273 = vpop.f32.mrf.mxu0
  %v274 = vadd.f32 %v157, %v273
  %v275 = vpop.f32.mrf.mxu0
  %v276 = vadd.f32 %v161, %v275
  %v277 = vpop.f32.mrf.mxu0
  %v278 = vadd.f32 %v157, %v277
  %v279 = vpop.f32.mrf.mxu0
  %v280 = vadd.f32 %v161, %v279
  %281 = vmatprep.mubr.bf16.mxu0 0
  %282 = vmatmul.mubr.bf16.gmra.mxu0 %v141
  %v283 = vpop.f32.mrf.mxu0
  %v284 = vadd.f32 %v157, %v283
  %v285 = vpop.f32.mrf.mxu0
  %v286 = vadd.f32 %v161, %v285
  %v287 = vpop.f32.mrf.mxu0
  %v288 = vadd.f32 %v157, %v287
  %v289 = vpop.f32.mrf.mxu0
  %v290 = vadd.f32 %v161, %v289
  %291 = vmatprep.mubr.bf16.mxu0 0
  %292 = vmatmul.mubr.bf16.gmra.mxu0 %v142
  %v293 = vpop.f32.mrf.mxu0
  %v294 = vadd.f32 %v157, %v293
  %v295 = vpop.f32.mrf.mxu0
  %v296 = vadd.f32 %v161, %v295
  %v297 = vpop.f32.mrf.mxu0
  %v298 = vadd.f32 %v157, %v297
  %v299 = vpop.f32.mrf.mxu0
  %v300 = vadd.f32 %v161, %v299
  %301 = vmatprep.mubr.bf16.mxu0 0
  %302 = vmatmul.mubr.bf16.gmra.mxu0 %v143
  %v303 = vpop.f32.mrf.mxu0
  %v304 = vadd.f32 %v157, %v303
  %v305 = vpop.f32.mrf.mxu0
  %v306 = vadd.f32 %v161, %v305
  %v307 = vpop.f32.mrf.mxu0
  %v308 = vadd.f32 %v157, %v307
  %v309 = vpop.f32.mrf.mxu0
  %v310 = vadd.f32 %v161, %v309
  %311 = vdwg.mxu0
  %312 = vst [vmem:[#allocation2] sm:$0xff] %v201
  %313 = vst [vmem:[#allocation2 + $0x8] sm:$0xff] %v203
  %314 = vst [vmem:[#allocation2 + $0x10] sm:$0xff] %v274
  %315 = vst [vmem:[#allocation2 + $0x18] sm:$0xff] %v276
  %316 = vst [vmem:[#allocation2 + $0x20] sm:$0xff] %v205
  %317 = vst [vmem:[#allocation2 + $0x28] sm:$0xff] %v207
  %318 = vst [vmem:[#allocation2 + $0x30] sm:$0xff] %v278
  %319 = vst [vmem:[#allocation2 + $0x38] sm:$0xff] %v280
  %320 = vst [vmem:[#allocation2 + $0x40] sm:$0xff] %v211
  %321 = vst [vmem:[#allocation2 + $0x48] sm:$0xff] %v213
  %322 = vst [vmem:[#allocation2 + $0x50] sm:$0xff] %v284
  %323 = vst [vmem:[#allocation2 + $0x58] sm:$0xff] %v286
  %324 = vst [vmem:[#allocation2 + $0x60] sm:$0xff] %v215
  %325 = vst [vmem:[#allocation2 + $0x68] sm:$0xff] %v217
  %326 = vst [vmem:[#allocation2 + $0x70] sm:$0xff] %v288
  %327 = vst [vmem:[#allocation2 + $0x78] sm:$0xff] %v290
  %328 = vst [vmem:[#allocation2 + $0x80] sm:$0xff] %v221
  %329 = vst [vmem:[#allocation2 + $0x88] sm:$0xff] %v223
  %330 = vst [vmem:[#allocation2 + $0x90] sm:$0xff] %v294
  %331 = vst [vmem:[#allocation2 + $0x98] sm:$0xff] %v296
  %332 = vst [vmem:[#allocation2 + $0xa0] sm:$0xff] %v225
  %333 = vst [vmem:[#allocation2 + $0xa8] sm:$0xff] %v227
  %334 = vst [vmem:[#allocation2 + $0xb0] sm:$0xff] %v298
  %335 = vst [vmem:[#allocation2 + $0xb8] sm:$0xff] %v300
  %336 = vst [vmem:[#allocation2 + $0xc0] sm:$0xff] %v231
  %337 = vst [vmem:[#allocation2 + $0xc8] sm:$0xff] %v233
  %338 = vst [vmem:[#allocation2 + $0xd0] sm:$0xff] %v304
  %339 = vst [vmem:[#allocation2 + $0xd8] sm:$0xff] %v306
  %340 = vst [vmem:[#allocation2 + $0xe0] sm:$0xff] %v235
  %341 = vst [vmem:[#allocation2 + $0xe8] sm:$0xff] %v237
  %342 = vst [vmem:[#allocation2 + $0xf0] sm:$0xff] %v308
  %343 = vst [vmem:[#allocation2 + $0xf8] sm:$0xff] %v310
  %v344 = vld [vmem:[%s6] sm:$0xff]
  %v345 = vld [vmem:[%s6 + $0x8] sm:$0xff]
  %v346 = vld [vmem:[%s6 + $0x10] sm:$0xff]
  %v347 = vld [vmem:[%s6 + $0x18] sm:$0xff]
  %v348 = vld [vmem:[%s6 + $0x20] sm:$0xff]
  %v349 = vld [vmem:[%s6 + $0x28] sm:$0xff]
  %v350 = vld [vmem:[%s6 + $0x30] sm:$0xff]
  %v351 = vld [vmem:[%s6 + $0x38] sm:$0xff]
  %v352 = vld [vmem:[%s6 + $0x40] sm:$0xff]
  %v353 = vld [vmem:[%s6 + $0x48] sm:$0xff]
  %v354 = vld [vmem:[%s6 + $0x50] sm:$0xff]
  %v355 = vld [vmem:[%s6 + $0x58] sm:$0xff]
  %v356 = vld [vmem:[%s6 + $0x60] sm:$0xff]
  %v357 = vld [vmem:[%s6 + $0x68] sm:$0xff]
  %v358 = vld [vmem:[%s6 + $0x70] sm:$0xff]
  %v359 = vld [vmem:[%s6 + $0x78] sm:$0xff]
  %v360 = vld [vmem:[%s6 + $0x80] sm:$0xff]
  %v361 = vld [vmem:[%s6 + $0x88] sm:$0xff]
  %v362 = vld [vmem:[%s6 + $0x90] sm:$0xff]
  %v363 = vld [vmem:[%s6 + $0x98] sm:$0xff]
  %v364 = vld [vmem:[%s6 + $0xa0] sm:$0xff]
  %v365 = vld [vmem:[%s6 + $0xa8] sm:$0xff]
  %v366 = vld [vmem:[%s6 + $0xb0] sm:$0xff]
  %v367 = vld [vmem:[%s6 + $0xb8] sm:$0xff]
  %v368 = vld [vmem:[%s6 + $0xc0] sm:$0xff]
  %v369 = vld [vmem:[%s6 + $0xc8] sm:$0xff]
  %v370 = vld [vmem:[%s6 + $0xd0] sm:$0xff]
  %v371 = vld [vmem:[%s6 + $0xd8] sm:$0xff]
  %v372 = vld [vmem:[%s6 + $0xe0] sm:$0xff]
  %v373 = vld [vmem:[%s6 + $0xe8] sm:$0xff]
  %v374 = vld [vmem:[%s6 + $0xf0] sm:$0xff]
  %v375 = vld [vmem:[%s6 + $0xf8] sm:$0xff]
  %v376 = vld [vmem:[%s6 + $0x100] sm:$0xff]
  %v377 = vld [vmem:[%s6 + $0x108] sm:$0xff]
  %v378 = vld [vmem:[%s6 + $0x110] sm:$0xff]
  %v379 = vld [vmem:[%s6 + $0x118] sm:$0xff]
  %v380 = vld [vmem:[%s6 + $0x120] sm:$0xff]
  %v381 = vld [vmem:[%s6 + $0x128] sm:$0xff]
  %v382 = vld [vmem:[%s6 + $0x130] sm:$0xff]
  %v383 = vld [vmem:[%s6 + $0x138] sm:$0xff]
  %v384 = vld [vmem:[%s6 + $0x140] sm:$0xff]
  %v385 = vld [vmem:[%s6 + $0x148] sm:$0xff]
  %v386 = vld [vmem:[%s6 + $0x150] sm:$0xff]
  %v387 = vld [vmem:[%s6 + $0x158] sm:$0xff]
  %v388 = vld [vmem:[%s6 + $0x160] sm:$0xff]
  %v389 = vld [vmem:[%s6 + $0x168] sm:$0xff]
  %v390 = vld [vmem:[%s6 + $0x170] sm:$0xff]
  %v391 = vld [vmem:[%s6 + $0x178] sm:$0xff]
  %v392 = vld [vmem:[%s6 + $0x180] sm:$0xff]
  %v393 = vld [vmem:[%s6 + $0x188] sm:$0xff]
  %v394 = vld [vmem:[%s6 + $0x190] sm:$0xff]
  %v395 = vld [vmem:[%s6 + $0x198] sm:$0xff]
  %v396 = vld [vmem:[%s6 + $0x1a0] sm:$0xff]
  %v397 = vld [vmem:[%s6 + $0x1a8] sm:$0xff]
  %v398 = vld [vmem:[%s6 + $0x1b0] sm:$0xff]
  %v399 = vld [vmem:[%s6 + $0x1b8] sm:$0xff]
  %v400 = vld [vmem:[%s6 + $0x1c0] sm:$0xff]
  %v401 = vld [vmem:[%s6 + $0x1c8] sm:$0xff]
  %v402 = vld [vmem:[%s6 + $0x1d0] sm:$0xff]
  %v403 = vld [vmem:[%s6 + $0x1d8] sm:$0xff]
  %v404 = vld [vmem:[%s6 + $0x1e0] sm:$0xff]
  %v405 = vld [vmem:[%s6 + $0x1e8] sm:$0xff]
  %v406 = vld [vmem:[%s6 + $0x1f0] sm:$0xff]
  %v407 = vld [vmem:[%s6 + $0x1f8] sm:$0xff]
  %v408 = vpack.c.bf16 %v348, %v344
  %v409 = vpack.c.bf16 %v349, %v345
  %v410 = vpack.c.bf16 %v350, %v346
  %v411 = vpack.c.bf16 %v351, %v347
  %v412 = vpack.c.bf16 %v356, %v352
  %v413 = vpack.c.bf16 %v357, %v353
  %v414 = vpack.c.bf16 %v358, %v354
  %v415 = vpack.c.bf16 %v359, %v355
  %v416 = vpack.c.bf16 %v364, %v360
  %v417 = vpack.c.bf16 %v365, %v361
  %v418 = vpack.c.bf16 %v366, %v362
  %v419 = vpack.c.bf16 %v367, %v363
  %v420 = vpack.c.bf16 %v372, %v368
  %v421 = vpack.c.bf16 %v373, %v369
  %v422 = vpack.c.bf16 %v374, %v370
  %v423 = vpack.c.bf16 %v375, %v371
  %v424 = vpack.c.bf16 %v380, %v376
  %v425 = vpack.c.bf16 %v381, %v377
  %v426 = vpack.c.bf16 %v382, %v378
  %v427 = vpack.c.bf16 %v383, %v379
  %v428 = vpack.c.bf16 %v388, %v384
  %v429 = vpack.c.bf16 %v389, %v385
  %v430 = vpack.c.bf16 %v390, %v386
  %v431 = vpack.c.bf16 %v391, %v387
  %v432 = vpack.c.bf16 %v396, %v392
  %v433 = vpack.c.bf16 %v397, %v393
  %v434 = vpack.c.bf16 %v398, %v394
  %v435 = vpack.c.bf16 %v399, %v395
  %v436 = vpack.c.bf16 %v404, %v400
  %v437 = vpack.c.bf16 %v405, %v401
  %v438 = vpack.c.bf16 %v406, %v402
  %v439 = vpack.c.bf16 %v407, %v403
  %v440 = vld [vmem:[%s8] sm:$0xff]
  %v441 = vld [vmem:[%s8 + $0x8] sm:$0xff]
  %v442 = vld [vmem:[%s8 + $0x10] sm:$0xff]
  %v443 = vld [vmem:[%s8 + $0x18] sm:$0xff]
  %v444 = vld [vmem:[%s8 + $0x20] sm:$0xff]
  %v445 = vld [vmem:[%s8 + $0x28] sm:$0xff]
  %v446 = vld [vmem:[%s8 + $0x30] sm:$0xff]
  %v447 = vld [vmem:[%s8 + $0x38] sm:$0xff]
  %v448 = vld [vmem:[%s8 + $0x40] sm:$0xff]
  %v449 = vld [vmem:[%s8 + $0x48] sm:$0xff]
  %v450 = vld [vmem:[%s8 + $0x50] sm:$0xff]
  %v451 = vld [vmem:[%s8 + $0x58] sm:$0xff]
  %v452 = vld [vmem:[%s8 + $0x60] sm:$0xff]
  %v453 = vld [vmem:[%s8 + $0x68] sm:$0xff]
  %v454 = vld [vmem:[%s8 + $0x70] sm:$0xff]
  %v455 = vld [vmem:[%s8 + $0x78] sm:$0xff]
  %v456 = vpack.c.bf16 %v441, %v440
  %v457 = vpack.c.bf16 %v443, %v442
  %v458 = vpack.c.bf16 %v445, %v444
  %v459 = vpack.c.bf16 %v447, %v446
  %v460 = vpack.c.bf16 %v449, %v448
  %v461 = vpack.c.bf16 %v451, %v450
  %v462 = vpack.c.bf16 %v453, %v452
  %v463 = vpack.c.bf16 %v455, %v454
  %v464 = vld [vmem:[%s9] sm:$0xff]
  %v465 = vld [vmem:[%s9 + $0x8] sm:$0xff]
  %v466 = vld [vmem:[%s9 + $0x10] sm:$0xff]
  %v467 = vld [vmem:[%s9 + $0x18] sm:$0xff]
  %v468 = vld [vmem:[%s9 + $0x20] sm:$0xff]
  %v469 = vld [vmem:[%s9 + $0x28] sm:$0xff]
  %v470 = vld [vmem:[%s9 + $0x30] sm:$0xff]
  %v471 = vld [vmem:[%s9 + $0x38] sm:$0xff]
  %v472 = vld [vmem:[%s9 + $0x40] sm:$0xff]
  %v473 = vld [vmem:[%s9 + $0x48] sm:$0xff]
  %v474 = vld [vmem:[%s9 + $0x50] sm:$0xff]
  %v475 = vld [vmem:[%s9 + $0x58] sm:$0xff]
  %v476 = vld [vmem:[%s9 + $0x60] sm:$0xff]
  %v477 = vld [vmem:[%s9 + $0x68] sm:$0xff]
  %v478 = vld [vmem:[%s9 + $0x70] sm:$0xff]
  %v479 = vld [vmem:[%s9 + $0x78] sm:$0xff]
  %v480 = vpack.c.bf16 %v465, %v464
  %v481 = vpack.c.bf16 %v467, %v466
  %v482 = vpack.c.bf16 %v469, %v468
  %v483 = vpack.c.bf16 %v471, %v470
  %v484 = vpack.c.bf16 %v473, %v472
  %v485 = vpack.c.bf16 %v475, %v474
  %v486 = vpack.c.bf16 %v477, %v476
  %v487 = vpack.c.bf16 %v479, %v478
  %v488 = vld [vmem:[%s1] sm:$0xff]
  %v489 = vld [vmem:[%s1 + $0x8] sm:$0xff]
  %v490 = vld [vmem:[%s1 + $0x10] sm:$0xff]
  %v491 = vld [vmem:[%s1 + $0x18] sm:$0xff]
  %v492 = vld [vmem:[%s1 + $0x20] sm:$0xff]
  %v493 = vld [vmem:[%s1 + $0x28] sm:$0xff]
  %v494 = vld [vmem:[%s1 + $0x30] sm:$0xff]
  %v495 = vld [vmem:[%s1 + $0x38] sm:$0xff]
  %v496 = vld [vmem:[%s2] sm:$0xff]
  %v497 = vld [vmem:[%s2 + $0x8] sm:$0xff]
  %v498 = vld [vmem:[%s2 + $0x10] sm:$0xff]
  %v499 = vld [vmem:[%s2 + $0x18] sm:$0xff]
  %v500 = vld [vmem:[%s2 + $0x20] sm:$0xff]
  %v501 = vld [vmem:[%s2 + $0x28] sm:$0xff]
  %v502 = vld [vmem:[%s2 + $0x30] sm:$0xff]
  %v503 = vld [vmem:[%s2 + $0x38] sm:$0xff]
  %v504 = vld [vmem:[%s2 + $0x40] sm:$0xff]
  %v505 = vld [vmem:[%s2 + $0x48] sm:$0xff]
  %v506 = vld [vmem:[%s2 + $0x50] sm:$0xff]
  %v507 = vld [vmem:[%s2 + $0x58] sm:$0xff]
  %v508 = vld [vmem:[%s2 + $0x60] sm:$0xff]
  %v509 = vld [vmem:[%s2 + $0x68] sm:$0xff]
  %v510 = vld [vmem:[%s2 + $0x70] sm:$0xff]
  %v511 = vld [vmem:[%s2 + $0x78] sm:$0xff]
  %v512 = vld [vmem:[%s2 + $0x80] sm:$0xff]
  %v513 = vld [vmem:[%s2 + $0x88] sm:$0xff]
  %v514 = vld [vmem:[%s2 + $0x90] sm:$0xff]
  %v515 = vld [vmem:[%s2 + $0x98] sm:$0xff]
  %v516 = vld [vmem:[%s2 + $0xa0] sm:$0xff]
  %v517 = vld [vmem:[%s2 + $0xa8] sm:$0xff]
  %v518 = vld [vmem:[%s2 + $0xb0] sm:$0xff]
  %v519 = vld [vmem:[%s2 + $0xb8] sm:$0xff]
  %v520 = vld [vmem:[%s2 + $0xc0] sm:$0xff]
  %v521 = vld [vmem:[%s2 + $0xc8] sm:$0xff]
  %v522 = vld [vmem:[%s2 + $0xd0] sm:$0xff]
  %v523 = vld [vmem:[%s2 + $0xd8] sm:$0xff]
  %v524 = vld [vmem:[%s2 + $0xe0] sm:$0xff]
  %v525 = vld [vmem:[%s2 + $0xe8] sm:$0xff]
  %v526 = vld [vmem:[%s2 + $0xf0] sm:$0xff]
  %v527 = vld [vmem:[%s2 + $0xf8] sm:$0xff]
  %v528 = vld [vmem:[%s2 + $0x100] sm:$0xff]
  %v529 = vld [vmem:[%s2 + $0x108] sm:$0xff]
  %v530 = vld [vmem:[%s2 + $0x110] sm:$0xff]
  %v531 = vld [vmem:[%s2 + $0x118] sm:$0xff]
  %v532 = vld [vmem:[%s2 + $0x120] sm:$0xff]
  %v533 = vld [vmem:[%s2 + $0x128] sm:$0xff]
  %v534 = vld [vmem:[%s2 + $0x130] sm:$0xff]
  %v535 = vld [vmem:[%s2 + $0x138] sm:$0xff]
  %v536 = vld [vmem:[%s2 + $0x140] sm:$0xff]
  %v537 = vld [vmem:[%s2 + $0x148] sm:$0xff]
  %v538 = vld [vmem:[%s2 + $0x150] sm:$0xff]
  %v539 = vld [vmem:[%s2 + $0x158] sm:$0xff]
  %v540 = vld [vmem:[%s2 + $0x160] sm:$0xff]
  %v541 = vld [vmem:[%s2 + $0x168] sm:$0xff]
  %v542 = vld [vmem:[%s2 + $0x170] sm:$0xff]
  %v543 = vld [vmem:[%s2 + $0x178] sm:$0xff]
  %v544 = vld [vmem:[%s2 + $0x180] sm:$0xff]
  %v545 = vld [vmem:[%s2 + $0x188] sm:$0xff]
  %v546 = vld [vmem:[%s2 + $0x190] sm:$0xff]
  %v547 = vld [vmem:[%s2 + $0x198] sm:$0xff]
  %v548 = vld [vmem:[%s2 + $0x1a0] sm:$0xff]
  %v549 = vld [vmem:[%s2 + $0x1a8] sm:$0xff]
  %v550 = vld [vmem:[%s2 + $0x1b0] sm:$0xff]
  %v551 = vld [vmem:[%s2 + $0x1b8] sm:$0xff]
  %v552 = vld [vmem:[%s2 + $0x1c0] sm:$0xff]
  %v553 = vld [vmem:[%s2 + $0x1c8] sm:$0xff]
  %v554 = vld [vmem:[%s2 + $0x1d0] sm:$0xff]
  %v555 = vld [vmem:[%s2 + $0x1d8] sm:$0xff]
  %v556 = vld [vmem:[%s2 + $0x1e0] sm:$0xff]
  %v557 = vld [vmem:[%s2 + $0x1e8] sm:$0xff]
  %v558 = vld [vmem:[%s2 + $0x1f0] sm:$0xff]
  %v559 = vld [vmem:[%s2 + $0x1f8] sm:$0xff]
  %v560 = vld [vmem:[%s2 + $0x200] sm:$0xff]
  %v561 = vld [vmem:[%s2 + $0x208] sm:$0xff]
  %v562 = vld [vmem:[%s2 + $0x210] sm:$0xff]
  %v563 = vld [vmem:[%s2 + $0x218] sm:$0xff]
  %v564 = vld [vmem:[%s2 + $0x220] sm:$0xff]
  %v565 = vld [vmem:[%s2 + $0x228] sm:$0xff]
  %v566 = vld [vmem:[%s2 + $0x230] sm:$0xff]
  %v567 = vld [vmem:[%s2 + $0x238] sm:$0xff]
  %v568 = vld [vmem:[%s2 + $0x240] sm:$0xff]
  %v569 = vld [vmem:[%s2 + $0x248] sm:$0xff]
  %v570 = vld [vmem:[%s2 + $0x250] sm:$0xff]
  %v571 = vld [vmem:[%s2 + $0x258] sm:$0xff]
  %v572 = vld [vmem:[%s2 + $0x260] sm:$0xff]
  %v573 = vld [vmem:[%s2 + $0x268] sm:$0xff]
  %v574 = vld [vmem:[%s2 + $0x270] sm:$0xff]
  %v575 = vld [vmem:[%s2 + $0x278] sm:$0xff]
  %v576 = vld [vmem:[%s2 + $0x280] sm:$0xff]
  %v577 = vld [vmem:[%s2 + $0x288] sm:$0xff]
  %v578 = vld [vmem:[%s2 + $0x290] sm:$0xff]
  %v579 = vld [vmem:[%s2 + $0x298] sm:$0xff]
  %v580 = vld [vmem:[%s2 + $0x2a0] sm:$0xff]
  %v581 = vld [vmem:[%s2 + $0x2a8] sm:$0xff]
  %v582 = vld [vmem:[%s2 + $0x2b0] sm:$0xff]
  %v583 = vld [vmem:[%s2 + $0x2b8] sm:$0xff]
  %v584 = vld [vmem:[%s2 + $0x2c0] sm:$0xff]
  %v585 = vld [vmem:[%s2 + $0x2c8] sm:$0xff]
  %v586 = vld [vmem:[%s2 + $0x2d0] sm:$0xff]
  %v587 = vld [vmem:[%s2 + $0x2d8] sm:$0xff]
  %v588 = vld [vmem:[%s2 + $0x2e0] sm:$0xff]
  %v589 = vld [vmem:[%s2 + $0x2e8] sm:$0xff]
  %v590 = vld [vmem:[%s2 + $0x2f0] sm:$0xff]
  %v591 = vld [vmem:[%s2 + $0x2f8] sm:$0xff]
  %v592 = vld [vmem:[%s2 + $0x300] sm:$0xff]
  %v593 = vld [vmem:[%s2 + $0x308] sm:$0xff]
  %v594 = vld [vmem:[%s2 + $0x310] sm:$0xff]
  %v595 = vld [vmem:[%s2 + $0x318] sm:$0xff]
  %v596 = vld [vmem:[%s2 + $0x320] sm:$0xff]
  %v597 = vld [vmem:[%s2 + $0x328] sm:$0xff]
  %v598 = vld [vmem:[%s2 + $0x330] sm:$0xff]
  %v599 = vld [vmem:[%s2 + $0x338] sm:$0xff]
  %v600 = vld [vmem:[%s2 + $0x340] sm:$0xff]
  %v601 = vld [vmem:[%s2 + $0x348] sm:$0xff]
  %v602 = vld [vmem:[%s2 + $0x350] sm:$0xff]
  %v603 = vld [vmem:[%s2 + $0x358] sm:$0xff]
  %v604 = vld [vmem:[%s2 + $0x360] sm:$0xff]
  %v605 = vld [vmem:[%s2 + $0x368] sm:$0xff]
  %v606 = vld [vmem:[%s2 + $0x370] sm:$0xff]
  %v607 = vld [vmem:[%s2 + $0x378] sm:$0xff]
  %v608 = vld [vmem:[%s2 + $0x380] sm:$0xff]
  %v609 = vld [vmem:[%s2 + $0x388] sm:$0xff]
  %v610 = vld [vmem:[%s2 + $0x390] sm:$0xff]
  %v611 = vld [vmem:[%s2 + $0x398] sm:$0xff]
  %v612 = vld [vmem:[%s2 + $0x3a0] sm:$0xff]
  %v613 = vld [vmem:[%s2 + $0x3a8] sm:$0xff]
  %v614 = vld [vmem:[%s2 + $0x3b0] sm:$0xff]
  %v615 = vld [vmem:[%s2 + $0x3b8] sm:$0xff]
  %v616 = vld [vmem:[%s2 + $0x3c0] sm:$0xff]
  %v617 = vld [vmem:[%s2 + $0x3c8] sm:$0xff]
  %v618 = vld [vmem:[%s2 + $0x3d0] sm:$0xff]
  %v619 = vld [vmem:[%s2 + $0x3d8] sm:$0xff]
  %v620 = vld [vmem:[%s2 + $0x3e0] sm:$0xff]
  %v621 = vld [vmem:[%s2 + $0x3e8] sm:$0xff]
  %v622 = vld [vmem:[%s2 + $0x3f0] sm:$0xff]
  %v623 = vld [vmem:[%s2 + $0x3f8] sm:$0xff]
  %v624 = vld [vmem:[%s3] sm:$0xff]
  %v625 = vld [vmem:[%s4] sm:$0xff]
  loop: start=0, step=1, limit=8
  $region42: #{forward.4} parent=0 // loop_pre_header
    _
  $region43: #{forward.4} parent=0 // loop_header
    %s627 = sphi 0, %s631
    %p628 = scmp.ge.s32.totalorder %s627, 8
    %v632 = vphi %v624, %v751
    %v633 = vphi %v625, %v749
  $region44: #{forward.4} parent=0 // loop_header_branch
    %630 = sbr.rel (%p628) target = $region48
  $region45: #{forward.4} parent=0 // loop_body
    %s634 = smul.u32 %s627, 4
    %s635 = smul.addr %s634, 8
    %s636 = scalar_lea.vmem [#allocation2], %s635
    %v637 = vld [vmem:[%s636] sm:$0xff]
    %v638 = vld [vmem:[%s636 + $0x8] sm:$0xff]
    %v639 = vld [vmem:[%s636 + $0x10] sm:$0xff]
    %v640 = vld [vmem:[%s636 + $0x18] sm:$0xff]
    %v641 = vpack.c.bf16 %v632, %v632
    %642 = vmatprep.subr.bf16.mxu0 %v437
    %643 = vmatpush1.bf16.msra.mxu0 %v436
    %644 = vmatprep.subr.bf16.mxu0 %v433
    %645 = vmatpush1.bf16.msra.mxu0 %v432
    %646 = vmatprep.subr.bf16.mxu0 %v429
    %647 = vmatpush1.bf16.msra.mxu0 %v428
    %648 = vmatprep.subr.bf16.mxu0 %v425
    %649 = vmatpush1.bf16.msra.mxu0 %v424
    %650 = vmatprep.subr.bf16.mxu0 %v421
    %651 = vmatpush1.bf16.msra.mxu0 %v420
    %652 = vmatprep.subr.bf16.mxu0 %v417
    %653 = vmatpush1.bf16.msra.mxu0 %v416
    %654 = vmatprep.subr.bf16.mxu0 %v413
    %655 = vmatpush1.bf16.msra.mxu0 %v412
    %656 = vmatprep.subr.bf16.mxu0 %v409
    %657 = vmatpush1.bf16.msra.mxu0 %v408
    %658 = vmatprep.subr.bf16.mxu0 0
    %659 = vmatpush2.bf16.msra.mxu0 0
    %660 = vmatprep.subr.bf16.mxu0 0
    %661 = vmatpush2.bf16.msra.mxu0 0
    %662 = vmatprep.subr.bf16.mxu0 0
    %663 = vmatpush2.bf16.msra.mxu0 0
    %664 = vmatprep.subr.bf16.mxu0 0
    %665 = vmatpush2.bf16.msra.mxu0 0
    %666 = vmatprep.subr.bf16.mxu0 0
    %667 = vmatpush2.bf16.msra.mxu0 0
    %668 = vmatprep.subr.bf16.mxu0 0
    %669 = vmatpush2.bf16.msra.mxu0 0
    %670 = vmatprep.subr.bf16.mxu0 0
    %671 = vmatpush2.bf16.msra.mxu0 0
    %672 = vmatprep.subr.bf16.mxu0 0
    %673 = vmatpush2.bf16.msra.mxu0 0
    %674 = vmatprep.mubr.bf16.mxu0 0
    %675 = vmatmul.mubr.bf16.gmra.mxu0 %v641
    %v676 = vpop.f32.mrf.mxu0
    %v677 = vadd.f32 0.0, %v676
    %v678 = vpop.f32.mrf.mxu0
    %v679 = vadd.f32 0.0, %v678
    %v680 = vpop.f32.mrf.mxu0
    %v681 = vpop.f32.mrf.mxu0
    %682 = vdwg.mxu0
    %683 = vmatprep.subr.bf16.mxu0 %v439
    %684 = vmatpush1.bf16.msra.mxu0 %v438
    %685 = vmatprep.subr.bf16.mxu0 %v435
    %686 = vmatpush1.bf16.msra.mxu0 %v434
    %687 = vmatprep.subr.bf16.mxu0 %v431
    %688 = vmatpush1.bf16.msra.mxu0 %v430
    %689 = vmatprep.subr.bf16.mxu0 %v427
    %690 = vmatpush1.bf16.msra.mxu0 %v426
    %691 = vmatprep.subr.bf16.mxu0 %v423
    %692 = vmatpush1.bf16.msra.mxu0 %v422
    %693 = vmatprep.subr.bf16.mxu0 %v419
    %694 = vmatpush1.bf16.msra.mxu0 %v418
    %695 = vmatprep.subr.bf16.mxu0 %v415
    %696 = vmatpush1.bf16.msra.mxu0 %v414
    %697 = vmatprep.subr.bf16.mxu0 %v411
    %698 = vmatpush1.bf16.msra.mxu0 %v410
    %699 = vmatprep.subr.bf16.mxu0 0
    %700 = vmatpush2.bf16.msra.mxu0 0
    %701 = vmatprep.subr.bf16.mxu0 0
    %702 = vmatpush2.bf16.msra.mxu0 0
    %703 = vmatprep.subr.bf16.mxu0 0
    %704 = vmatpush2.bf16.msra.mxu0 0
    %705 = vmatprep.subr.bf16.mxu0 0
    %706 = vmatpush2.bf16.msra.mxu0 0
    %707 = vmatprep.subr.bf16.mxu0 0
    %708 = vmatpush2.bf16.msra.mxu0 0
    %709 = vmatprep.subr.bf16.mxu0 0
    %710 = vmatpush2.bf16.msra.mxu0 0
    %711 = vmatprep.subr.bf16.mxu0 0
    %712 = vmatpush2.bf16.msra.mxu0 0
    %713 = vmatprep.subr.bf16.mxu0 0
    %714 = vmatpush2.bf16.msra.mxu0 0
    %715 = vmatprep.mubr.bf16.mxu0 0
    %716 = vmatmul.mubr.bf16.gmra.mxu0 %v641
    %v717 = vpop.f32.mrf.mxu0
    %v718 = vadd.f32 0.0, %v717
    %v719 = vpop.f32.mrf.mxu0
    %v720 = vadd.f32 0.0, %v719
    %v721 = vpop.f32.mrf.mxu0
    %v722 = vpop.f32.mrf.mxu0
    %723 = vdwg.mxu0
    %v724 = vadd.f32 %v637, %v677
    %v725 = vadd.f32 %v638, %v679
    %v726 = vadd.f32 %v639, %v718
    %v727 = vadd.f32 %v640, %v720
    %v728 = vxor.u32 %v724, 2147483648
    %v729 = vmul.f32 %v728, 1.442695
    %v730 = vpow.pop %v729
    %v731 = vadd.f32 %v730, 1.0
    %v732 = vrcp.pop %v731
    %v733 = vmul.f32 1.0, %v732
    %v734 = vxor.u32 %v725, 2147483648
    %v735 = vmul.f32 %v734, 1.442695
    %v736 = vpow.pop %v735
    %v737 = vadd.f32 %v736, 1.0
    %v738 = vrcp.pop %v737
    %v739 = vmul.f32 1.0, %v738
    %v740 = vtanh.pop %v726
    %v741 = vxor.u32 %v727, 2147483648
    %v742 = vmul.f32 %v741, 1.442695
    %v743 = vpow.pop %v742
    %v744 = vadd.f32 %v743, 1.0
    %v745 = vrcp.pop %v744
    %v746 = vmul.f32 1.0, %v745
    %v747 = vmul.f32 %v739, %v633
    %v748 = vmul.f32 %v733, %v740
    %v749 = vadd.f32 %v747, %v748
    %v750 = vtanh.pop %v749
    %v751 = vmul.f32 %v746, %v750
    %v753 = vcombine.high %v751, %v751
    %v755 = vunpack.c.l.s4 1966171168
    %v756 = vunpack.c.0.s8 %v755
    %v757 = vlaneseq
    %v758 = vshrl.u32 %v757, 7
    %v759 = vsub.s32 %v756, %v758
    %v760 = vrot.slane %v751, %v759
    %v762 = vunpack.c.l.s4 1966171168
    %v763 = vunpack.c.0.s8 %v762
    %v764 = vlaneseq
    %v765 = vshrl.u32 %v764, 7
    %v766 = vsub.s32 %v763, %v765
    %v767 = vrot.slane %v753, %v766
    %v768 = vcombine.high %v760, %v760
    %v769 = vcombine.high %v767, %v767
    %v771 = vunpack.c.l.s4 1966171168
    %v772 = vunpack.c.0.s8 %v771
    %v773 = vlaneseq
    %v774 = vshrl.u32 %v773, 7
    %v775 = vsub.s32 %v772, %v774
    %v776 = vrot.slane %v760, %v775
    %v778 = vunpack.c.l.s4 1966171168
    %v779 = vunpack.c.0.s8 %v778
    %v780 = vlaneseq
    %v781 = vshrl.u32 %v780, 7
    %v782 = vsub.s32 %v779, %v781
    %v783 = vrot.slane %v767, %v782
    %v785 = vunpack.c.l.s4 1966171168
    %v786 = vunpack.c.0.s8 %v785
    %v787 = vlaneseq
    %v788 = vshrl.u32 %v787, 7
    %v789 = vsub.s32 %v786, %v788
    %v790 = vrot.slane %v768, %v789
    %v792 = vunpack.c.l.s4 1966171168
    %v793 = vunpack.c.0.s8 %v792
    %v794 = vlaneseq
    %v795 = vshrl.u32 %v794, 7
    %v796 = vsub.s32 %v793, %v795
    %v797 = vrot.slane %v769, %v796
    %v798 = vcombine.high %v776, %v776
    %v799 = vcombine.high %v783, %v783
    %v800 = vcombine.high %v790, %v790
    %v801 = vcombine.high %v797, %v797
    %v802 = vlaneseq
    %v803 = vshrl.u32 %v802, 7
    %v804 = vsub.s32 0, %v803
    %v805 = vrot.slane %v776, %v804
    %v806 = vlaneseq
    %v807 = vshrl.u32 %v806, 7
    %v808 = vsub.s32 0, %v807
    %v809 = vrot.slane %v790, %v808
    %v810 = vlaneseq
    %v811 = vshrl.u32 %v810, 7
    %v812 = vsub.s32 0, %v811
    %v813 = vrot.slane %v798, %v812
    %v814 = vlaneseq
    %v815 = vshrl.u32 %v814, 7
    %v816 = vsub.s32 0, %v815
    %v817 = vrot.slane %v800, %v816
    %v818 = vlaneseq
    %v819 = vshrl.u32 %v818, 7
    %v820 = vsub.s32 0, %v819
    %v821 = vrot.slane %v783, %v820
    %v822 = vlaneseq
    %v823 = vshrl.u32 %v822, 7
    %v824 = vsub.s32 0, %v823
    %v825 = vrot.slane %v797, %v824
    %v826 = vlaneseq
    %v827 = vshrl.u32 %v826, 7
    %v828 = vsub.s32 0, %v827
    %v829 = vrot.slane %v799, %v828
    %v830 = vlaneseq
    %v831 = vshrl.u32 %v830, 7
    %v832 = vsub.s32 0, %v831
    %v833 = vrot.slane %v801, %v832
    %v842 = vmul.f32 %v488, %v805
    %v843 = vmul.f32 %v489, %v809
    %v844 = vmul.f32 %v490, %v813
    %v845 = vmul.f32 %v491, %v817
    %v846 = vmul.f32 %v492, %v821
    %v847 = vmul.f32 %v493, %v825
    %v848 = vmul.f32 %v494, %v829
    %v849 = vmul.f32 %v495, %v833
    %850 = vadd.xlane.f32.xlu0 %v842
    %v851 = vpop.xlane.xlu0 %850
    %852 = vadd.xlane.f32.xlu0 %v843
    %v853 = vpop.xlane.xlu0 %852
    %854 = vadd.xlane.f32.xlu0 %v844
    %v855 = vpop.xlane.xlu0 %854
    %856 = vadd.xlane.f32.xlu0 %v845
    %v857 = vpop.xlane.xlu0 %856
    %858 = vadd.xlane.f32.xlu0 %v846
    %v859 = vpop.xlane.xlu0 %858
    %860 = vadd.xlane.f32.xlu0 %v847
    %v861 = vpop.xlane.xlu0 %860
    %862 = vadd.xlane.f32.xlu0 %v848
    %v863 = vpop.xlane.xlu0 %862
    %864 = vadd.xlane.f32.xlu0 %v849
    %v865 = vpop.xlane.xlu0 %864
    %v874 = vlaneseq
    %v875 = vand.u32 %v874, 127
    %v876 = vlaneseq
    %v877 = vshrl.u32 %v876, 7
    %v878 = vsub.s32 %v875, %v877
    %v879 = vrot.slane %v851, %v878
    %v880 = vlaneseq
    %v881 = vshrl.u32 %v880, 7
    %v882 = vsub.s32 %v875, %v881
    %v883 = vrot.slane %v853, %v882
    %v884 = vlaneseq
    %v885 = vshrl.u32 %v884, 7
    %v886 = vsub.s32 %v875, %v885
    %v887 = vrot.slane %v855, %v886
    %v888 = vlaneseq
    %v889 = vshrl.u32 %v888, 7
    %v890 = vsub.s32 %v875, %v889
    %v891 = vrot.slane %v857, %v890
    %v892 = vlaneseq
    %v893 = vshrl.u32 %v892, 7
    %v894 = vsub.s32 %v875, %v893
    %v895 = vrot.slane %v859, %v894
    %v896 = vlaneseq
    %v897 = vshrl.u32 %v896, 7
    %v898 = vsub.s32 %v875, %v897
    %v899 = vrot.slane %v861, %v898
    %v900 = vlaneseq
    %v901 = vshrl.u32 %v900, 7
    %v902 = vsub.s32 %v875, %v901
    %v903 = vrot.slane %v863, %v902
    %v904 = vlaneseq
    %v905 = vshrl.u32 %v904, 7
    %v906 = vsub.s32 %v875, %v905
    %v907 = vrot.slane %v865, %v906
    %vm908 = vcmask 1041409
    %v909 = vsel %vm908, %v883, %v879
    %vm910 = vcmask 1042434
    %v911 = vsel %vm910, %v887, %v909
    %vm912 = vcmask 1043459
    %v913 = vsel %vm912, %v891, %v911
    %vm914 = vcmask 1044484
    %v915 = vsel %vm914, %v895, %v913
    %vm916 = vcmask 1045509
    %v917 = vsel %vm916, %v899, %v915
    %vm918 = vcmask 1046534
    %v919 = vsel %vm918, %v903, %v917
    %vm920 = vcmask 1047559
    %v921 = vsel %vm920, %v907, %v919
    %vm923 = vcmask 64512
    %v924 = vsel %vm923, %v921, -inf
    %925 = vmax.xlane.f32.xlu0 %v924
    %v926 = vpop.xlane.xlu0 %925
    %v928 = vlaneseq
    %v929 = vshrl.u32 %v928, 7
    %v930 = vsub.s32 0, %v929
    %v931 = vrot.slane %v926, %v930
    %v932 = vlaneseq
    %v933 = vshrl.u32 %v932, 7
    %v934 = vsub.s32 1, %v933
    %v935 = vrot.slane %v926, %v934
    %v936 = vlaneseq
    %v937 = vshrl.u32 %v936, 7
    %v938 = vsub.s32 2, %v937
    %v939 = vrot.slane %v926, %v938
    %v940 = vlaneseq
    %v941 = vshrl.u32 %v940, 7
    %v942 = vsub.s32 3, %v941
    %v943 = vrot.slane %v926, %v942
    %v944 = vlaneseq
    %v945 = vshrl.u32 %v944, 7
    %v946 = vsub.s32 4, %v945
    %v947 = vrot.slane %v926, %v946
    %v948 = vlaneseq
    %v949 = vshrl.u32 %v948, 7
    %v950 = vsub.s32 5, %v949
    %v951 = vrot.slane %v926, %v950
    %v952 = vlaneseq
    %v953 = vshrl.u32 %v952, 7
    %v954 = vsub.s32 6, %v953
    %v955 = vrot.slane %v926, %v954
    %v956 = vlaneseq
    %v957 = vshrl.u32 %v956, 7
    %v958 = vsub.s32 7, %v957
    %v959 = vrot.slane %v926, %v958
    %v968 = vsub.f32 %v851, %v931
    %v969 = vsub.f32 %v853, %v935
    %v970 = vsub.f32 %v855, %v939
    %v971 = vsub.f32 %v857, %v943
    %v972 = vsub.f32 %v859, %v947
    %v973 = vsub.f32 %v861, %v951
    %v974 = vsub.f32 %v863, %v955
    %v975 = vsub.f32 %v865, %v959
    %v976 = vmul.f32 %v968, 1.442695
    %v977 = vpow.pop %v976
    %v978 = vmul.f32 %v969, 1.442695
    %v979 = vpow.pop %v978
    %v980 = vmul.f32 %v970, 1.442695
    %v981 = vpow.pop %v980
    %v982 = vmul.f32 %v971, 1.442695
    %v983 = vpow.pop %v982
    %v984 = vmul.f32 %v972, 1.442695
    %v985 = vpow.pop %v984
    %v986 = vmul.f32 %v973, 1.442695
    %v987 = vpow.pop %v986
    %v988 = vmul.f32 %v974, 1.442695
    %v989 = vpow.pop %v988
    %v990 = vmul.f32 %v975, 1.442695
    %v991 = vpow.pop %v990
    %1000 = vset.pattern.permute.xlu0 0
    %1001 = vperm.xlu0 %1000, %v977
    %v1002 = vpop.permute.xlu0 %1001
    %1003 = vset.pattern.permute.xlu0 0
    %1004 = vperm.xlu0 %1003, %v979
    %v1005 = vpop.permute.xlu0 %1004
    %1006 = vset.pattern.permute.xlu0 0
    %1007 = vperm.xlu0 %1006, %v981
    %v1008 = vpop.permute.xlu0 %1007
    %1009 = vset.pattern.permute.xlu0 0
    %1010 = vperm.xlu0 %1009, %v983
    %v1011 = vpop.permute.xlu0 %1010
    %1012 = vset.pattern.permute.xlu0 0
    %1013 = vperm.xlu0 %1012, %v985
    %v1014 = vpop.permute.xlu0 %1013
    %1015 = vset.pattern.permute.xlu0 0
    %1016 = vperm.xlu0 %1015, %v987
    %v1017 = vpop.permute.xlu0 %1016
    %1018 = vset.pattern.permute.xlu0 0
    %1019 = vperm.xlu0 %1018, %v989
    %v1020 = vpop.permute.xlu0 %1019
    %1021 = vset.pattern.permute.xlu0 0
    %1022 = vperm.xlu0 %1021, %v991
    %v1023 = vpop.permute.xlu0 %1022
    %v1024 = vlaneseq
    %v1025 = vshrl.u32 %v1024, 7
    %v1026 = vsub.s32 %v875, %v1025
    %v1027 = vrot.slane %v1002, %v1026
    %v1028 = vlaneseq
    %v1029 = vshrl.u32 %v1028, 7
    %v1030 = vsub.s32 %v875, %v1029
    %v1031 = vrot.slane %v1005, %v1030
    %v1032 = vlaneseq
    %v1033 = vshrl.u32 %v1032, 7
    %v1034 = vsub.s32 %v875, %v1033
    %v1035 = vrot.slane %v1008, %v1034
    %v1036 = vlaneseq
    %v1037 = vshrl.u32 %v1036, 7
    %v1038 = vsub.s32 %v875, %v1037
    %v1039 = vrot.slane %v1011, %v1038
    %v1040 = vlaneseq
    %v1041 = vshrl.u32 %v1040, 7
    %v1042 = vsub.s32 %v875, %v1041
    %v1043 = vrot.slane %v1014, %v1042
    %v1044 = vlaneseq
    %v1045 = vshrl.u32 %v1044, 7
    %v1046 = vsub.s32 %v875, %v1045
    %v1047 = vrot.slane %v1017, %v1046
    %v1048 = vlaneseq
    %v1049 = vshrl.u32 %v1048, 7
    %v1050 = vsub.s32 %v875, %v1049
    %v1051 = vrot.slane %v1020, %v1050
    %v1052 = vlaneseq
    %v1053 = vshrl.u32 %v1052, 7
    %v1054 = vsub.s32 %v875, %v1053
    %v1055 = vrot.slane %v1023, %v1054
    %v1056 = vsel %vm908, %v1031, %v1027
    %v1057 = vsel %vm910, %v1035, %v1056
    %v1058 = vsel %vm912, %v1039, %v1057
    %v1059 = vsel %vm914, %v1043, %v1058
    %v1060 = vsel %vm916, %v1047, %v1059
    %v1061 = vsel %vm918, %v1051, %v1060
    %v1062 = vsel %vm920, %v1055, %v1061
    %v1064 = vsel %vm923, %v1062, 0.0
    %1065 = vadd.xlane.f32.xlu0 %v1064
    %v1066 = vpop.xlane.xlu0 %1065
    %v1067 = vrcp.pop %v1066
    %v1069 = vlaneseq
    %v1070 = vshrl.u32 %v1069, 7
    %v1071 = vsub.s32 0, %v1070
    %v1072 = vrot.slane %v1067, %v1071
    %v1073 = vlaneseq
    %v1074 = vshrl.u32 %v1073, 7
    %v1075 = vsub.s32 1, %v1074
    %v1076 = vrot.slane %v1067, %v1075
    %v1077 = vlaneseq
    %v1078 = vshrl.u32 %v1077, 7
    %v1079 = vsub.s32 2, %v1078
    %v1080 = vrot.slane %v1067, %v1079
    %v1081 = vlaneseq
    %v1082 = vshrl.u32 %v1081, 7
    %v1083 = vsub.s32 3, %v1082
    %v1084 = vrot.slane %v1067, %v1083
    %v1085 = vlaneseq
    %v1086 = vshrl.u32 %v1085, 7
    %v1087 = vsub.s32 4, %v1086
    %v1088 = vrot.slane %v1067, %v1087
    %v1089 = vlaneseq
    %v1090 = vshrl.u32 %v1089, 7
    %v1091 = vsub.s32 5, %v1090
    %v1092 = vrot.slane %v1067, %v1091
    %v1093 = vlaneseq
    %v1094 = vshrl.u32 %v1093, 7
    %v1095 = vsub.s32 6, %v1094
    %v1096 = vrot.slane %v1067, %v1095
    %v1097 = vlaneseq
    %v1098 = vshrl.u32 %v1097, 7
    %v1099 = vsub.s32 7, %v1098
    %v1100 = vrot.slane %v1067, %v1099
    %v1109 = vmul.f32 %v977, %v1072
    %v1110 = vmul.f32 %v979, %v1076
    %v1111 = vmul.f32 %v981, %v1080
    %v1112 = vmul.f32 %v983, %v1084
    %v1113 = vmul.f32 %v985, %v1088
    %v1114 = vmul.f32 %v987, %v1092
    %v1115 = vmul.f32 %v989, %v1096
    %v1116 = vmul.f32 %v991, %v1100
    %1125 = vset.pattern.permute.xlu0 0
    %1126 = vperm.xlu0 %1125, %v1109
    %v1127 = vpop.permute.xlu0 %1126
    %1128 = vset.pattern.permute.xlu0 0
    %1129 = vperm.xlu0 %1128, %v1110
    %v1130 = vpop.permute.xlu0 %1129
    %1131 = vset.pattern.permute.xlu0 0
    %1132 = vperm.xlu0 %1131, %v1111
    %v1133 = vpop.permute.xlu0 %1132
    %1134 = vset.pattern.permute.xlu0 0
    %1135 = vperm.xlu0 %1134, %v1112
    %v1136 = vpop.permute.xlu0 %1135
    %1137 = vset.pattern.permute.xlu0 0
    %1138 = vperm.xlu0 %1137, %v1113
    %v1139 = vpop.permute.xlu0 %1138
    %1140 = vset.pattern.permute.xlu0 0
    %1141 = vperm.xlu0 %1140, %v1114
    %v1142 = vpop.permute.xlu0 %1141
    %1143 = vset.pattern.permute.xlu0 0
    %1144 = vperm.xlu0 %1143, %v1115
    %v1145 = vpop.permute.xlu0 %1144
    %1146 = vset.pattern.permute.xlu0 0
    %1147 = vperm.xlu0 %1146, %v1116
    %v1148 = vpop.permute.xlu0 %1147
    %v1149 = vlaneseq
    %v1150 = vshrl.u32 %v1149, 7
    %v1151 = vsub.s32 %v875, %v1150
    %v1152 = vrot.slane %v1127, %v1151
    %v1153 = vlaneseq
    %v1154 = vshrl.u32 %v1153, 7
    %v1155 = vsub.s32 %v875, %v1154
    %v1156 = vrot.slane %v1130, %v1155
    %v1157 = vlaneseq
    %v1158 = vshrl.u32 %v1157, 7
    %v1159 = vsub.s32 %v875, %v1158
    %v1160 = vrot.slane %v1133, %v1159
    %v1161 = vlaneseq
    %v1162 = vshrl.u32 %v1161, 7
    %v1163 = vsub.s32 %v875, %v1162
    %v1164 = vrot.slane %v1136, %v1163
    %v1165 = vlaneseq
    %v1166 = vshrl.u32 %v1165, 7
    %v1167 = vsub.s32 %v875, %v1166
    %v1168 = vrot.slane %v1139, %v1167
    %v1169 = vlaneseq
    %v1170 = vshrl.u32 %v1169, 7
    %v1171 = vsub.s32 %v875, %v1170
    %v1172 = vrot.slane %v1142, %v1171
    %v1173 = vlaneseq
    %v1174 = vshrl.u32 %v1173, 7
    %v1175 = vsub.s32 %v875, %v1174
    %v1176 = vrot.slane %v1145, %v1175
    %v1177 = vlaneseq
    %v1178 = vshrl.u32 %v1177, 7
    %v1179 = vsub.s32 %v875, %v1178
    %v1180 = vrot.slane %v1148, %v1179
    %v1181 = vsel %vm910, %v1152, %v1152
    %v1182 = vsel %vm912, %v1152, %v1181
    %v1183 = vsel %vm914, %v1152, %v1182
    %v1184 = vsel %vm916, %v1152, %v1183
    %v1185 = vsel %vm918, %v1152, %v1184
    %v1186 = vsel %vm920, %v1152, %v1185
    %v1187 = vsel %vm910, %v1156, %v1156
    %v1188 = vsel %vm912, %v1156, %v1187
    %v1189 = vsel %vm914, %v1156, %v1188
    %v1190 = vsel %vm916, %v1156, %v1189
    %v1191 = vsel %vm918, %v1156, %v1190
    %v1192 = vsel %vm920, %v1156, %v1191
    %v1193 = vsel %vm910, %v1160, %v1160
    %v1194 = vsel %vm912, %v1160, %v1193
    %v1195 = vsel %vm914, %v1160, %v1194
    %v1196 = vsel %vm916, %v1160, %v1195
    %v1197 = vsel %vm918, %v1160, %v1196
    %v1198 = vsel %vm920, %v1160, %v1197
    %v1199 = vsel %vm910, %v1164, %v1164
    %v1200 = vsel %vm912, %v1164, %v1199
    %v1201 = vsel %vm914, %v1164, %v1200
    %v1202 = vsel %vm916, %v1164, %v1201
    %v1203 = vsel %vm918, %v1164, %v1202
    %v1204 = vsel %vm920, %v1164, %v1203
    %v1205 = vsel %vm910, %v1168, %v1168
    %v1206 = vsel %vm912, %v1168, %v1205
    %v1207 = vsel %vm914, %v1168, %v1206
    %v1208 = vsel %vm916, %v1168, %v1207
    %v1209 = vsel %vm918, %v1168, %v1208
    %v1210 = vsel %vm920, %v1168, %v1209
    %v1211 = vsel %vm910, %v1172, %v1172
    %v1212 = vsel %vm912, %v1172, %v1211
    %v1213 = vsel %vm914, %v1172, %v1212
    %v1214 = vsel %vm916, %v1172, %v1213
    %v1215 = vsel %vm918, %v1172, %v1214
    %v1216 = vsel %vm920, %v1172, %v1215
    %v1217 = vsel %vm910, %v1176, %v1176
    %v1218 = vsel %vm912, %v1176, %v1217
    %v1219 = vsel %vm914, %v1176, %v1218
    %v1220 = vsel %vm916, %v1176, %v1219
    %v1221 = vsel %vm918, %v1176, %v1220
    %v1222 = vsel %vm920, %v1176, %v1221
    %v1223 = vsel %vm910, %v1180, %v1180
    %v1224 = vsel %vm912, %v1180, %v1223
    %v1225 = vsel %vm914, %v1180, %v1224
    %v1226 = vsel %vm916, %v1180, %v1225
    %v1227 = vsel %vm918, %v1180, %v1226
    %v1228 = vsel %vm920, %v1180, %v1227
    %v1237 = vmul.f32 %v496, %v1186
    %v1238 = vmul.f32 %v497, %v1186
    %v1239 = vmul.f32 %v498, %v1186
    %v1240 = vmul.f32 %v499, %v1186
    %v1241 = vmul.f32 %v500, %v1186
    %v1242 = vmul.f32 %v501, %v1186
    %v1243 = vmul.f32 %v502, %v1186
    %v1244 = vmul.f32 %v503, %v1186
    %v1245 = vmul.f32 %v504, %v1186
    %v1246 = vmul.f32 %v505, %v1186
    %v1247 = vmul.f32 %v506, %v1186
    %v1248 = vmul.f32 %v507, %v1186
    %v1249 = vmul.f32 %v508, %v1186
    %v1250 = vmul.f32 %v509, %v1186
    %v1251 = vmul.f32 %v510, %v1186
    %v1252 = vmul.f32 %v511, %v1186
    %v1253 = vmul.f32 %v512, %v1192
    %v1254 = vmul.f32 %v513, %v1192
    %v1255 = vmul.f32 %v514, %v1192
    %v1256 = vmul.f32 %v515, %v1192
    %v1257 = vmul.f32 %v516, %v1192
    %v1258 = vmul.f32 %v517, %v1192
    %v1259 = vmul.f32 %v518, %v1192
    %v1260 = vmul.f32 %v519, %v1192
    %v1261 = vmul.f32 %v520, %v1192
    %v1262 = vmul.f32 %v521, %v1192
    %v1263 = vmul.f32 %v522, %v1192
    %v1264 = vmul.f32 %v523, %v1192
    %v1265 = vmul.f32 %v524, %v1192
    %v1266 = vmul.f32 %v525, %v1192
    %v1267 = vmul.f32 %v526, %v1192
    %v1268 = vmul.f32 %v527, %v1192
    %v1269 = vmul.f32 %v528, %v1198
    %v1270 = vmul.f32 %v529, %v1198
    %v1271 = vmul.f32 %v530, %v1198
    %v1272 = vmul.f32 %v531, %v1198
    %v1273 = vmul.f32 %v532, %v1198
    %v1274 = vmul.f32 %v533, %v1198
    %v1275 = vmul.f32 %v534, %v1198
    %v1276 = vmul.f32 %v535, %v1198
    %v1277 = vmul.f32 %v536, %v1198
    %v1278 = vmul.f32 %v537, %v1198
    %v1279 = vmul.f32 %v538, %v1198
    %v1280 = vmul.f32 %v539, %v1198
    %v1281 = vmul.f32 %v540, %v1198
    %v1282 = vmul.f32 %v541, %v1198
    %v1283 = vmul.f32 %v542, %v1198
    %v1284 = vmul.f32 %v543, %v1198
    %v1285 = vmul.f32 %v544, %v1204
    %v1286 = vmul.f32 %v545, %v1204
    %v1287 = vmul.f32 %v546, %v1204
    %v1288 = vmul.f32 %v547, %v1204
    %v1289 = vmul.f32 %v548, %v1204
    %v1290 = vmul.f32 %v549, %v1204
    %v1291 = vmul.f32 %v550, %v1204
    %v1292 = vmul.f32 %v551, %v1204
    %v1293 = vmul.f32 %v552, %v1204
    %v1294 = vmul.f32 %v553, %v1204
    %v1295 = vmul.f32 %v554, %v1204
    %v1296 = vmul.f32 %v555, %v1204
    %v1297 = vmul.f32 %v556, %v1204
    %v1298 = vmul.f32 %v557, %v1204
    %v1299 = vmul.f32 %v558, %v1204
    %v1300 = vmul.f32 %v559, %v1204
    %v1301 = vmul.f32 %v560, %v1210
    %v1302 = vmul.f32 %v561, %v1210
    %v1303 = vmul.f32 %v562, %v1210
    %v1304 = vmul.f32 %v563, %v1210
    %v1305 = vmul.f32 %v564, %v1210
    %v1306 = vmul.f32 %v565, %v1210
    %v1307 = vmul.f32 %v566, %v1210
    %v1308 = vmul.f32 %v567, %v1210
    %v1309 = vmul.f32 %v568, %v1210
    %v1310 = vmul.f32 %v569, %v1210
    %v1311 = vmul.f32 %v570, %v1210
    %v1312 = vmul.f32 %v571, %v1210
    %v1313 = vmul.f32 %v572, %v1210
    %v1314 = vmul.f32 %v573, %v1210
    %v1315 = vmul.f32 %v574, %v1210
    %v1316 = vmul.f32 %v575, %v1210
    %v1317 = vmul.f32 %v576, %v1216
    %v1318 = vmul.f32 %v577, %v1216
    %v1319 = vmul.f32 %v578, %v1216
    %v1320 = vmul.f32 %v579, %v1216
    %v1321 = vmul.f32 %v580, %v1216
    %v1322 = vmul.f32 %v581, %v1216
    %v1323 = vmul.f32 %v582, %v1216
    %v1324 = vmul.f32 %v583, %v1216
    %v1325 = vmul.f32 %v584, %v1216
    %v1326 = vmul.f32 %v585, %v1216
    %v1327 = vmul.f32 %v586, %v1216
    %v1328 = vmul.f32 %v587, %v1216
    %v1329 = vmul.f32 %v588, %v1216
    %v1330 = vmul.f32 %v589, %v1216
    %v1331 = vmul.f32 %v590, %v1216
    %v1332 = vmul.f32 %v591, %v1216
    %v1333 = vmul.f32 %v592, %v1222
    %v1334 = vmul.f32 %v593, %v1222
    %v1335 = vmul.f32 %v594, %v1222
    %v1336 = vmul.f32 %v595, %v1222
    %v1337 = vmul.f32 %v596, %v1222
    %v1338 = vmul.f32 %v597, %v1222
    %v1339 = vmul.f32 %v598, %v1222
    %v1340 = vmul.f32 %v599, %v1222
    %v1341 = vmul.f32 %v600, %v1222
    %v1342 = vmul.f32 %v601, %v1222
    %v1343 = vmul.f32 %v602, %v1222
    %v1344 = vmul.f32 %v603, %v1222
    %v1345 = vmul.f32 %v604, %v1222
    %v1346 = vmul.f32 %v605, %v1222
    %v1347 = vmul.f32 %v606, %v1222
    %v1348 = vmul.f32 %v607, %v1222
    %v1349 = vmul.f32 %v608, %v1228
    %v1350 = vmul.f32 %v609, %v1228
    %v1351 = vmul.f32 %v610, %v1228
    %v1352 = vmul.f32 %v611, %v1228
    %v1353 = vmul.f32 %v612, %v1228
    %v1354 = vmul.f32 %v613, %v1228
    %v1355 = vmul.f32 %v614, %v1228
    %v1356 = vmul.f32 %v615, %v1228
    %v1357 = vmul.f32 %v616, %v1228
    %v1358 = vmul.f32 %v617, %v1228
    %v1359 = vmul.f32 %v618, %v1228
    %v1360 = vmul.f32 %v619, %v1228
    %v1361 = vmul.f32 %v620, %v1228
    %v1362 = vmul.f32 %v621, %v1228
    %v1363 = vmul.f32 %v622, %v1228
    %v1364 = vmul.f32 %v623, %v1228
    %v1365 = vsel %vm923, %v1237, 0.0
    %1366 = vadd.xlane.f32.xlu0 %v1365
    %v1367 = vpop.xlane.xlu0 %1366
    %v1368 = vsel %vm923, %v1238, 0.0
    %1369 = vadd.xlane.f32.xlu0 %v1368
    %v1370 = vpop.xlane.xlu0 %1369
    %v1371 = vsel %vm923, %v1239, 0.0
    %1372 = vadd.xlane.f32.xlu0 %v1371
    %v1373 = vpop.xlane.xlu0 %1372
    %v1374 = vsel %vm923, %v1240, 0.0
    %1375 = vadd.xlane.f32.xlu0 %v1374
    %v1376 = vpop.xlane.xlu0 %1375
    %v1377 = vsel %vm923, %v1241, 0.0
    %1378 = vadd.xlane.f32.xlu0 %v1377
    %v1379 = vpop.xlane.xlu0 %1378
    %v1380 = vsel %vm923, %v1242, 0.0
    %1381 = vadd.xlane.f32.xlu0 %v1380
    %v1382 = vpop.xlane.xlu0 %1381
    %v1383 = vsel %vm923, %v1243, 0.0
    %1384 = vadd.xlane.f32.xlu0 %v1383
    %v1385 = vpop.xlane.xlu0 %1384
    %v1386 = vsel %vm923, %v1244, 0.0
    %1387 = vadd.xlane.f32.xlu0 %v1386
    %v1388 = vpop.xlane.xlu0 %1387
    %v1389 = vsel %vm923, %v1245, 0.0
    %1390 = vadd.xlane.f32.xlu0 %v1389
    %v1391 = vpop.xlane.xlu0 %1390
    %v1392 = vsel %vm923, %v1246, 0.0
    %1393 = vadd.xlane.f32.xlu0 %v1392
    %v1394 = vpop.xlane.xlu0 %1393
    %v1395 = vsel %vm923, %v1247, 0.0
    %1396 = vadd.xlane.f32.xlu0 %v1395
    %v1397 = vpop.xlane.xlu0 %1396
    %v1398 = vsel %vm923, %v1248, 0.0
    %1399 = vadd.xlane.f32.xlu0 %v1398
    %v1400 = vpop.xlane.xlu0 %1399
    %v1401 = vsel %vm923, %v1249, 0.0
    %1402 = vadd.xlane.f32.xlu0 %v1401
    %v1403 = vpop.xlane.xlu0 %1402
    %v1404 = vsel %vm923, %v1250, 0.0
    %1405 = vadd.xlane.f32.xlu0 %v1404
    %v1406 = vpop.xlane.xlu0 %1405
    %v1407 = vsel %vm923, %v1251, 0.0
    %1408 = vadd.xlane.f32.xlu0 %v1407
    %v1409 = vpop.xlane.xlu0 %1408
    %v1410 = vsel %vm923, %v1252, 0.0
    %1411 = vadd.xlane.f32.xlu0 %v1410
    %v1412 = vpop.xlane.xlu0 %1411
    %v1413 = vsel %vm923, %v1253, 0.0
    %1414 = vadd.xlane.f32.xlu0 %v1413
    %v1415 = vpop.xlane.xlu0 %1414
    %v1416 = vsel %vm923, %v1254, 0.0
    %1417 = vadd.xlane.f32.xlu0 %v1416
    %v1418 = vpop.xlane.xlu0 %1417
    %v1419 = vsel %vm923, %v1255, 0.0
    %1420 = vadd.xlane.f32.xlu0 %v1419
    %v1421 = vpop.xlane.xlu0 %1420
    %v1422 = vsel %vm923, %v1256, 0.0
    %1423 = vadd.xlane.f32.xlu0 %v1422
    %v1424 = vpop.xlane.xlu0 %1423
    %v1425 = vsel %vm923, %v1257, 0.0
    %1426 = vadd.xlane.f32.xlu0 %v1425
    %v1427 = vpop.xlane.xlu0 %1426
    %v1428 = vsel %vm923, %v1258, 0.0
    %1429 = vadd.xlane.f32.xlu0 %v1428
    %v1430 = vpop.xlane.xlu0 %1429
    %v1431 = vsel %vm923, %v1259, 0.0
    %1432 = vadd.xlane.f32.xlu0 %v1431
    %v1433 = vpop.xlane.xlu0 %1432
    %v1434 = vsel %vm923, %v1260, 0.0
    %1435 = vadd.xlane.f32.xlu0 %v1434
    %v1436 = vpop.xlane.xlu0 %1435
    %v1437 = vsel %vm923, %v1261, 0.0
    %1438 = vadd.xlane.f32.xlu0 %v1437
    %v1439 = vpop.xlane.xlu0 %1438
    %v1440 = vsel %vm923, %v1262, 0.0
    %1441 = vadd.xlane.f32.xlu0 %v1440
    %v1442 = vpop.xlane.xlu0 %1441
    %v1443 = vsel %vm923, %v1263, 0.0
    %1444 = vadd.xlane.f32.xlu0 %v1443
    %v1445 = vpop.xlane.xlu0 %1444
    %v1446 = vsel %vm923, %v1264, 0.0
    %1447 = vadd.xlane.f32.xlu0 %v1446
    %v1448 = vpop.xlane.xlu0 %1447
    %v1449 = vsel %vm923, %v1265, 0.0
    %1450 = vadd.xlane.f32.xlu0 %v1449
    %v1451 = vpop.xlane.xlu0 %1450
    %v1452 = vsel %vm923, %v1266, 0.0
    %1453 = vadd.xlane.f32.xlu0 %v1452
    %v1454 = vpop.xlane.xlu0 %1453
    %v1455 = vsel %vm923, %v1267, 0.0
    %1456 = vadd.xlane.f32.xlu0 %v1455
    %v1457 = vpop.xlane.xlu0 %1456
    %v1458 = vsel %vm923, %v1268, 0.0
    %1459 = vadd.xlane.f32.xlu0 %v1458
    %v1460 = vpop.xlane.xlu0 %1459
    %v1461 = vsel %vm923, %v1269, 0.0
    %1462 = vadd.xlane.f32.xlu0 %v1461
    %v1463 = vpop.xlane.xlu0 %1462
    %v1464 = vsel %vm923, %v1270, 0.0
    %1465 = vadd.xlane.f32.xlu0 %v1464
    %v1466 = vpop.xlane.xlu0 %1465
    %v1467 = vsel %vm923, %v1271, 0.0
    %1468 = vadd.xlane.f32.xlu0 %v1467
    %v1469 = vpop.xlane.xlu0 %1468
    %v1470 = vsel %vm923, %v1272, 0.0
    %1471 = vadd.xlane.f32.xlu0 %v1470
    %v1472 = vpop.xlane.xlu0 %1471
    %v1473 = vsel %vm923, %v1273, 0.0
    %1474 = vadd.xlane.f32.xlu0 %v1473
    %v1475 = vpop.xlane.xlu0 %1474
    %v1476 = vsel %vm923, %v1274, 0.0
    %1477 = vadd.xlane.f32.xlu0 %v1476
    %v1478 = vpop.xlane.xlu0 %1477
    %v1479 = vsel %vm923, %v1275, 0.0
    %1480 = vadd.xlane.f32.xlu0 %v1479
    %v1481 = vpop.xlane.xlu0 %1480
    %v1482 = vsel %vm923, %v1276, 0.0
    %1483 = vadd.xlane.f32.xlu0 %v1482
    %v1484 = vpop.xlane.xlu0 %1483
    %v1485 = vsel %vm923, %v1277, 0.0
    %1486 = vadd.xlane.f32.xlu0 %v1485
    %v1487 = vpop.xlane.xlu0 %1486
    %v1488 = vsel %vm923, %v1278, 0.0
    %1489 = vadd.xlane.f32.xlu0 %v1488
    %v1490 = vpop.xlane.xlu0 %1489
    %v1491 = vsel %vm923, %v1279, 0.0
    %1492 = vadd.xlane.f32.xlu0 %v1491
    %v1493 = vpop.xlane.xlu0 %1492
    %v1494 = vsel %vm923, %v1280, 0.0
    %1495 = vadd.xlane.f32.xlu0 %v1494
    %v1496 = vpop.xlane.xlu0 %1495
    %v1497 = vsel %vm923, %v1281, 0.0
    %1498 = vadd.xlane.f32.xlu0 %v1497
    %v1499 = vpop.xlane.xlu0 %1498
    %v1500 = vsel %vm923, %v1282, 0.0
    %1501 = vadd.xlane.f32.xlu0 %v1500
    %v1502 = vpop.xlane.xlu0 %1501
    %v1503 = vsel %vm923, %v1283, 0.0
    %1504 = vadd.xlane.f32.xlu0 %v1503
    %v1505 = vpop.xlane.xlu0 %1504
    %v1506 = vsel %vm923, %v1284, 0.0
    %1507 = vadd.xlane.f32.xlu0 %v1506
    %v1508 = vpop.xlane.xlu0 %1507
    %v1509 = vsel %vm923, %v1285, 0.0
    %1510 = vadd.xlane.f32.xlu0 %v1509
    %v1511 = vpop.xlane.xlu0 %1510
    %v1512 = vsel %vm923, %v1286, 0.0
    %1513 = vadd.xlane.f32.xlu0 %v1512
    %v1514 = vpop.xlane.xlu0 %1513
    %v1515 = vsel %vm923, %v1287, 0.0
    %1516 = vadd.xlane.f32.xlu0 %v1515
    %v1517 = vpop.xlane.xlu0 %1516
    %v1518 = vsel %vm923, %v1288, 0.0
    %1519 = vadd.xlane.f32.xlu0 %v1518
    %v1520 = vpop.xlane.xlu0 %1519
    %v1521 = vsel %vm923, %v1289, 0.0
    %1522 = vadd.xlane.f32.xlu0 %v1521
    %v1523 = vpop.xlane.xlu0 %1522
    %v1524 = vsel %vm923, %v1290, 0.0
    %1525 = vadd.xlane.f32.xlu0 %v1524
    %v1526 = vpop.xlane.xlu0 %1525
    %v1527 = vsel %vm923, %v1291, 0.0
    %1528 = vadd.xlane.f32.xlu0 %v1527
    %v1529 = vpop.xlane.xlu0 %1528
    %v1530 = vsel %vm923, %v1292, 0.0
    %1531 = vadd.xlane.f32.xlu0 %v1530
    %v1532 = vpop.xlane.xlu0 %1531
    %v1533 = vsel %vm923, %v1293, 0.0
    %1534 = vadd.xlane.f32.xlu0 %v1533
    %v1535 = vpop.xlane.xlu0 %1534
    %v1536 = vsel %vm923, %v1294, 0.0
    %1537 = vadd.xlane.f32.xlu0 %v1536
    %v1538 = vpop.xlane.xlu0 %1537
    %v1539 = vsel %vm923, %v1295, 0.0
    %1540 = vadd.xlane.f32.xlu0 %v1539
    %v1541 = vpop.xlane.xlu0 %1540
    %v1542 = vsel %vm923, %v1296, 0.0
    %1543 = vadd.xlane.f32.xlu0 %v1542
    %v1544 = vpop.xlane.xlu0 %1543
    %v1545 = vsel %vm923, %v1297, 0.0
    %1546 = vadd.xlane.f32.xlu0 %v1545
    %v1547 = vpop.xlane.xlu0 %1546
    %v1548 = vsel %vm923, %v1298, 0.0
    %1549 = vadd.xlane.f32.xlu0 %v1548
    %v1550 = vpop.xlane.xlu0 %1549
    %v1551 = vsel %vm923, %v1299, 0.0
    %1552 = vadd.xlane.f32.xlu0 %v1551
    %v1553 = vpop.xlane.xlu0 %1552
    %v1554 = vsel %vm923, %v1300, 0.0
    %1555 = vadd.xlane.f32.xlu0 %v1554
    %v1556 = vpop.xlane.xlu0 %1555
    %v1557 = vsel %vm923, %v1301, 0.0
    %1558 = vadd.xlane.f32.xlu0 %v1557
    %v1559 = vpop.xlane.xlu0 %1558
    %v1560 = vsel %vm923, %v1302, 0.0
    %1561 = vadd.xlane.f32.xlu0 %v1560
    %v1562 = vpop.xlane.xlu0 %1561
    %v1563 = vsel %vm923, %v1303, 0.0
    %1564 = vadd.xlane.f32.xlu0 %v1563
    %v1565 = vpop.xlane.xlu0 %1564
    %v1566 = vsel %vm923, %v1304, 0.0
    %1567 = vadd.xlane.f32.xlu0 %v1566
    %v1568 = vpop.xlane.xlu0 %1567
    %v1569 = vsel %vm923, %v1305, 0.0
    %1570 = vadd.xlane.f32.xlu0 %v1569
    %v1571 = vpop.xlane.xlu0 %1570
    %v1572 = vsel %vm923, %v1306, 0.0
    %1573 = vadd.xlane.f32.xlu0 %v1572
    %v1574 = vpop.xlane.xlu0 %1573
    %v1575 = vsel %vm923, %v1307, 0.0
    %1576 = vadd.xlane.f32.xlu0 %v1575
    %v1577 = vpop.xlane.xlu0 %1576
    %v1578 = vsel %vm923, %v1308, 0.0
    %1579 = vadd.xlane.f32.xlu0 %v1578
    %v1580 = vpop.xlane.xlu0 %1579
    %v1581 = vsel %vm923, %v1309, 0.0
    %1582 = vadd.xlane.f32.xlu0 %v1581
    %v1583 = vpop.xlane.xlu0 %1582
    %v1584 = vsel %vm923, %v1310, 0.0
    %1585 = vadd.xlane.f32.xlu0 %v1584
    %v1586 = vpop.xlane.xlu0 %1585
    %v1587 = vsel %vm923, %v1311, 0.0
    %1588 = vadd.xlane.f32.xlu0 %v1587
    %v1589 = vpop.xlane.xlu0 %1588
    %v1590 = vsel %vm923, %v1312, 0.0
    %1591 = vadd.xlane.f32.xlu0 %v1590
    %v1592 = vpop.xlane.xlu0 %1591
    %v1593 = vsel %vm923, %v1313, 0.0
    %1594 = vadd.xlane.f32.xlu0 %v1593
    %v1595 = vpop.xlane.xlu0 %1594
    %v1596 = vsel %vm923, %v1314, 0.0
    %1597 = vadd.xlane.f32.xlu0 %v1596
    %v1598 = vpop.xlane.xlu0 %1597
    %v1599 = vsel %vm923, %v1315, 0.0
    %1600 = vadd.xlane.f32.xlu0 %v1599
    %v1601 = vpop.xlane.xlu0 %1600
    %v1602 = vsel %vm923, %v1316, 0.0
    %1603 = vadd.xlane.f32.xlu0 %v1602
    %v1604 = vpop.xlane.xlu0 %1603
    %v1605 = vsel %vm923, %v1317, 0.0
    %1606 = vadd.xlane.f32.xlu0 %v1605
    %v1607 = vpop.xlane.xlu0 %1606
    %v1608 = vsel %vm923, %v1318, 0.0
    %1609 = vadd.xlane.f32.xlu0 %v1608
    %v1610 = vpop.xlane.xlu0 %1609
    %v1611 = vsel %vm923, %v1319, 0.0
    %1612 = vadd.xlane.f32.xlu0 %v1611
    %v1613 = vpop.xlane.xlu0 %1612
    %v1614 = vsel %vm923, %v1320, 0.0
    %1615 = vadd.xlane.f32.xlu0 %v1614
    %v1616 = vpop.xlane.xlu0 %1615
    %v1617 = vsel %vm923, %v1321, 0.0
    %1618 = vadd.xlane.f32.xlu0 %v1617
    %v1619 = vpop.xlane.xlu0 %1618
    %v1620 = vsel %vm923, %v1322, 0.0
    %1621 = vadd.xlane.f32.xlu0 %v1620
    %v1622 = vpop.xlane.xlu0 %1621
    %v1623 = vsel %vm923, %v1323, 0.0
    %1624 = vadd.xlane.f32.xlu0 %v1623
    %v1625 = vpop.xlane.xlu0 %1624
    %v1626 = vsel %vm923, %v1324, 0.0
    %1627 = vadd.xlane.f32.xlu0 %v1626
    %v1628 = vpop.xlane.xlu0 %1627
    %v1629 = vsel %vm923, %v1325, 0.0
    %1630 = vadd.xlane.f32.xlu0 %v1629
    %v1631 = vpop.xlane.xlu0 %1630
    %v1632 = vsel %vm923, %v1326, 0.0
    %1633 = vadd.xlane.f32.xlu0 %v1632
    %v1634 = vpop.xlane.xlu0 %1633
    %v1635 = vsel %vm923, %v1327, 0.0
    %1636 = vadd.xlane.f32.xlu0 %v1635
    %v1637 = vpop.xlane.xlu0 %1636
    %v1638 = vsel %vm923, %v1328, 0.0
    %1639 = vadd.xlane.f32.xlu0 %v1638
    %v1640 = vpop.xlane.xlu0 %1639
    %v1641 = vsel %vm923, %v1329, 0.0
    %1642 = vadd.xlane.f32.xlu0 %v1641
    %v1643 = vpop.xlane.xlu0 %1642
    %v1644 = vsel %vm923, %v1330, 0.0
    %1645 = vadd.xlane.f32.xlu0 %v1644
    %v1646 = vpop.xlane.xlu0 %1645
    %v1647 = vsel %vm923, %v1331, 0.0
    %1648 = vadd.xlane.f32.xlu0 %v1647
    %v1649 = vpop.xlane.xlu0 %1648
    %v1650 = vsel %vm923, %v1332, 0.0
    %1651 = vadd.xlane.f32.xlu0 %v1650
    %v1652 = vpop.xlane.xlu0 %1651
    %v1653 = vsel %vm923, %v1333, 0.0
    %1654 = vadd.xlane.f32.xlu0 %v1653
    %v1655 = vpop.xlane.xlu0 %1654
    %v1656 = vsel %vm923, %v1334, 0.0
    %1657 = vadd.xlane.f32.xlu0 %v1656
    %v1658 = vpop.xlane.xlu0 %1657
    %v1659 = vsel %vm923, %v1335, 0.0
    %1660 = vadd.xlane.f32.xlu0 %v1659
    %v1661 = vpop.xlane.xlu0 %1660
    %v1662 = vsel %vm923, %v1336, 0.0
    %1663 = vadd.xlane.f32.xlu0 %v1662
    %v1664 = vpop.xlane.xlu0 %1663
    %v1665 = vsel %vm923, %v1337, 0.0
    %1666 = vadd.xlane.f32.xlu0 %v1665
    %v1667 = vpop.xlane.xlu0 %1666
    %v1668 = vsel %vm923, %v1338, 0.0
    %1669 = vadd.xlane.f32.xlu0 %v1668
    %v1670 = vpop.xlane.xlu0 %1669
    %v1671 = vsel %vm923, %v1339, 0.0
    %1672 = vadd.xlane.f32.xlu0 %v1671
    %v1673 = vpop.xlane.xlu0 %1672
    %v1674 = vsel %vm923, %v1340, 0.0
    %1675 = vadd.xlane.f32.xlu0 %v1674
    %v1676 = vpop.xlane.xlu0 %1675
    %v1677 = vsel %vm923, %v1341, 0.0
    %1678 = vadd.xlane.f32.xlu0 %v1677
    %v1679 = vpop.xlane.xlu0 %1678
    %v1680 = vsel %vm923, %v1342, 0.0
    %1681 = vadd.xlane.f32.xlu0 %v1680
    %v1682 = vpop.xlane.xlu0 %1681
    %v1683 = vsel %vm923, %v1343, 0.0
    %1684 = vadd.xlane.f32.xlu0 %v1683
    %v1685 = vpop.xlane.xlu0 %1684
    %v1686 = vsel %vm923, %v1344, 0.0
    %1687 = vadd.xlane.f32.xlu0 %v1686
    %v1688 = vpop.xlane.xlu0 %1687
    %v1689 = vsel %vm923, %v1345, 0.0
    %1690 = vadd.xlane.f32.xlu0 %v1689
    %v1691 = vpop.xlane.xlu0 %1690
    %v1692 = vsel %vm923, %v1346, 0.0
    %1693 = vadd.xlane.f32.xlu0 %v1692
    %v1694 = vpop.xlane.xlu0 %1693
    %v1695 = vsel %vm923, %v1347, 0.0
    %1696 = vadd.xlane.f32.xlu0 %v1695
    %v1697 = vpop.xlane.xlu0 %1696
    %v1698 = vsel %vm923, %v1348, 0.0
    %1699 = vadd.xlane.f32.xlu0 %v1698
    %v1700 = vpop.xlane.xlu0 %1699
    %v1701 = vsel %vm923, %v1349, 0.0
    %1702 = vadd.xlane.f32.xlu0 %v1701
    %v1703 = vpop.xlane.xlu0 %1702
    %v1704 = vsel %vm923, %v1350, 0.0
    %1705 = vadd.xlane.f32.xlu0 %v1704
    %v1706 = vpop.xlane.xlu0 %1705
    %v1707 = vsel %vm923, %v1351, 0.0
    %1708 = vadd.xlane.f32.xlu0 %v1707
    %v1709 = vpop.xlane.xlu0 %1708
    %v1710 = vsel %vm923, %v1352, 0.0
    %1711 = vadd.xlane.f32.xlu0 %v1710
    %v1712 = vpop.xlane.xlu0 %1711
    %v1713 = vsel %vm923, %v1353, 0.0
    %1714 = vadd.xlane.f32.xlu0 %v1713
    %v1715 = vpop.xlane.xlu0 %1714
    %v1716 = vsel %vm923, %v1354, 0.0
    %1717 = vadd.xlane.f32.xlu0 %v1716
    %v1718 = vpop.xlane.xlu0 %1717
    %v1719 = vsel %vm923, %v1355, 0.0
    %1720 = vadd.xlane.f32.xlu0 %v1719
    %v1721 = vpop.xlane.xlu0 %1720
    %v1722 = vsel %vm923, %v1356, 0.0
    %1723 = vadd.xlane.f32.xlu0 %v1722
    %v1724 = vpop.xlane.xlu0 %1723
    %v1725 = vsel %vm923, %v1357, 0.0
    %1726 = vadd.xlane.f32.xlu0 %v1725
    %v1727 = vpop.xlane.xlu0 %1726
    %v1728 = vsel %vm923, %v1358, 0.0
    %1729 = vadd.xlane.f32.xlu0 %v1728
    %v1730 = vpop.xlane.xlu0 %1729
    %v1731 = vsel %vm923, %v1359, 0.0
    %1732 = vadd.xlane.f32.xlu0 %v1731
    %v1733 = vpop.xlane.xlu0 %1732
    %v1734 = vsel %vm923, %v1360, 0.0
    %1735 = vadd.xlane.f32.xlu0 %v1734
    %v1736 = vpop.xlane.xlu0 %1735
    %v1737 = vsel %vm923, %v1361, 0.0
    %1738 = vadd.xlane.f32.xlu0 %v1737
    %v1739 = vpop.xlane.xlu0 %1738
    %v1740 = vsel %vm923, %v1362, 0.0
    %1741 = vadd.xlane.f32.xlu0 %v1740
    %v1742 = vpop.xlane.xlu0 %1741
    %v1743 = vsel %vm923, %v1363, 0.0
    %1744 = vadd.xlane.f32.xlu0 %v1743
    %v1745 = vpop.xlane.xlu0 %1744
    %v1746 = vsel %vm923, %v1364, 0.0
    %1747 = vadd.xlane.f32.xlu0 %v1746
    %v1748 = vpop.xlane.xlu0 %1747
    %v1749 = vpack.c.bf16 %v1370, %v1367
    %v1750 = vpack.c.bf16 %v1376, %v1373
    %v1751 = vpack.c.bf16 %v1382, %v1379
    %v1752 = vpack.c.bf16 %v1388, %v1385
    %v1753 = vpack.c.bf16 %v1394, %v1391
    %v1754 = vpack.c.bf16 %v1400, %v1397
    %v1755 = vpack.c.bf16 %v1406, %v1403
    %v1756 = vpack.c.bf16 %v1412, %v1409
    %v1757 = vpack.c.bf16 %v1418, %v1415
    %v1758 = vpack.c.bf16 %v1424, %v1421
    %v1759 = vpack.c.bf16 %v1430, %v1427
    %v1760 = vpack.c.bf16 %v1436, %v1433
    %v1761 = vpack.c.bf16 %v1442, %v1439
    %v1762 = vpack.c.bf16 %v1448, %v1445
    %v1763 = vpack.c.bf16 %v1454, %v1451
    %v1764 = vpack.c.bf16 %v1460, %v1457
    %v1765 = vpack.c.bf16 %v1466, %v1463
    %v1766 = vpack.c.bf16 %v1472, %v1469
    %v1767 = vpack.c.bf16 %v1478, %v1475
    %v1768 = vpack.c.bf16 %v1484, %v1481
    %v1769 = vpack.c.bf16 %v1490, %v1487
    %v1770 = vpack.c.bf16 %v1496, %v1493
    %v1771 = vpack.c.bf16 %v1502, %v1499
    %v1772 = vpack.c.bf16 %v1508, %v1505
    %v1773 = vpack.c.bf16 %v1514, %v1511
    %v1774 = vpack.c.bf16 %v1520, %v1517
    %v1775 = vpack.c.bf16 %v1526, %v1523
    %v1776 = vpack.c.bf16 %v1532, %v1529
    %v1777 = vpack.c.bf16 %v1538, %v1535
    %v1778 = vpack.c.bf16 %v1544, %v1541
    %v1779 = vpack.c.bf16 %v1550, %v1547
    %v1780 = vpack.c.bf16 %v1556, %v1553
    %v1781 = vpack.c.bf16 %v1562, %v1559
    %v1782 = vpack.c.bf16 %v1568, %v1565
    %v1783 = vpack.c.bf16 %v1574, %v1571
    %v1784 = vpack.c.bf16 %v1580, %v1577
    %v1785 = vpack.c.bf16 %v1586, %v1583
    %v1786 = vpack.c.bf16 %v1592, %v1589
    %v1787 = vpack.c.bf16 %v1598, %v1595
    %v1788 = vpack.c.bf16 %v1604, %v1601
    %v1789 = vpack.c.bf16 %v1610, %v1607
    %v1790 = vpack.c.bf16 %v1616, %v1613
    %v1791 = vpack.c.bf16 %v1622, %v1619
    %v1792 = vpack.c.bf16 %v1628, %v1625
    %v1793 = vpack.c.bf16 %v1634, %v1631
    %v1794 = vpack.c.bf16 %v1640, %v1637
    %v1795 = vpack.c.bf16 %v1646, %v1643
    %v1796 = vpack.c.bf16 %v1652, %v1649
    %v1797 = vpack.c.bf16 %v1658, %v1655
    %v1798 = vpack.c.bf16 %v1664, %v1661
    %v1799 = vpack.c.bf16 %v1670, %v1667
    %v1800 = vpack.c.bf16 %v1676, %v1673
    %v1801 = vpack.c.bf16 %v1682, %v1679
    %v1802 = vpack.c.bf16 %v1688, %v1685
    %v1803 = vpack.c.bf16 %v1694, %v1691
    %v1804 = vpack.c.bf16 %v1700, %v1697
    %v1805 = vpack.c.bf16 %v1706, %v1703
    %v1806 = vpack.c.bf16 %v1712, %v1709
    %v1807 = vpack.c.bf16 %v1718, %v1715
    %v1808 = vpack.c.bf16 %v1724, %v1721
    %v1809 = vpack.c.bf16 %v1730, %v1727
    %v1810 = vpack.c.bf16 %v1736, %v1733
    %v1811 = vpack.c.bf16 %v1742, %v1739
    %v1812 = vpack.c.bf16 %v1748, %v1745
    %v1813 = vpack.c.bf16 %v751, %v751
    %1814 = vmatprep.subr.bf16.mxu0 0
    %1815 = vmatpush1.bf16.msra.mxu0 %v487
    %1816 = vmatprep.subr.bf16.mxu0 0
    %1817 = vmatpush1.bf16.msra.mxu0 %v486
    %1818 = vmatprep.subr.bf16.mxu0 0
    %1819 = vmatpush1.bf16.msra.mxu0 %v485
    %1820 = vmatprep.subr.bf16.mxu0 0
    %1821 = vmatpush1.bf16.msra.mxu0 %v484
    %1822 = vmatprep.subr.bf16.mxu0 0
    %1823 = vmatpush1.bf16.msra.mxu0 %v483
    %1824 = vmatprep.subr.bf16.mxu0 0
    %1825 = vmatpush1.bf16.msra.mxu0 %v482
    %1826 = vmatprep.subr.bf16.mxu0 0
    %1827 = vmatpush1.bf16.msra.mxu0 %v481
    %1828 = vmatprep.subr.bf16.mxu0 0
    %1829 = vmatpush1.bf16.msra.mxu0 %v480
    %1830 = vmatprep.subr.bf16.mxu0 0
    %1831 = vmatpush2.bf16.msra.mxu0 0
    %1832 = vmatprep.subr.bf16.mxu0 0
    %1833 = vmatpush2.bf16.msra.mxu0 0
    %1834 = vmatprep.subr.bf16.mxu0 0
    %1835 = vmatpush2.bf16.msra.mxu0 0
    %1836 = vmatprep.subr.bf16.mxu0 0
    %1837 = vmatpush2.bf16.msra.mxu0 0
    %1838 = vmatprep.subr.bf16.mxu0 0
    %1839 = vmatpush2.bf16.msra.mxu0 0
    %1840 = vmatprep.subr.bf16.mxu0 0
    %1841 = vmatpush2.bf16.msra.mxu0 0
    %1842 = vmatprep.subr.bf16.mxu0 0
    %1843 = vmatpush2.bf16.msra.mxu0 0
    %1844 = vmatprep.subr.bf16.mxu0 0
    %1845 = vmatpush2.bf16.msra.mxu0 0
    %1846 = vmatprep.mubr.bf16.mxu0 0
    %1847 = vmatmul.mubr.bf16.gmra.mxu0 %v1813
    %v1848 = vpop.f32.mrf.mxu0
    %v1849 = vadd.f32 0.0, %v1848
    %v1850 = vpop.f32.mrf.mxu0
    %v1851 = vpop.f32.mrf.mxu0
    %v1852 = vpop.f32.mrf.mxu0
    %1853 = vdwg.mxu0
    %v1918 = vunpack.c.l.b16 %v1749
    %v1919 = vunpack.c.h.b16 %v1749
    %v1920 = vunpack.c.l.b16 %v1750
    %v1921 = vunpack.c.h.b16 %v1750
    %v1922 = vunpack.c.l.b16 %v1751
    %v1923 = vunpack.c.h.b16 %v1751
    %v1924 = vunpack.c.l.b16 %v1752
    %v1925 = vunpack.c.h.b16 %v1752
    %v1926 = vunpack.c.l.b16 %v1753
    %v1927 = vunpack.c.h.b16 %v1753
    %v1928 = vunpack.c.l.b16 %v1754
    %v1929 = vunpack.c.h.b16 %v1754
    %v1930 = vunpack.c.l.b16 %v1755
    %v1931 = vunpack.c.h.b16 %v1755
    %v1932 = vunpack.c.l.b16 %v1756
    %v1933 = vunpack.c.h.b16 %v1756
    %v1934 = vunpack.c.l.b16 %v1757
    %v1935 = vunpack.c.h.b16 %v1757
    %v1936 = vunpack.c.l.b16 %v1758
    %v1937 = vunpack.c.h.b16 %v1758
    %v1938 = vunpack.c.l.b16 %v1759
    %v1939 = vunpack.c.h.b16 %v1759
    %v1940 = vunpack.c.l.b16 %v1760
    %v1941 = vunpack.c.h.b16 %v1760
    %v1942 = vunpack.c.l.b16 %v1761
    %v1943 = vunpack.c.h.b16 %v1761
    %v1944 = vunpack.c.l.b16 %v1762
    %v1945 = vunpack.c.h.b16 %v1762
    %v1946 = vunpack.c.l.b16 %v1763
    %v1947 = vunpack.c.h.b16 %v1763
    %v1948 = vunpack.c.l.b16 %v1764
    %v1949 = vunpack.c.h.b16 %v1764
    %v1950 = vunpack.c.l.b16 %v1765
    %v1951 = vunpack.c.h.b16 %v1765
    %v1952 = vunpack.c.l.b16 %v1766
    %v1953 = vunpack.c.h.b16 %v1766
    %v1954 = vunpack.c.l.b16 %v1767
    %v1955 = vunpack.c.h.b16 %v1767
    %v1956 = vunpack.c.l.b16 %v1768
    %v1957 = vunpack.c.h.b16 %v1768
    %v1958 = vunpack.c.l.b16 %v1769
    %v1959 = vunpack.c.h.b16 %v1769
    %v1960 = vunpack.c.l.b16 %v1770
    %v1961 = vunpack.c.h.b16 %v1770
    %v1962 = vunpack.c.l.b16 %v1771
    %v1963 = vunpack.c.h.b16 %v1771
    %v1964 = vunpack.c.l.b16 %v1772
    %v1965 = vunpack.c.h.b16 %v1772
    %v1966 = vunpack.c.l.b16 %v1773
    %v1967 = vunpack.c.h.b16 %v1773
    %v1968 = vunpack.c.l.b16 %v1774
    %v1969 = vunpack.c.h.b16 %v1774
    %v1970 = vunpack.c.l.b16 %v1775
    %v1971 = vunpack.c.h.b16 %v1775
    %v1972 = vunpack.c.l.b16 %v1776
    %v1973 = vunpack.c.h.b16 %v1776
    %v1974 = vunpack.c.l.b16 %v1777
    %v1975 = vunpack.c.h.b16 %v1777
    %v1976 = vunpack.c.l.b16 %v1778
    %v1977 = vunpack.c.h.b16 %v1778
    %v1978 = vunpack.c.l.b16 %v1779
    %v1979 = vunpack.c.h.b16 %v1779
    %v1980 = vunpack.c.l.b16 %v1780
    %v1981 = vunpack.c.h.b16 %v1780
    %v1982 = vunpack.c.l.b16 %v1781
    %v1983 = vunpack.c.h.b16 %v1781
    %v1984 = vunpack.c.l.b16 %v1782
    %v1985 = vunpack.c.h.b16 %v1782
    %v1986 = vunpack.c.l.b16 %v1783
    %v1987 = vunpack.c.h.b16 %v1783
    %v1988 = vunpack.c.l.b16 %v1784
    %v1989 = vunpack.c.h.b16 %v1784
    %v1990 = vunpack.c.l.b16 %v1785
    %v1991 = vunpack.c.h.b16 %v1785
    %v1992 = vunpack.c.l.b16 %v1786
    %v1993 = vunpack.c.h.b16 %v1786
    %v1994 = vunpack.c.l.b16 %v1787
    %v1995 = vunpack.c.h.b16 %v1787
    %v1996 = vunpack.c.l.b16 %v1788
    %v1997 = vunpack.c.h.b16 %v1788
    %v1998 = vunpack.c.l.b16 %v1789
    %v1999 = vunpack.c.h.b16 %v1789
    %v2000 = vunpack.c.l.b16 %v1790
    %v2001 = vunpack.c.h.b16 %v1790
    %v2002 = vunpack.c.l.b16 %v1791
    %v2003 = vunpack.c.h.b16 %v1791
    %v2004 = vunpack.c.l.b16 %v1792
    %v2005 = vunpack.c.h.b16 %v1792
    %v2006 = vunpack.c.l.b16 %v1793
    %v2007 = vunpack.c.h.b16 %v1793
    %v2008 = vunpack.c.l.b16 %v1794
    %v2009 = vunpack.c.h.b16 %v1794
    %v2010 = vunpack.c.l.b16 %v1795
    %v2011 = vunpack.c.h.b16 %v1795
    %v2012 = vunpack.c.l.b16 %v1796
    %v2013 = vunpack.c.h.b16 %v1796
    %v2014 = vunpack.c.l.b16 %v1797
    %v2015 = vunpack.c.h.b16 %v1797
    %v2016 = vunpack.c.l.b16 %v1798
    %v2017 = vunpack.c.h.b16 %v1798
    %v2018 = vunpack.c.l.b16 %v1799
    %v2019 = vunpack.c.h.b16 %v1799
    %v2020 = vunpack.c.l.b16 %v1800
    %v2021 = vunpack.c.h.b16 %v1800
    %v2022 = vunpack.c.l.b16 %v1801
    %v2023 = vunpack.c.h.b16 %v1801
    %v2024 = vunpack.c.l.b16 %v1802
    %v2025 = vunpack.c.h.b16 %v1802
    %v2026 = vunpack.c.l.b16 %v1803
    %v2027 = vunpack.c.h.b16 %v1803
    %v2028 = vunpack.c.l.b16 %v1804
    %v2029 = vunpack.c.h.b16 %v1804
    %v2030 = vunpack.c.l.b16 %v1805
    %v2031 = vunpack.c.h.b16 %v1805
    %v2032 = vunpack.c.l.b16 %v1806
    %v2033 = vunpack.c.h.b16 %v1806
    %v2034 = vunpack.c.l.b16 %v1807
    %v2035 = vunpack.c.h.b16 %v1807
    %v2036 = vunpack.c.l.b16 %v1808
    %v2037 = vunpack.c.h.b16 %v1808
    %v2038 = vunpack.c.l.b16 %v1809
    %v2039 = vunpack.c.h.b16 %v1809
    %v2040 = vunpack.c.l.b16 %v1810
    %v2041 = vunpack.c.h.b16 %v1810
    %v2042 = vunpack.c.l.b16 %v1811
    %v2043 = vunpack.c.h.b16 %v1811
    %v2044 = vunpack.c.l.b16 %v1812
    %v2045 = vunpack.c.h.b16 %v1812
    %v2046 = vlaneseq
    %v2047 = vshrl.u32 %v2046, 7
    %v2048 = vsub.s32 %v875, %v2047
    %v2049 = vrot.slane %v1918, %v2048
    %v2050 = vadd.s32 %v875, 4294967288
    %v2051 = vlaneseq
    %v2052 = vshrl.u32 %v2051, 7
    %v2053 = vsub.s32 %v2050, %v2052
    %v2054 = vrot.slane %v1919, %v2053
    %vm2055 = vcmask 130112
    %v2056 = vsel %vm2055, %v2054, %v2049
    %v2057 = vadd.s32 %v875, 4294967280
    %v2058 = vlaneseq
    %v2059 = vshrl.u32 %v2058, 7
    %v2060 = vsub.s32 %v2057, %v2059
    %v2061 = vrot.slane %v1920, %v2060
    %vm2062 = vcmask 195712
    %v2063 = vsel %vm2062, %v2061, %v2056
    %v2064 = vadd.s32 %v875, 4294967272
    %v2065 = vlaneseq
    %v2066 = vshrl.u32 %v2065, 7
    %v2067 = vsub.s32 %v2064, %v2066
    %v2068 = vrot.slane %v1921, %v2067
    %vm2069 = vcmask 261312
    %v2070 = vsel %vm2069, %v2068, %v2063
    %v2071 = vadd.s32 %v875, 4294967264
    %v2072 = vlaneseq
    %v2073 = vshrl.u32 %v2072, 7
    %v2074 = vsub.s32 %v2071, %v2073
    %v2075 = vrot.slane %v1922, %v2074
    %vm2076 = vcmask 326912
    %v2077 = vsel %vm2076, %v2075, %v2070
    %v2078 = vadd.s32 %v875, 4294967256
    %v2079 = vlaneseq
    %v2080 = vshrl.u32 %v2079, 7
    %v2081 = vsub.s32 %v2078, %v2080
    %v2082 = vrot.slane %v1923, %v2081
    %vm2083 = vcmask 392512
    %v2084 = vsel %vm2083, %v2082, %v2077
    %v2085 = vadd.s32 %v875, 4294967248
    %v2086 = vlaneseq
    %v2087 = vshrl.u32 %v2086, 7
    %v2088 = vsub.s32 %v2085, %v2087
    %v2089 = vrot.slane %v1924, %v2088
    %vm2090 = vcmask 458112
    %v2091 = vsel %vm2090, %v2089, %v2084
    %v2092 = vadd.s32 %v875, 4294967240
    %v2093 = vlaneseq
    %v2094 = vshrl.u32 %v2093, 7
    %v2095 = vsub.s32 %v2092, %v2094
    %v2096 = vrot.slane %v1925, %v2095
    %vm2097 = vcmask 523712
    %v2098 = vsel %vm2097, %v2096, %v2091
    %v2099 = vadd.s32 %v875, 4294967232
    %v2100 = vlaneseq
    %v2101 = vshrl.u32 %v2100, 7
    %v2102 = vsub.s32 %v2099, %v2101
    %v2103 = vrot.slane %v1926, %v2102
    %vm2104 = vcmask 589312
    %v2105 = vsel %vm2104, %v2103, %v2098
    %v2106 = vadd.s32 %v875, 4294967224
    %v2107 = vlaneseq
    %v2108 = vshrl.u32 %v2107, 7
    %v2109 = vsub.s32 %v2106, %v2108
    %v2110 = vrot.slane %v1927, %v2109
    %vm2111 = vcmask 654912
    %v2112 = vsel %vm2111, %v2110, %v2105
    %v2113 = vadd.s32 %v875, 4294967216
    %v2114 = vlaneseq
    %v2115 = vshrl.u32 %v2114, 7
    %v2116 = vsub.s32 %v2113, %v2115
    %v2117 = vrot.slane %v1928, %v2116
    %vm2118 = vcmask 720512
    %v2119 = vsel %vm2118, %v2117, %v2112
    %v2120 = vadd.s32 %v875, 4294967208
    %v2121 = vlaneseq
    %v2122 = vshrl.u32 %v2121, 7
    %v2123 = vsub.s32 %v2120, %v2122
    %v2124 = vrot.slane %v1929, %v2123
    %vm2125 = vcmask 786112
    %v2126 = vsel %vm2125, %v2124, %v2119
    %v2127 = vadd.s32 %v875, 4294967200
    %v2128 = vlaneseq
    %v2129 = vshrl.u32 %v2128, 7
    %v2130 = vsub.s32 %v2127, %v2129
    %v2131 = vrot.slane %v1930, %v2130
    %vm2132 = vcmask 851712
    %v2133 = vsel %vm2132, %v2131, %v2126
    %v2134 = vadd.s32 %v875, 4294967192
    %v2135 = vlaneseq
    %v2136 = vshrl.u32 %v2135, 7
    %v2137 = vsub.s32 %v2134, %v2136
    %v2138 = vrot.slane %v1931, %v2137
    %vm2139 = vcmask 917312
    %v2140 = vsel %vm2139, %v2138, %v2133
    %v2141 = vadd.s32 %v875, 4294967184
    %v2142 = vlaneseq
    %v2143 = vshrl.u32 %v2142, 7
    %v2144 = vsub.s32 %v2141, %v2143
    %v2145 = vrot.slane %v1932, %v2144
    %vm2146 = vcmask 982912
    %v2147 = vsel %vm2146, %v2145, %v2140
    %v2148 = vadd.s32 %v875, 4294967176
    %v2149 = vlaneseq
    %v2150 = vshrl.u32 %v2149, 7
    %v2151 = vsub.s32 %v2148, %v2150
    %v2152 = vrot.slane %v1933, %v2151
    %vm2153 = vcmask 1048512
    %v2154 = vsel %vm2153, %v2152, %v2147
    %v2155 = vlaneseq
    %v2156 = vshrl.u32 %v2155, 7
    %v2157 = vsub.s32 %v875, %v2156
    %v2158 = vrot.slane %v1934, %v2157
    %v2159 = vlaneseq
    %v2160 = vshrl.u32 %v2159, 7
    %v2161 = vsub.s32 %v2050, %v2160
    %v2162 = vrot.slane %v1935, %v2161
    %v2163 = vsel %vm2055, %v2162, %v2158
    %v2164 = vlaneseq
    %v2165 = vshrl.u32 %v2164, 7
    %v2166 = vsub.s32 %v2057, %v2165
    %v2167 = vrot.slane %v1936, %v2166
    %v2168 = vsel %vm2062, %v2167, %v2163
    %v2169 = vlaneseq
    %v2170 = vshrl.u32 %v2169, 7
    %v2171 = vsub.s32 %v2064, %v2170
    %v2172 = vrot.slane %v1937, %v2171
    %v2173 = vsel %vm2069, %v2172, %v2168
    %v2174 = vlaneseq
    %v2175 = vshrl.u32 %v2174, 7
    %v2176 = vsub.s32 %v2071, %v2175
    %v2177 = vrot.slane %v1938, %v2176
    %v2178 = vsel %vm2076, %v2177, %v2173
    %v2179 = vlaneseq
    %v2180 = vshrl.u32 %v2179, 7
    %v2181 = vsub.s32 %v2078, %v2180
    %v2182 = vrot.slane %v1939, %v2181
    %v2183 = vsel %vm2083, %v2182, %v2178
    %v2184 = vlaneseq
    %v2185 = vshrl.u32 %v2184, 7
    %v2186 = vsub.s32 %v2085, %v2185
    %v2187 = vrot.slane %v1940, %v2186
    %v2188 = vsel %vm2090, %v2187, %v2183
    %v2189 = vlaneseq
    %v2190 = vshrl.u32 %v2189, 7
    %v2191 = vsub.s32 %v2092, %v2190
    %v2192 = vrot.slane %v1941, %v2191
    %v2193 = vsel %vm2097, %v2192, %v2188
    %v2194 = vlaneseq
    %v2195 = vshrl.u32 %v2194, 7
    %v2196 = vsub.s32 %v2099, %v2195
    %v2197 = vrot.slane %v1942, %v2196
    %v2198 = vsel %vm2104, %v2197, %v2193
    %v2199 = vlaneseq
    %v2200 = vshrl.u32 %v2199, 7
    %v2201 = vsub.s32 %v2106, %v2200
    %v2202 = vrot.slane %v1943, %v2201
    %v2203 = vsel %vm2111, %v2202, %v2198
    %v2204 = vlaneseq
    %v2205 = vshrl.u32 %v2204, 7
    %v2206 = vsub.s32 %v2113, %v2205
    %v2207 = vrot.slane %v1944, %v2206
    %v2208 = vsel %vm2118, %v2207, %v2203
    %v2209 = vlaneseq
    %v2210 = vshrl.u32 %v2209, 7
    %v2211 = vsub.s32 %v2120, %v2210
    %v2212 = vrot.slane %v1945, %v2211
    %v2213 = vsel %vm2125, %v2212, %v2208
    %v2214 = vlaneseq
    %v2215 = vshrl.u32 %v2214, 7
    %v2216 = vsub.s32 %v2127, %v2215
    %v2217 = vrot.slane %v1946, %v2216
    %v2218 = vsel %vm2132, %v2217, %v2213
    %v2219 = vlaneseq
    %v2220 = vshrl.u32 %v2219, 7
    %v2221 = vsub.s32 %v2134, %v2220
    %v2222 = vrot.slane %v1947, %v2221
    %v2223 = vsel %vm2139, %v2222, %v2218
    %v2224 = vlaneseq
    %v2225 = vshrl.u32 %v2224, 7
    %v2226 = vsub.s32 %v2141, %v2225
    %v2227 = vrot.slane %v1948, %v2226
    %v2228 = vsel %vm2146, %v2227, %v2223
    %v2229 = vlaneseq
    %v2230 = vshrl.u32 %v2229, 7
    %v2231 = vsub.s32 %v2148, %v2230
    %v2232 = vrot.slane %v1949, %v2231
    %v2233 = vsel %vm2153, %v2232, %v2228
    %v2234 = vlaneseq
    %v2235 = vshrl.u32 %v2234, 7
    %v2236 = vsub.s32 %v875, %v2235
    %v2237 = vrot.slane %v1950, %v2236
    %v2238 = vlaneseq
    %v2239 = vshrl.u32 %v2238, 7
    %v2240 = vsub.s32 %v2050, %v2239
    %v2241 = vrot.slane %v1951, %v2240
    %v2242 = vsel %vm2055, %v2241, %v2237
    %v2243 = vlaneseq
    %v2244 = vshrl.u32 %v2243, 7
    %v2245 = vsub.s32 %v2057, %v2244
    %v2246 = vrot.slane %v1952, %v2245
    %v2247 = vsel %vm2062, %v2246, %v2242
    %v2248 = vlaneseq
    %v2249 = vshrl.u32 %v2248, 7
    %v2250 = vsub.s32 %v2064, %v2249
    %v2251 = vrot.slane %v1953, %v2250
    %v2252 = vsel %vm2069, %v2251, %v2247
    %v2253 = vlaneseq
    %v2254 = vshrl.u32 %v2253, 7
    %v2255 = vsub.s32 %v2071, %v2254
    %v2256 = vrot.slane %v1954, %v2255
    %v2257 = vsel %vm2076, %v2256, %v2252
    %v2258 = vlaneseq
    %v2259 = vshrl.u32 %v2258, 7
    %v2260 = vsub.s32 %v2078, %v2259
    %v2261 = vrot.slane %v1955, %v2260
    %v2262 = vsel %vm2083, %v2261, %v2257
    %v2263 = vlaneseq
    %v2264 = vshrl.u32 %v2263, 7
    %v2265 = vsub.s32 %v2085, %v2264
    %v2266 = vrot.slane %v1956, %v2265
    %v2267 = vsel %vm2090, %v2266, %v2262
    %v2268 = vlaneseq
    %v2269 = vshrl.u32 %v2268, 7
    %v2270 = vsub.s32 %v2092, %v2269
    %v2271 = vrot.slane %v1957, %v2270
    %v2272 = vsel %vm2097, %v2271, %v2267
    %v2273 = vlaneseq
    %v2274 = vshrl.u32 %v2273, 7
    %v2275 = vsub.s32 %v2099, %v2274
    %v2276 = vrot.slane %v1958, %v2275
    %v2277 = vsel %vm2104, %v2276, %v2272
    %v2278 = vlaneseq
    %v2279 = vshrl.u32 %v2278, 7
    %v2280 = vsub.s32 %v2106, %v2279
    %v2281 = vrot.slane %v1959, %v2280
    %v2282 = vsel %vm2111, %v2281, %v2277
    %v2283 = vlaneseq
    %v2284 = vshrl.u32 %v2283, 7
    %v2285 = vsub.s32 %v2113, %v2284
    %v2286 = vrot.slane %v1960, %v2285
    %v2287 = vsel %vm2118, %v2286, %v2282
    %v2288 = vlaneseq
    %v2289 = vshrl.u32 %v2288, 7
    %v2290 = vsub.s32 %v2120, %v2289
    %v2291 = vrot.slane %v1961, %v2290
    %v2292 = vsel %vm2125, %v2291, %v2287
    %v2293 = vlaneseq
    %v2294 = vshrl.u32 %v2293, 7
    %v2295 = vsub.s32 %v2127, %v2294
    %v2296 = vrot.slane %v1962, %v2295
    %v2297 = vsel %vm2132, %v2296, %v2292
    %v2298 = vlaneseq
    %v2299 = vshrl.u32 %v2298, 7
    %v2300 = vsub.s32 %v2134, %v2299
    %v2301 = vrot.slane %v1963, %v2300
    %v2302 = vsel %vm2139, %v2301, %v2297
    %v2303 = vlaneseq
    %v2304 = vshrl.u32 %v2303, 7
    %v2305 = vsub.s32 %v2141, %v2304
    %v2306 = vrot.slane %v1964, %v2305
    %v2307 = vsel %vm2146, %v2306, %v2302
    %v2308 = vlaneseq
    %v2309 = vshrl.u32 %v2308, 7
    %v2310 = vsub.s32 %v2148, %v2309
    %v2311 = vrot.slane %v1965, %v2310
    %v2312 = vsel %vm2153, %v2311, %v2307
    %v2313 = vlaneseq
    %v2314 = vshrl.u32 %v2313, 7
    %v2315 = vsub.s32 %v875, %v2314
    %v2316 = vrot.slane %v1966, %v2315
    %v2317 = vlaneseq
    %v2318 = vshrl.u32 %v2317, 7
    %v2319 = vsub.s32 %v2050, %v2318
    %v2320 = vrot.slane %v1967, %v2319
    %v2321 = vsel %vm2055, %v2320, %v2316
    %v2322 = vlaneseq
    %v2323 = vshrl.u32 %v2322, 7
    %v2324 = vsub.s32 %v2057, %v2323
    %v2325 = vrot.slane %v1968, %v2324
    %v2326 = vsel %vm2062, %v2325, %v2321
    %v2327 = vlaneseq
    %v2328 = vshrl.u32 %v2327, 7
    %v2329 = vsub.s32 %v2064, %v2328
    %v2330 = vrot.slane %v1969, %v2329
    %v2331 = vsel %vm2069, %v2330, %v2326
    %v2332 = vlaneseq
    %v2333 = vshrl.u32 %v2332, 7
    %v2334 = vsub.s32 %v2071, %v2333
    %v2335 = vrot.slane %v1970, %v2334
    %v2336 = vsel %vm2076, %v2335, %v2331
    %v2337 = vlaneseq
    %v2338 = vshrl.u32 %v2337, 7
    %v2339 = vsub.s32 %v2078, %v2338
    %v2340 = vrot.slane %v1971, %v2339
    %v2341 = vsel %vm2083, %v2340, %v2336
    %v2342 = vlaneseq
    %v2343 = vshrl.u32 %v2342, 7
    %v2344 = vsub.s32 %v2085, %v2343
    %v2345 = vrot.slane %v1972, %v2344
    %v2346 = vsel %vm2090, %v2345, %v2341
    %v2347 = vlaneseq
    %v2348 = vshrl.u32 %v2347, 7
    %v2349 = vsub.s32 %v2092, %v2348
    %v2350 = vrot.slane %v1973, %v2349
    %v2351 = vsel %vm2097, %v2350, %v2346
    %v2352 = vlaneseq
    %v2353 = vshrl.u32 %v2352, 7
    %v2354 = vsub.s32 %v2099, %v2353
    %v2355 = vrot.slane %v1974, %v2354
    %v2356 = vsel %vm2104, %v2355, %v2351
    %v2357 = vlaneseq
    %v2358 = vshrl.u32 %v2357, 7
    %v2359 = vsub.s32 %v2106, %v2358
    %v2360 = vrot.slane %v1975, %v2359
    %v2361 = vsel %vm2111, %v2360, %v2356
    %v2362 = vlaneseq
    %v2363 = vshrl.u32 %v2362, 7
    %v2364 = vsub.s32 %v2113, %v2363
    %v2365 = vrot.slane %v1976, %v2364
    %v2366 = vsel %vm2118, %v2365, %v2361
    %v2367 = vlaneseq
    %v2368 = vshrl.u32 %v2367, 7
    %v2369 = vsub.s32 %v2120, %v2368
    %v2370 = vrot.slane %v1977, %v2369
    %v2371 = vsel %vm2125, %v2370, %v2366
    %v2372 = vlaneseq
    %v2373 = vshrl.u32 %v2372, 7
    %v2374 = vsub.s32 %v2127, %v2373
    %v2375 = vrot.slane %v1978, %v2374
    %v2376 = vsel %vm2132, %v2375, %v2371
    %v2377 = vlaneseq
    %v2378 = vshrl.u32 %v2377, 7
    %v2379 = vsub.s32 %v2134, %v2378
    %v2380 = vrot.slane %v1979, %v2379
    %v2381 = vsel %vm2139, %v2380, %v2376
    %v2382 = vlaneseq
    %v2383 = vshrl.u32 %v2382, 7
    %v2384 = vsub.s32 %v2141, %v2383
    %v2385 = vrot.slane %v1980, %v2384
    %v2386 = vsel %vm2146, %v2385, %v2381
    %v2387 = vlaneseq
    %v2388 = vshrl.u32 %v2387, 7
    %v2389 = vsub.s32 %v2148, %v2388
    %v2390 = vrot.slane %v1981, %v2389
    %v2391 = vsel %vm2153, %v2390, %v2386
    %v2392 = vlaneseq
    %v2393 = vshrl.u32 %v2392, 7
    %v2394 = vsub.s32 %v875, %v2393
    %v2395 = vrot.slane %v1982, %v2394
    %v2396 = vlaneseq
    %v2397 = vshrl.u32 %v2396, 7
    %v2398 = vsub.s32 %v2050, %v2397
    %v2399 = vrot.slane %v1983, %v2398
    %v2400 = vsel %vm2055, %v2399, %v2395
    %v2401 = vlaneseq
    %v2402 = vshrl.u32 %v2401, 7
    %v2403 = vsub.s32 %v2057, %v2402
    %v2404 = vrot.slane %v1984, %v2403
    %v2405 = vsel %vm2062, %v2404, %v2400
    %v2406 = vlaneseq
    %v2407 = vshrl.u32 %v2406, 7
    %v2408 = vsub.s32 %v2064, %v2407
    %v2409 = vrot.slane %v1985, %v2408
    %v2410 = vsel %vm2069, %v2409, %v2405
    %v2411 = vlaneseq
    %v2412 = vshrl.u32 %v2411, 7
    %v2413 = vsub.s32 %v2071, %v2412
    %v2414 = vrot.slane %v1986, %v2413
    %v2415 = vsel %vm2076, %v2414, %v2410
    %v2416 = vlaneseq
    %v2417 = vshrl.u32 %v2416, 7
    %v2418 = vsub.s32 %v2078, %v2417
    %v2419 = vrot.slane %v1987, %v2418
    %v2420 = vsel %vm2083, %v2419, %v2415
    %v2421 = vlaneseq
    %v2422 = vshrl.u32 %v2421, 7
    %v2423 = vsub.s32 %v2085, %v2422
    %v2424 = vrot.slane %v1988, %v2423
    %v2425 = vsel %vm2090, %v2424, %v2420
    %v2426 = vlaneseq
    %v2427 = vshrl.u32 %v2426, 7
    %v2428 = vsub.s32 %v2092, %v2427
    %v2429 = vrot.slane %v1989, %v2428
    %v2430 = vsel %vm2097, %v2429, %v2425
    %v2431 = vlaneseq
    %v2432 = vshrl.u32 %v2431, 7
    %v2433 = vsub.s32 %v2099, %v2432
    %v2434 = vrot.slane %v1990, %v2433
    %v2435 = vsel %vm2104, %v2434, %v2430
    %v2436 = vlaneseq
    %v2437 = vshrl.u32 %v2436, 7
    %v2438 = vsub.s32 %v2106, %v2437
    %v2439 = vrot.slane %v1991, %v2438
    %v2440 = vsel %vm2111, %v2439, %v2435
    %v2441 = vlaneseq
    %v2442 = vshrl.u32 %v2441, 7
    %v2443 = vsub.s32 %v2113, %v2442
    %v2444 = vrot.slane %v1992, %v2443
    %v2445 = vsel %vm2118, %v2444, %v2440
    %v2446 = vlaneseq
    %v2447 = vshrl.u32 %v2446, 7
    %v2448 = vsub.s32 %v2120, %v2447
    %v2449 = vrot.slane %v1993, %v2448
    %v2450 = vsel %vm2125, %v2449, %v2445
    %v2451 = vlaneseq
    %v2452 = vshrl.u32 %v2451, 7
    %v2453 = vsub.s32 %v2127, %v2452
    %v2454 = vrot.slane %v1994, %v2453
    %v2455 = vsel %vm2132, %v2454, %v2450
    %v2456 = vlaneseq
    %v2457 = vshrl.u32 %v2456, 7
    %v2458 = vsub.s32 %v2134, %v2457
    %v2459 = vrot.slane %v1995, %v2458
    %v2460 = vsel %vm2139, %v2459, %v2455
    %v2461 = vlaneseq
    %v2462 = vshrl.u32 %v2461, 7
    %v2463 = vsub.s32 %v2141, %v2462
    %v2464 = vrot.slane %v1996, %v2463
    %v2465 = vsel %vm2146, %v2464, %v2460
    %v2466 = vlaneseq
    %v2467 = vshrl.u32 %v2466, 7
    %v2468 = vsub.s32 %v2148, %v2467
    %v2469 = vrot.slane %v1997, %v2468
    %v2470 = vsel %vm2153, %v2469, %v2465
    %v2471 = vlaneseq
    %v2472 = vshrl.u32 %v2471, 7
    %v2473 = vsub.s32 %v875, %v2472
    %v2474 = vrot.slane %v1998, %v2473
    %v2475 = vlaneseq
    %v2476 = vshrl.u32 %v2475, 7
    %v2477 = vsub.s32 %v2050, %v2476
    %v2478 = vrot.slane %v1999, %v2477
    %v2479 = vsel %vm2055, %v2478, %v2474
    %v2480 = vlaneseq
    %v2481 = vshrl.u32 %v2480, 7
    %v2482 = vsub.s32 %v2057, %v2481
    %v2483 = vrot.slane %v2000, %v2482
    %v2484 = vsel %vm2062, %v2483, %v2479
    %v2485 = vlaneseq
    %v2486 = vshrl.u32 %v2485, 7
    %v2487 = vsub.s32 %v2064, %v2486
    %v2488 = vrot.slane %v2001, %v2487
    %v2489 = vsel %vm2069, %v2488, %v2484
    %v2490 = vlaneseq
    %v2491 = vshrl.u32 %v2490, 7
    %v2492 = vsub.s32 %v2071, %v2491
    %v2493 = vrot.slane %v2002, %v2492
    %v2494 = vsel %vm2076, %v2493, %v2489
    %v2495 = vlaneseq
    %v2496 = vshrl.u32 %v2495, 7
    %v2497 = vsub.s32 %v2078, %v2496
    %v2498 = vrot.slane %v2003, %v2497
    %v2499 = vsel %vm2083, %v2498, %v2494
    %v2500 = vlaneseq
    %v2501 = vshrl.u32 %v2500, 7
    %v2502 = vsub.s32 %v2085, %v2501
    %v2503 = vrot.slane %v2004, %v2502
    %v2504 = vsel %vm2090, %v2503, %v2499
    %v2505 = vlaneseq
    %v2506 = vshrl.u32 %v2505, 7
    %v2507 = vsub.s32 %v2092, %v2506
    %v2508 = vrot.slane %v2005, %v2507
    %v2509 = vsel %vm2097, %v2508, %v2504
    %v2510 = vlaneseq
    %v2511 = vshrl.u32 %v2510, 7
    %v2512 = vsub.s32 %v2099, %v2511
    %v2513 = vrot.slane %v2006, %v2512
    %v2514 = vsel %vm2104, %v2513, %v2509
    %v2515 = vlaneseq
    %v2516 = vshrl.u32 %v2515, 7
    %v2517 = vsub.s32 %v2106, %v2516
    %v2518 = vrot.slane %v2007, %v2517
    %v2519 = vsel %vm2111, %v2518, %v2514
    %v2520 = vlaneseq
    %v2521 = vshrl.u32 %v2520, 7
    %v2522 = vsub.s32 %v2113, %v2521
    %v2523 = vrot.slane %v2008, %v2522
    %v2524 = vsel %vm2118, %v2523, %v2519
    %v2525 = vlaneseq
    %v2526 = vshrl.u32 %v2525, 7
    %v2527 = vsub.s32 %v2120, %v2526
    %v2528 = vrot.slane %v2009, %v2527
    %v2529 = vsel %vm2125, %v2528, %v2524
    %v2530 = vlaneseq
    %v2531 = vshrl.u32 %v2530, 7
    %v2532 = vsub.s32 %v2127, %v2531
    %v2533 = vrot.slane %v2010, %v2532
    %v2534 = vsel %vm2132, %v2533, %v2529
    %v2535 = vlaneseq
    %v2536 = vshrl.u32 %v2535, 7
    %v2537 = vsub.s32 %v2134, %v2536
    %v2538 = vrot.slane %v2011, %v2537
    %v2539 = vsel %vm2139, %v2538, %v2534
    %v2540 = vlaneseq
    %v2541 = vshrl.u32 %v2540, 7
    %v2542 = vsub.s32 %v2141, %v2541
    %v2543 = vrot.slane %v2012, %v2542
    %v2544 = vsel %vm2146, %v2543, %v2539
    %v2545 = vlaneseq
    %v2546 = vshrl.u32 %v2545, 7
    %v2547 = vsub.s32 %v2148, %v2546
    %v2548 = vrot.slane %v2013, %v2547
    %v2549 = vsel %vm2153, %v2548, %v2544
    %v2550 = vlaneseq
    %v2551 = vshrl.u32 %v2550, 7
    %v2552 = vsub.s32 %v875, %v2551
    %v2553 = vrot.slane %v2014, %v2552
    %v2554 = vlaneseq
    %v2555 = vshrl.u32 %v2554, 7
    %v2556 = vsub.s32 %v2050, %v2555
    %v2557 = vrot.slane %v2015, %v2556
    %v2558 = vsel %vm2055, %v2557, %v2553
    %v2559 = vlaneseq
    %v2560 = vshrl.u32 %v2559, 7
    %v2561 = vsub.s32 %v2057, %v2560
    %v2562 = vrot.slane %v2016, %v2561
    %v2563 = vsel %vm2062, %v2562, %v2558
    %v2564 = vlaneseq
    %v2565 = vshrl.u32 %v2564, 7
    %v2566 = vsub.s32 %v2064, %v2565
    %v2567 = vrot.slane %v2017, %v2566
    %v2568 = vsel %vm2069, %v2567, %v2563
    %v2569 = vlaneseq
    %v2570 = vshrl.u32 %v2569, 7
    %v2571 = vsub.s32 %v2071, %v2570
    %v2572 = vrot.slane %v2018, %v2571
    %v2573 = vsel %vm2076, %v2572, %v2568
    %v2574 = vlaneseq
    %v2575 = vshrl.u32 %v2574, 7
    %v2576 = vsub.s32 %v2078, %v2575
    %v2577 = vrot.slane %v2019, %v2576
    %v2578 = vsel %vm2083, %v2577, %v2573
    %v2579 = vlaneseq
    %v2580 = vshrl.u32 %v2579, 7
    %v2581 = vsub.s32 %v2085, %v2580
    %v2582 = vrot.slane %v2020, %v2581
    %v2583 = vsel %vm2090, %v2582, %v2578
    %v2584 = vlaneseq
    %v2585 = vshrl.u32 %v2584, 7
    %v2586 = vsub.s32 %v2092, %v2585
    %v2587 = vrot.slane %v2021, %v2586
    %v2588 = vsel %vm2097, %v2587, %v2583
    %v2589 = vlaneseq
    %v2590 = vshrl.u32 %v2589, 7
    %v2591 = vsub.s32 %v2099, %v2590
    %v2592 = vrot.slane %v2022, %v2591
    %v2593 = vsel %vm2104, %v2592, %v2588
    %v2594 = vlaneseq
    %v2595 = vshrl.u32 %v2594, 7
    %v2596 = vsub.s32 %v2106, %v2595
    %v2597 = vrot.slane %v2023, %v2596
    %v2598 = vsel %vm2111, %v2597, %v2593
    %v2599 = vlaneseq
    %v2600 = vshrl.u32 %v2599, 7
    %v2601 = vsub.s32 %v2113, %v2600
    %v2602 = vrot.slane %v2024, %v2601
    %v2603 = vsel %vm2118, %v2602, %v2598
    %v2604 = vlaneseq
    %v2605 = vshrl.u32 %v2604, 7
    %v2606 = vsub.s32 %v2120, %v2605
    %v2607 = vrot.slane %v2025, %v2606
    %v2608 = vsel %vm2125, %v2607, %v2603
    %v2609 = vlaneseq
    %v2610 = vshrl.u32 %v2609, 7
    %v2611 = vsub.s32 %v2127, %v2610
    %v2612 = vrot.slane %v2026, %v2611
    %v2613 = vsel %vm2132, %v2612, %v2608
    %v2614 = vlaneseq
    %v2615 = vshrl.u32 %v2614, 7
    %v2616 = vsub.s32 %v2134, %v2615
    %v2617 = vrot.slane %v2027, %v2616
    %v2618 = vsel %vm2139, %v2617, %v2613
    %v2619 = vlaneseq
    %v2620 = vshrl.u32 %v2619, 7
    %v2621 = vsub.s32 %v2141, %v2620
    %v2622 = vrot.slane %v2028, %v2621
    %v2623 = vsel %vm2146, %v2622, %v2618
    %v2624 = vlaneseq
    %v2625 = vshrl.u32 %v2624, 7
    %v2626 = vsub.s32 %v2148, %v2625
    %v2627 = vrot.slane %v2029, %v2626
    %v2628 = vsel %vm2153, %v2627, %v2623
    %v2629 = vlaneseq
    %v2630 = vshrl.u32 %v2629, 7
    %v2631 = vsub.s32 %v875, %v2630
    %v2632 = vrot.slane %v2030, %v2631
    %v2633 = vlaneseq
    %v2634 = vshrl.u32 %v2633, 7
    %v2635 = vsub.s32 %v2050, %v2634
    %v2636 = vrot.slane %v2031, %v2635
    %v2637 = vsel %vm2055, %v2636, %v2632
    %v2638 = vlaneseq
    %v2639 = vshrl.u32 %v2638, 7
    %v2640 = vsub.s32 %v2057, %v2639
    %v2641 = vrot.slane %v2032, %v2640
    %v2642 = vsel %vm2062, %v2641, %v2637
    %v2643 = vlaneseq
    %v2644 = vshrl.u32 %v2643, 7
    %v2645 = vsub.s32 %v2064, %v2644
    %v2646 = vrot.slane %v2033, %v2645
    %v2647 = vsel %vm2069, %v2646, %v2642
    %v2648 = vlaneseq
    %v2649 = vshrl.u32 %v2648, 7
    %v2650 = vsub.s32 %v2071, %v2649
    %v2651 = vrot.slane %v2034, %v2650
    %v2652 = vsel %vm2076, %v2651, %v2647
    %v2653 = vlaneseq
    %v2654 = vshrl.u32 %v2653, 7
    %v2655 = vsub.s32 %v2078, %v2654
    %v2656 = vrot.slane %v2035, %v2655
    %v2657 = vsel %vm2083, %v2656, %v2652
    %v2658 = vlaneseq
    %v2659 = vshrl.u32 %v2658, 7
    %v2660 = vsub.s32 %v2085, %v2659
    %v2661 = vrot.slane %v2036, %v2660
    %v2662 = vsel %vm2090, %v2661, %v2657
    %v2663 = vlaneseq
    %v2664 = vshrl.u32 %v2663, 7
    %v2665 = vsub.s32 %v2092, %v2664
    %v2666 = vrot.slane %v2037, %v2665
    %v2667 = vsel %vm2097, %v2666, %v2662
    %v2668 = vlaneseq
    %v2669 = vshrl.u32 %v2668, 7
    %v2670 = vsub.s32 %v2099, %v2669
    %v2671 = vrot.slane %v2038, %v2670
    %v2672 = vsel %vm2104, %v2671, %v2667
    %v2673 = vlaneseq
    %v2674 = vshrl.u32 %v2673, 7
    %v2675 = vsub.s32 %v2106, %v2674
    %v2676 = vrot.slane %v2039, %v2675
    %v2677 = vsel %vm2111, %v2676, %v2672
    %v2678 = vlaneseq
    %v2679 = vshrl.u32 %v2678, 7
    %v2680 = vsub.s32 %v2113, %v2679
    %v2681 = vrot.slane %v2040, %v2680
    %v2682 = vsel %vm2118, %v2681, %v2677
    %v2683 = vlaneseq
    %v2684 = vshrl.u32 %v2683, 7
    %v2685 = vsub.s32 %v2120, %v2684
    %v2686 = vrot.slane %v2041, %v2685
    %v2687 = vsel %vm2125, %v2686, %v2682
    %v2688 = vlaneseq
    %v2689 = vshrl.u32 %v2688, 7
    %v2690 = vsub.s32 %v2127, %v2689
    %v2691 = vrot.slane %v2042, %v2690
    %v2692 = vsel %vm2132, %v2691, %v2687
    %v2693 = vlaneseq
    %v2694 = vshrl.u32 %v2693, 7
    %v2695 = vsub.s32 %v2134, %v2694
    %v2696 = vrot.slane %v2043, %v2695
    %v2697 = vsel %vm2139, %v2696, %v2692
    %v2698 = vlaneseq
    %v2699 = vshrl.u32 %v2698, 7
    %v2700 = vsub.s32 %v2141, %v2699
    %v2701 = vrot.slane %v2044, %v2700
    %v2702 = vsel %vm2146, %v2701, %v2697
    %v2703 = vlaneseq
    %v2704 = vshrl.u32 %v2703, 7
    %v2705 = vsub.s32 %v2148, %v2704
    %v2706 = vrot.slane %v2045, %v2705
    %v2707 = vsel %vm2153, %v2706, %v2702
    %v2708 = vsel %vm908, %v2233, %v2154
    %v2709 = vsel %vm910, %v2312, %v2708
    %v2710 = vsel %vm912, %v2391, %v2709
    %v2711 = vsel %vm914, %v2470, %v2710
    %v2712 = vsel %vm916, %v2549, %v2711
    %v2713 = vsel %vm918, %v2628, %v2712
    %v2714 = vsel %vm920, %v2707, %v2713
    %v2715 = vpack.c.b16 %v2714, %v2714
    %2717 = vmatprep.subr.bf16.mxu0 0
    %2718 = vmatpush1.bf16.msra.mxu0 %v463
    %2719 = vmatprep.subr.bf16.mxu0 0
    %2720 = vmatpush1.bf16.msra.mxu0 %v462
    %2721 = vmatprep.subr.bf16.mxu0 0
    %2722 = vmatpush1.bf16.msra.mxu0 %v461
    %2723 = vmatprep.subr.bf16.mxu0 0
    %2724 = vmatpush1.bf16.msra.mxu0 %v460
    %2725 = vmatprep.subr.bf16.mxu0 0
    %2726 = vmatpush1.bf16.msra.mxu0 %v459
    %2727 = vmatprep.subr.bf16.mxu0 0
    %2728 = vmatpush1.bf16.msra.mxu0 %v458
    %2729 = vmatprep.subr.bf16.mxu0 0
    %2730 = vmatpush1.bf16.msra.mxu0 %v457
    %2731 = vmatprep.subr.bf16.mxu0 0
    %2732 = vmatpush1.bf16.msra.mxu0 %v456
    %2733 = vmatprep.subr.bf16.mxu0 0
    %2734 = vmatpush2.bf16.msra.mxu0 0
    %2735 = vmatprep.subr.bf16.mxu0 0
    %2736 = vmatpush2.bf16.msra.mxu0 0
    %2737 = vmatprep.subr.bf16.mxu0 0
    %2738 = vmatpush2.bf16.msra.mxu0 0
    %2739 = vmatprep.subr.bf16.mxu0 0
    %2740 = vmatpush2.bf16.msra.mxu0 0
    %2741 = vmatprep.subr.bf16.mxu0 0
    %2742 = vmatpush2.bf16.msra.mxu0 0
    %2743 = vmatprep.subr.bf16.mxu0 0
    %2744 = vmatpush2.bf16.msra.mxu0 0
    %2745 = vmatprep.subr.bf16.mxu0 0
    %2746 = vmatpush2.bf16.msra.mxu0 0
    %2747 = vmatprep.subr.bf16.mxu0 0
    %2748 = vmatpush2.bf16.msra.mxu0 0
    %2749 = vmatprep.mubr.bf16.mxu0 0
    %2750 = vmatmul.mubr.bf16.gmra.mxu0 %v2715
    %v2751 = vpop.f32.mrf.mxu0
    %v2752 = vadd.f32 %v1849, %v2751
    %v2753 = vpop.f32.mrf.mxu0
    %v2754 = vpop.f32.mrf.mxu0
    %v2755 = vpop.f32.mrf.mxu0
    %2756 = vdwg.mxu0
    %v2757 = vtanh.pop %v2752
    %s2758 = smul.u32 %s627, 8
    %s2759 = scalar_lea.vmem %s10, %s2758
    %2760 = vst [vmem:[%s2759] sm:$0xff] %v2757
  $region46: #{forward.4} parent=0 // loop_footer
    %s631 = sadd.s32 1, %s627
  $region47: #{forward.4} parent=0 // loop_footer_branch
    %626 = sbr.rel target = $region43
  $region48: #{forward.4} parent=0 // loop_exit
    _
  // Predicated region
  $region49: #{forward.4} parent=0 // pred_check
    _
  $region50: #{forward.4} parent=0 // pred_check_branch
    %2762 = sbr.rel (0) target = $region52
  $region51: #{forward.4} parent=0 // pred_region
    _
  $region52: #{forward.4} parent=0 // pred_fallthru
    _
  // Predicated region
  $region53: #{forward.4} parent=0 // pred_check
    _
  $region54: #{forward.4} parent=0 // pred_check_branch
    %2764 = sbr.rel (0) target = $region56
  $region55: #{forward.4} parent=0 // pred_region
    _
  $region56: #{forward.4} parent=0 // pred_fallthru
    _

</llo_original>
